<compile_context>
chip_gen: v7x
topology: tpu7x:2x2x1
jax: 0.10.0
libtpu: 0.0.40
codegen_flags: <defaults>
</compile_context>

<pallas_src>
import jax
import jax.numpy as jnp
import numpy as np
from jax import lax
from jax.experimental import pallas as pl
from jax.experimental.pallas import tpu as pltpu

# ------------------- configuration (mirrors SpnArgs defaults) ----------------
NUM_DIMS = 8
NUM_GAUSS = 8          # args.num_gauss
NUM_SUMS = 20          # args.num_sums
NUM_CLASSES = 4        # num_classes (root SumVector size)
GAUSS_MIN_SIGMA = 0.1  # args.gauss_min_sigma
GAUSS_MAX_SIGMA = 1.0  # args.gauss_max_sigma
BATCH = 2

# Synthetic region graph layers (replaces region_graph.make_layers()):
LEAF_SCOPES = ((0, 1), (2, 3), (4, 5), (6, 7),     # repetition 1
               (0, 2), (4, 6), (1, 3), (5, 7))     # repetition 2
# layer-1 partitions: (vector1, vector2) indices into the leaf layer
LAYER1_PARTS = ((0, 1), (2, 3), (4, 5), (6, 7))
# layer-3 partitions: (vector1, vector2) indices into the layer-2 sum vectors
LAYER3_PARTS = ((0, 1), (2, 3))

_HALF_LOG_2PI = 0.5 * float(np.log(2.0 * np.pi))
_TINY = 1e-30
_PREC = lax.Precision.HIGHEST


def _outer_flat(fast, slow):
    """flat[b, j*Nf + i] = fast[b, i] * slow[b, j]  (torch ProductVector .view order).

    Built with a lane concat of `fast` copies + broadcast/concat of `slow`
    followed by one VPU multiply; avoids any in-kernel (sublane,lane) reshape.
    """
    n_slow = slow.shape[-1]
    fast_tiled = jnp.concatenate([fast] * n_slow, axis=-1)                 # [B, Ns*Nf]
    slow_rep = jnp.concatenate(
        [jnp.broadcast_to(slow[:, j:j + 1], fast.shape) for j in range(n_slow)],
        axis=-1)                                                           # [B, Ns*Nf]
    return fast_tiled * slow_rep


# ------------------------------- fused kernel ---------------------------------
def ratspn_fused_kernel(xs_ref, mean_ref, sig_ref, sumw_ref, rootw_ref, out_ref):
    # xs_ref:    [L, B, D]    scoped inputs per leaf vector
    # mean_ref:  [L, D, K]    GaussVector.means
    # sig_ref:   [L, D, K]    GaussVector.sigma_params
    # sumw_ref:  [R, K*K, S]  layer-2 SumVector.params
    # rootw_ref: [C, 2*S*S]   root SumVector.params, lane-dense (children on lanes)
    # out_ref:   [B, C]
    L, B, D = xs_ref.shape
    K = mean_ref.shape[-1]
    S = NUM_SUMS
    C = out_ref.shape[-1]

    xs = xs_ref[...]                                            # [L, B, D]
    mu = mean_ref[...]                                          # [L, D, K]
    sp = sig_ref[...]                                           # [L, D, K]

    # ---------------- leaf layer: all L GaussVectors at once ------------------
    sigma = GAUSS_MIN_SIGMA + (GAUSS_MAX_SIGMA - GAUSS_MIN_SIGMA) / (1.0 + jnp.exp(-sp))
    nhls = -0.5 * jnp.log(sigma)                                # [L, D, K] (batch-independent)
    its = 0.5 / sigma                                           # [L, D, K]
    leaf = jnp.full((L, B, K), -D * _HALF_LOG_2PI, dtype=jnp.float32)
    for d in range(D):                                          # D == 2, unrolled, stays 3-D
        diff = xs[:, :, d:d + 1] - mu[:, d:d + 1, :]            # [L,B,1]-[L,1,K] -> [L,B,K]
        leaf = leaf + (nhls[:, d:d + 1, :] - diff * diff * its[:, d:d + 1, :])
    lmax = jnp.max(leaf, axis=2, keepdims=True)                 # [L, B, 1]
    lexp = jnp.exp(leaf - lmax)                                 # [L, B, K]

    # -------- layer 1 (ProductVectors) + layer 2 (SumVectors), exp space ------
    w = sumw_ref[...]                                           # [R, K*K, S]
    wmax = jnp.max(w, axis=1, keepdims=True)                    # [R, 1, S]
    wexp = jnp.exp(w - wmax)                                    # hoisted: ONE exp for all partitions
    inv_wsum = 1.0 / jnp.sum(wexp, axis=1, keepdims=True)       # [R, 1, S] softmax denominators

    f_list, off_list = [], []
    for r, (a, b) in enumerate(LAYER1_PARTS):
        # exp(prod_log - (m1 + m2)) as a flat [B, K*K] outer product
        prod = _outer_flat(lexp[a], lexp[b])                    # [B, K*K]
        s_lin = jnp.dot(prod, wexp[r], precision=_PREC,
                        preferred_element_type=jnp.float32) * inv_wsum[r]       # [B, S]
        smax = jnp.maximum(jnp.max(s_lin, axis=1, keepdims=True), _TINY)        # [B, 1]
        f_list.append(s_lin * (1.0 / smax))                     # exp(sums - max(sums))
        off_list.append(lmax[a] + lmax[b] + jnp.log(smax))      # max(sums) per batch row

    # -------- layer 3 (ProductVectors) + root SumVector, exp space ------------
    w_c = rootw_ref[...]                                        # [C, 2*S*S] lane-dense
    cmax = jnp.max(w_c, axis=1, keepdims=True)                  # [C, 1]
    wexp_c = jnp.exp(w_c - cmax)                                # ONE exp over the root weights
    wn_c = wexp_c * (1.0 / jnp.sum(wexp_c, axis=1, keepdims=True))  # normalized softmax rows
    wn = wn_c.T                                                 # [2*S*S, C] for the MXU

    region_off = [off_list[j1] + off_list[j2] for j1, j2 in LAYER3_PARTS]
    m_root = jnp.maximum(region_off[0], region_off[1])          # [B, 1] common max offset

    acc = jnp.zeros((B, C), jnp.float32)
    for rr, (j1, j2) in enumerate(LAYER3_PARTS):
        g = _outer_flat(f_list[j1], f_list[j2])                 # [B, S*S]
        g = g * jnp.exp(region_off[rr] - m_root)                # rescale to the common offset
        acc = acc + jnp.dot(g, wn[rr * S * S:(rr + 1) * S * S],
                            precision=_PREC, preferred_element_type=jnp.float32)
    out_ref[...] = m_root + jnp.log(jnp.maximum(acc, _TINY))


# --------------------------------- wrapper -------------------------------------
def ratspn_forward(x, params):
    B = x.shape[0]
    scopes = jnp.asarray(LEAF_SCOPES, dtype=jnp.int32)
    # Pure layout plumbing (wrapper-side): scatter features into per-leaf scopes
    # and make the root weights lane-dense ([C, 800]) for the in-kernel softmax.
    x_scoped = jnp.transpose(x[:, scopes], (1, 0, 2))             # [L, B, 2]
    root_w_lane_dense = jnp.transpose(params["root_params"], (1, 0))  # [C, 2*S*S]
    vmem = lambda: pl.BlockSpec(memory_space=pltpu.MemorySpace.VMEM)
    # TODO(synk): if batch ever becomes realistic (>128), add a batch grid axis with
    # dimension_semantics=("parallel",) (dual TensorCores on v7x) and size the batch
    # tiles against v7x's 64 MiB VMEM rather than this grid-less whole-array call.
    return pl.pallas_call(
        ratspn_fused_kernel,
        out_shape=jax.ShapeDtypeStruct((B, NUM_CLASSES), jnp.float32),
        in_specs=[vmem() for _ in range(5)],
        out_specs=vmem(),
    )(x_scoped, params["leaf_means"], params["leaf_sigma"],
      params["sum_params"], root_w_lane_dense)


# --------------------------- parameters & reference ----------------------------
def trunc_normal(key, shape, std=0.1, mean=0.0):
    # mirrors truncated_normal_ (normal truncated at +-2 sigma, then scaled)
    return mean + std * jax.random.truncated_normal(key, -2.0, 2.0, shape, jnp.float32)


def init_params(key):
    ks = jax.random.split(key, 4)
    L, D, K = len(LEAF_SCOPES), 2, NUM_GAUSS
    return {
        "leaf_means": trunc_normal(ks[0], (L, D, K)),                       # GaussVector.means
        "leaf_sigma": trunc_normal(ks[1], (L, D, K)),                       # GaussVector.sigma_params
        "sum_params": trunc_normal(ks[2], (len(LAYER1_PARTS), K * K, NUM_SUMS)),
        "root_params": trunc_normal(
            ks[3], (len(LAYER3_PARTS) * NUM_SUMS * NUM_SUMS, NUM_CLASSES)),
    }


def ratspn_reference(x, params):
    # Straightforward pure-JAX re-implementation of the torch forward pass.
    scopes = jnp.asarray(LEAF_SCOPES, dtype=jnp.int32)
    leaf = []
    for l in range(len(LEAF_SCOPES)):
        xl = x[:, scopes[l]]
        mu, sp = params["leaf_means"][l], params["leaf_sigma"][l]
        sigma = GAUSS_MIN_SIGMA + (GAUSS_MAX_SIGMA - GAUSS_MIN_SIGMA) / (1.0 + jnp.exp(-sp))
        lp = (-0.5 * jnp.log(2.0 * jnp.pi) - 0.5 * jnp.log(sigma)
              - (xl[:, :, None] - mu) ** 2 / (2.0 * sigma))
        leaf.append(jnp.sum(lp, axis=1))

    def product(d1, d2):
        return (d1[:, None, :] + d2[:, :, None]).reshape(d1.shape[0], -1)

    def sum_node(prods, w):
        logw = jax.nn.log_softmax(w, axis=0)
        return jax.scipy.special.logsumexp(prods[:, :, None] + logw[None], axis=1)

    p1 = [product(leaf[a], leaf[b]) for a, b in LAYER1_PARTS]
    s1 = [sum_node(p1[i], params["sum_params"][i]) for i in range(len(LAYER1_PARTS))]
    p2 = [product(s1[a], s1[b]) for a, b in LAYER3_PARTS]
    return sum_node(jnp.concatenate(p2, axis=1), params["root_params"])


# TODO(synk): reconstruct()/sample() (numpy/tf sampling paths) and region-graph
# construction are host-side logic, not part of the forward hot path.

if __name__ == "__main__":
    key = jax.random.PRNGKey(0)
    k_x, k_p = jax.random.split(key)
    params = init_params(k_p)
    x = jax.random.normal(k_x, (BATCH, NUM_DIMS), dtype=jnp.float32)

    out = jax.jit(ratspn_forward)(x, params)
    out = jax.block_until_ready(out)

    assert out.shape == (BATCH, NUM_CLASSES)
    assert bool(jnp.all(jnp.isfinite(out)))
    ref = ratspn_reference(x, params)
    # precision=HIGHEST on the MXU contractions restores tight agreement
    assert bool(jnp.allclose(out, ref, atol=2e-3, rtol=2e-4)), (out, ref)
    print("KERNEL_OK")
</pallas_src>

<mosaic_0001>
module attributes {stable_mosaic.version = 11 : i64} {
  func.func @ratspn_fused_kernel(%arg0: memref<8x2x2xf32, #tpu.memory_space<vmem>>, %arg1: memref<8x2x8xf32, #tpu.memory_space<vmem>>, %arg2: memref<8x2x8xf32, #tpu.memory_space<vmem>>, %arg3: memref<4x64x20xf32, #tpu.memory_space<vmem>>, %arg4: memref<4x800xf32, #tpu.memory_space<vmem>>, %arg5: memref<2x4xf32, #tpu.memory_space<vmem>>) attributes {dimension_semantics = [], scalar_prefetch = 0 : i64, scratch_operands = 0 : i64, tpu.core_type = #tpu.core_type<tc>} {
    %c0 = arith.constant 0 : index
    %c0_0 = arith.constant 0 : index
    %c0_1 = arith.constant 0 : index
    %0 = vector.load %arg0[%c0, %c0_0, %c0_1] : memref<8x2x2xf32, #tpu.memory_space<vmem>>, vector<8x2x2xf32>
    %c0_2 = arith.constant 0 : index
    %c0_3 = arith.constant 0 : index
    %c0_4 = arith.constant 0 : index
    %1 = vector.load %arg1[%c0_2, %c0_3, %c0_4] : memref<8x2x8xf32, #tpu.memory_space<vmem>>, vector<8x2x8xf32>
    %c0_5 = arith.constant 0 : index
    %c0_6 = arith.constant 0 : index
    %c0_7 = arith.constant 0 : index
    %2 = vector.load %arg2[%c0_5, %c0_6, %c0_7] : memref<8x2x8xf32, #tpu.memory_space<vmem>>, vector<8x2x8xf32>
    %cst = arith.constant 0.000000e+00 : f32
    %3 = vector.broadcast %cst : f32 to vector<8x2x8xf32>
    %4 = arith.subf %3, %2 : vector<8x2x8xf32>
    %5 = math.exp %4 : vector<8x2x8xf32>
    %cst_8 = arith.constant 1.000000e+00 : f32
    %6 = vector.broadcast %cst_8 : f32 to vector<8x2x8xf32>
    %7 = arith.addf %6, %5 : vector<8x2x8xf32>
    %cst_9 = arith.constant 0.899999976 : f32
    %8 = vector.broadcast %cst_9 : f32 to vector<8x2x8xf32>
    %9 = arith.divf %8, %7 : vector<8x2x8xf32>
    %cst_10 = arith.constant 1.000000e-01 : f32
    %10 = vector.broadcast %cst_10 : f32 to vector<8x2x8xf32>
    %11 = arith.addf %10, %9 : vector<8x2x8xf32>
    %12 = math.log %11 : vector<8x2x8xf32>
    %cst_11 = arith.constant -5.000000e-01 : f32
    %13 = vector.broadcast %cst_11 : f32 to vector<8x2x8xf32>
    %14 = arith.mulf %13, %12 : vector<8x2x8xf32>
    %cst_12 = arith.constant 5.000000e-01 : f32
    %15 = vector.broadcast %cst_12 : f32 to vector<8x2x8xf32>
    %16 = arith.divf %15, %11 : vector<8x2x8xf32>
    %cst_13 = arith.constant -1.83787704 : f32
    %17 = vector.broadcast %cst_13 : f32 to vector<8x2x8xf32>
    %18 = vector.extract_strided_slice %0 {offsets = [0, 0, 0], sizes = [8, 2, 1], strides = [1, 1, 1]} : vector<8x2x2xf32> to vector<8x2x1xf32>
    %19 = vector.extract_strided_slice %1 {offsets = [0, 0, 0], sizes = [8, 1, 8], strides = [1, 1, 1]} : vector<8x2x8xf32> to vector<8x1x8xf32>
    %20 = vector.broadcast %18 : vector<8x2x1xf32> to vector<8x2x8xf32>
    %21 = vector.broadcast %19 : vector<8x1x8xf32> to vector<8x2x8xf32>
    %22 = arith.subf %20, %21 : vector<8x2x8xf32>
    %23 = vector.extract_strided_slice %14 {offsets = [0, 0, 0], sizes = [8, 1, 8], strides = [1, 1, 1]} : vector<8x2x8xf32> to vector<8x1x8xf32>
    %24 = arith.mulf %22, %22 : vector<8x2x8xf32>
    %25 = vector.extract_strided_slice %16 {offsets = [0, 0, 0], sizes = [8, 1, 8], strides = [1, 1, 1]} : vector<8x2x8xf32> to vector<8x1x8xf32>
    %26 = vector.broadcast %25 : vector<8x1x8xf32> to vector<8x2x8xf32>
    %27 = arith.mulf %24, %26 : vector<8x2x8xf32>
    %28 = vector.broadcast %23 : vector<8x1x8xf32> to vector<8x2x8xf32>
    %29 = arith.subf %28, %27 : vector<8x2x8xf32>
    %30 = arith.addf %17, %29 : vector<8x2x8xf32>
    %31 = vector.extract_strided_slice %0 {offsets = [0, 0, 1], sizes = [8, 2, 1], strides = [1, 1, 1]} : vector<8x2x2xf32> to vector<8x2x1xf32>
    %32 = vector.extract_strided_slice %1 {offsets = [0, 1, 0], sizes = [8, 1, 8], strides = [1, 1, 1]} : vector<8x2x8xf32> to vector<8x1x8xf32>
    %33 = vector.broadcast %31 : vector<8x2x1xf32> to vector<8x2x8xf32>
    %34 = vector.broadcast %32 : vector<8x1x8xf32> to vector<8x2x8xf32>
    %35 = arith.subf %33, %34 : vector<8x2x8xf32>
    %36 = vector.extract_strided_slice %14 {offsets = [0, 1, 0], sizes = [8, 1, 8], strides = [1, 1, 1]} : vector<8x2x8xf32> to vector<8x1x8xf32>
    %37 = arith.mulf %35, %35 : vector<8x2x8xf32>
    %38 = vector.extract_strided_slice %16 {offsets = [0, 1, 0], sizes = [8, 1, 8], strides = [1, 1, 1]} : vector<8x2x8xf32> to vector<8x1x8xf32>
    %39 = vector.broadcast %38 : vector<8x1x8xf32> to vector<8x2x8xf32>
    %40 = arith.mulf %37, %39 : vector<8x2x8xf32>
    %41 = vector.broadcast %36 : vector<8x1x8xf32> to vector<8x2x8xf32>
    %42 = arith.subf %41, %40 : vector<8x2x8xf32>
    %43 = arith.addf %30, %42 : vector<8x2x8xf32>
    %cst_14 = arith.constant dense<0xFF800000> : vector<8x2xf32>
    %44 = vector.multi_reduction <maximumf>, %43, %cst_14 [2] : vector<8x2x8xf32> to vector<8x2xf32>
    %45 = vector.shape_cast %44 : vector<8x2xf32> to vector<8x2x1xf32>
    %46 = vector.broadcast %45 : vector<8x2x1xf32> to vector<8x2x8xf32>
    %47 = arith.subf %43, %46 : vector<8x2x8xf32>
    %48 = math.exp %47 : vector<8x2x8xf32>
    %c0_15 = arith.constant 0 : index
    %c0_16 = arith.constant 0 : index
    %c0_17 = arith.constant 0 : index
    %49 = vector.load %arg3[%c0_15, %c0_16, %c0_17] : memref<4x64x20xf32, #tpu.memory_space<vmem>>, vector<4x64x20xf32>
    %cst_18 = arith.constant dense<0xFF800000> : vector<4x20xf32>
    %50 = vector.multi_reduction <maximumf>, %49, %cst_18 [1] : vector<4x64x20xf32> to vector<4x20xf32>
    %51 = vector.shape_cast %50 : vector<4x20xf32> to vector<4x1x20xf32>
    %52 = vector.broadcast %51 : vector<4x1x20xf32> to vector<4x64x20xf32>
    %53 = arith.subf %49, %52 : vector<4x64x20xf32>
    %54 = math.exp %53 : vector<4x64x20xf32>
    %cst_19 = arith.constant dense<0.000000e+00> : vector<4x20xf32>
    %55 = vector.multi_reduction <add>, %54, %cst_19 [1] : vector<4x64x20xf32> to vector<4x20xf32>
    %56 = vector.shape_cast %55 : vector<4x20xf32> to vector<4x1x20xf32>
    %cst_20 = arith.constant 1.000000e+00 : f32
    %57 = vector.broadcast %cst_20 : f32 to vector<4x1x20xf32>
    %58 = arith.divf %57, %56 : vector<4x1x20xf32>
    %59 = vector.extract_strided_slice %48 {offsets = [0, 0, 0], sizes = [1, 2, 8], strides = [1, 1, 1]} : vector<8x2x8xf32> to vector<1x2x8xf32>
    %60 = vector.shape_cast %59 : vector<1x2x8xf32> to vector<2x8xf32>
    %61 = vector.extract_strided_slice %48 {offsets = [1, 0, 0], sizes = [1, 2, 8], strides = [1, 1, 1]} : vector<8x2x8xf32> to vector<1x2x8xf32>
    %62 = vector.shape_cast %61 : vector<1x2x8xf32> to vector<2x8xf32>
    %63 = tpu.concatenate %60, %60, %60, %60, %60, %60, %60, %60 in 1 : vector<2x8xf32>, vector<2x8xf32>, vector<2x8xf32>, vector<2x8xf32>, vector<2x8xf32>, vector<2x8xf32>, vector<2x8xf32>, vector<2x8xf32> -> vector<2x64xf32>
    %64 = vector.extract_strided_slice %62 {offsets = [0, 0], sizes = [2, 1], strides = [1, 1]} : vector<2x8xf32> to vector<2x1xf32>
    %65 = vector.shape_cast %64 : vector<2x1xf32> to vector<2x1xf32>
    %66 = vector.broadcast %65 : vector<2x1xf32> to vector<2x8xf32>
    %67 = vector.extract_strided_slice %62 {offsets = [0, 1], sizes = [2, 1], strides = [1, 1]} : vector<2x8xf32> to vector<2x1xf32>
    %68 = vector.shape_cast %67 : vector<2x1xf32> to vector<2x1xf32>
    %69 = vector.broadcast %68 : vector<2x1xf32> to vector<2x8xf32>
    %70 = vector.extract_strided_slice %62 {offsets = [0, 2], sizes = [2, 1], strides = [1, 1]} : vector<2x8xf32> to vector<2x1xf32>
    %71 = vector.shape_cast %70 : vector<2x1xf32> to vector<2x1xf32>
    %72 = vector.broadcast %71 : vector<2x1xf32> to vector<2x8xf32>
    %73 = vector.extract_strided_slice %62 {offsets = [0, 3], sizes = [2, 1], strides = [1, 1]} : vector<2x8xf32> to vector<2x1xf32>
    %74 = vector.shape_cast %73 : vector<2x1xf32> to vector<2x1xf32>
    %75 = vector.broadcast %74 : vector<2x1xf32> to vector<2x8xf32>
    %76 = vector.extract_strided_slice %62 {offsets = [0, 4], sizes = [2, 1], strides = [1, 1]} : vector<2x8xf32> to vector<2x1xf32>
    %77 = vector.shape_cast %76 : vector<2x1xf32> to vector<2x1xf32>
    %78 = vector.broadcast %77 : vector<2x1xf32> to vector<2x8xf32>
    %79 = vector.extract_strided_slice %62 {offsets = [0, 5], sizes = [2, 1], strides = [1, 1]} : vector<2x8xf32> to vector<2x1xf32>
    %80 = vector.shape_cast %79 : vector<2x1xf32> to vector<2x1xf32>
    %81 = vector.broadcast %80 : vector<2x1xf32> to vector<2x8xf32>
    %82 = vector.extract_strided_slice %62 {offsets = [0, 6], sizes = [2, 1], strides = [1, 1]} : vector<2x8xf32> to vector<2x1xf32>
    %83 = vector.shape_cast %82 : vector<2x1xf32> to vector<2x1xf32>
    %84 = vector.broadcast %83 : vector<2x1xf32> to vector<2x8xf32>
    %85 = vector.extract_strided_slice %62 {offsets = [0, 7], sizes = [2, 1], strides = [1, 1]} : vector<2x8xf32> to vector<2x1xf32>
    %86 = vector.shape_cast %85 : vector<2x1xf32> to vector<2x1xf32>
    %87 = vector.broadcast %86 : vector<2x1xf32> to vector<2x8xf32>
    %88 = tpu.concatenate %66, %69, %72, %75, %78, %81, %84, %87 in 1 : vector<2x8xf32>, vector<2x8xf32>, vector<2x8xf32>, vector<2x8xf32>, vector<2x8xf32>, vector<2x8xf32>, vector<2x8xf32>, vector<2x8xf32> -> vector<2x64xf32>
    %89 = arith.mulf %63, %88 : vector<2x64xf32>
    %90 = vector.extract_strided_slice %54 {offsets = [0, 0, 0], sizes = [1, 64, 20], strides = [1, 1, 1]} : vector<4x64x20xf32> to vector<1x64x20xf32>
    %91 = vector.shape_cast %90 : vector<1x64x20xf32> to vector<64x20xf32>
    %cst_21 = arith.constant dense<0.000000e+00> : vector<2x20xf32>
    %92 = tpu.matmul %89, %91, %cst_21 {dimension_numbers = #tpu.dot_dimension_numbers<[1], [0], [0], [1], [0, 0, 1, 1], [], []>, precision = #tpu.contract_precision<fp32>} : vector<2x64xf32>, vector<64x20xf32>, vector<2x20xf32> -> vector<2x20xf32>
    %93 = vector.extract_strided_slice %58 {offsets = [0, 0, 0], sizes = [1, 1, 20], strides = [1, 1, 1]} : vector<4x1x20xf32> to vector<1x1x20xf32>
    %94 = vector.shape_cast %93 : vector<1x1x20xf32> to vector<1x20xf32>
    %95 = vector.broadcast %94 : vector<1x20xf32> to vector<2x20xf32>
    %96 = arith.mulf %92, %95 : vector<2x20xf32>
    %cst_22 = arith.constant dense<0xFF800000> : vector<2xf32>
    %97 = vector.multi_reduction <maximumf>, %96, %cst_22 [1] : vector<2x20xf32> to vector<2xf32>
    %98 = vector.shape_cast %97 : vector<2xf32> to vector<2x1xf32>
    %cst_23 = arith.constant 1.000000e-30 : f32
    %99 = vector.broadcast %cst_23 : f32 to vector<2x1xf32>
    %100 = arith.maximumf %98, %99 : vector<2x1xf32>
    %cst_24 = arith.constant 1.000000e+00 : f32
    %101 = vector.broadcast %cst_24 : f32 to vector<2x1xf32>
    %102 = arith.divf %101, %100 : vector<2x1xf32>
    %103 = vector.broadcast %102 : vector<2x1xf32> to vector<2x20xf32>
    %104 = arith.mulf %96, %103 : vector<2x20xf32>
    %105 = vector.extract_strided_slice %45 {offsets = [0, 0, 0], sizes = [1, 2, 1], strides = [1, 1, 1]} : vector<8x2x1xf32> to vector<1x2x1xf32>
    %106 = vector.shape_cast %105 : vector<1x2x1xf32> to vector<2x1xf32>
    %107 = vector.extract_strided_slice %45 {offsets = [1, 0, 0], sizes = [1, 2, 1], strides = [1, 1, 1]} : vector<8x2x1xf32> to vector<1x2x1xf32>
    %108 = vector.shape_cast %107 : vector<1x2x1xf32> to vector<2x1xf32>
    %109 = arith.addf %106, %108 : vector<2x1xf32>
    %110 = math.log %100 : vector<2x1xf32>
    %111 = arith.addf %109, %110 : vector<2x1xf32>
    %112 = vector.extract_strided_slice %48 {offsets = [2, 0, 0], sizes = [1, 2, 8], strides = [1, 1, 1]} : vector<8x2x8xf32> to vector<1x2x8xf32>
    %113 = vector.shape_cast %112 : vector<1x2x8xf32> to vector<2x8xf32>
    %114 = vector.extract_strided_slice %48 {offsets = [3, 0, 0], sizes = [1, 2, 8], strides = [1, 1, 1]} : vector<8x2x8xf32> to vector<1x2x8xf32>
    %115 = vector.shape_cast %114 : vector<1x2x8xf32> to vector<2x8xf32>
    %116 = tpu.concatenate %113, %113, %113, %113, %113, %113, %113, %113 in 1 : vector<2x8xf32>, vector<2x8xf32>, vector<2x8xf32>, vector<2x8xf32>, vector<2x8xf32>, vector<2x8xf32>, vector<2x8xf32>, vector<2x8xf32> -> vector<2x64xf32>
    %117 = vector.extract_strided_slice %115 {offsets = [0, 0], sizes = [2, 1], strides = [1, 1]} : vector<2x8xf32> to vector<2x1xf32>
    %118 = vector.shape_cast %117 : vector<2x1xf32> to vector<2x1xf32>
    %119 = vector.broadcast %118 : vector<2x1xf32> to vector<2x8xf32>
    %120 = vector.extract_strided_slice %115 {offsets = [0, 1], sizes = [2, 1], strides = [1, 1]} : vector<2x8xf32> to vector<2x1xf32>
    %121 = vector.shape_cast %120 : vector<2x1xf32> to vector<2x1xf32>
    %122 = vector.broadcast %121 : vector<2x1xf32> to vector<2x8xf32>
    %123 = vector.extract_strided_slice %115 {offsets = [0, 2], sizes = [2, 1], strides = [1, 1]} : vector<2x8xf32> to vector<2x1xf32>
    %124 = vector.shape_cast %123 : vector<2x1xf32> to vector<2x1xf32>
    %125 = vector.broadcast %124 : vector<2x1xf32> to vector<2x8xf32>
    %126 = vector.extract_strided_slice %115 {offsets = [0, 3], sizes = [2, 1], strides = [1, 1]} : vector<2x8xf32> to vector<2x1xf32>
    %127 = vector.shape_cast %126 : vector<2x1xf32> to vector<2x1xf32>
    %128 = vector.broadcast %127 : vector<2x1xf32> to vector<2x8xf32>
    %129 = vector.extract_strided_slice %115 {offsets = [0, 4], sizes = [2, 1], strides = [1, 1]} : vector<2x8xf32> to vector<2x1xf32>
    %130 = vector.shape_cast %129 : vector<2x1xf32> to vector<2x1xf32>
    %131 = vector.broadcast %130 : vector<2x1xf32> to vector<2x8xf32>
    %132 = vector.extract_strided_slice %115 {offsets = [0, 5], sizes = [2, 1], strides = [1, 1]} : vector<2x8xf32> to vector<2x1xf32>
    %133 = vector.shape_cast %132 : vector<2x1xf32> to vector<2x1xf32>
    %134 = vector.broadcast %133 : vector<2x1xf32> to vector<2x8xf32>
    %135 = vector.extract_strided_slice %115 {offsets = [0, 6], sizes = [2, 1], strides = [1, 1]} : vector<2x8xf32> to vector<2x1xf32>
    %136 = vector.shape_cast %135 : vector<2x1xf32> to vector<2x1xf32>
    %137 = vector.broadcast %136 : vector<2x1xf32> to vector<2x8xf32>
    %138 = vector.extract_strided_slice %115 {offsets = [0, 7], sizes = [2, 1], strides = [1, 1]} : vector<2x8xf32> to vector<2x1xf32>
    %139 = vector.shape_cast %138 : vector<2x1xf32> to vector<2x1xf32>
    %140 = vector.broadcast %139 : vector<2x1xf32> to vector<2x8xf32>
    %141 = tpu.concatenate %119, %122, %125, %128, %131, %134, %137, %140 in 1 : vector<2x8xf32>, vector<2x8xf32>, vector<2x8xf32>, vector<2x8xf32>, vector<2x8xf32>, vector<2x8xf32>, vector<2x8xf32>, vector<2x8xf32> -> vector<2x64xf32>
    %142 = arith.mulf %116, %141 : vector<2x64xf32>
    %143 = vector.extract_strided_slice %54 {offsets = [1, 0, 0], sizes = [1, 64, 20], strides = [1, 1, 1]} : vector<4x64x20xf32> to vector<1x64x20xf32>
    %144 = vector.shape_cast %143 : vector<1x64x20xf32> to vector<64x20xf32>
    %cst_25 = arith.constant dense<0.000000e+00> : vector<2x20xf32>
    %145 = tpu.matmul %142, %144, %cst_25 {dimension_numbers = #tpu.dot_dimension_numbers<[1], [0], [0], [1], [0, 0, 1, 1], [], []>, precision = #tpu.contract_precision<fp32>} : vector<2x64xf32>, vector<64x20xf32>, vector<2x20xf32> -> vector<2x20xf32>
    %146 = vector.extract_strided_slice %58 {offsets = [1, 0, 0], sizes = [1, 1, 20], strides = [1, 1, 1]} : vector<4x1x20xf32> to vector<1x1x20xf32>
    %147 = vector.shape_cast %146 : vector<1x1x20xf32> to vector<1x20xf32>
    %148 = vector.broadcast %147 : vector<1x20xf32> to vector<2x20xf32>
    %149 = arith.mulf %145, %148 : vector<2x20xf32>
    %cst_26 = arith.constant dense<0xFF800000> : vector<2xf32>
    %150 = vector.multi_reduction <maximumf>, %149, %cst_26 [1] : vector<2x20xf32> to vector<2xf32>
    %151 = vector.shape_cast %150 : vector<2xf32> to vector<2x1xf32>
    %cst_27 = arith.constant 1.000000e-30 : f32
    %152 = vector.broadcast %cst_27 : f32 to vector<2x1xf32>
    %153 = arith.maximumf %151, %152 : vector<2x1xf32>
    %cst_28 = arith.constant 1.000000e+00 : f32
    %154 = vector.broadcast %cst_28 : f32 to vector<2x1xf32>
    %155 = arith.divf %154, %153 : vector<2x1xf32>
    %156 = vector.broadcast %155 : vector<2x1xf32> to vector<2x20xf32>
    %157 = arith.mulf %149, %156 : vector<2x20xf32>
    %158 = vector.extract_strided_slice %45 {offsets = [2, 0, 0], sizes = [1, 2, 1], strides = [1, 1, 1]} : vector<8x2x1xf32> to vector<1x2x1xf32>
    %159 = vector.shape_cast %158 : vector<1x2x1xf32> to vector<2x1xf32>
    %160 = vector.extract_strided_slice %45 {offsets = [3, 0, 0], sizes = [1, 2, 1], strides = [1, 1, 1]} : vector<8x2x1xf32> to vector<1x2x1xf32>
    %161 = vector.shape_cast %160 : vector<1x2x1xf32> to vector<2x1xf32>
    %162 = arith.addf %159, %161 : vector<2x1xf32>
    %163 = math.log %153 : vector<2x1xf32>
    %164 = arith.addf %162, %163 : vector<2x1xf32>
    %165 = vector.extract_strided_slice %48 {offsets = [4, 0, 0], sizes = [1, 2, 8], strides = [1, 1, 1]} : vector<8x2x8xf32> to vector<1x2x8xf32>
    %166 = vector.shape_cast %165 : vector<1x2x8xf32> to vector<2x8xf32>
    %167 = vector.extract_strided_slice %48 {offsets = [5, 0, 0], sizes = [1, 2, 8], strides = [1, 1, 1]} : vector<8x2x8xf32> to vector<1x2x8xf32>
    %168 = vector.shape_cast %167 : vector<1x2x8xf32> to vector<2x8xf32>
    %169 = tpu.concatenate %166, %166, %166, %166, %166, %166, %166, %166 in 1 : vector<2x8xf32>, vector<2x8xf32>, vector<2x8xf32>, vector<2x8xf32>, vector<2x8xf32>, vector<2x8xf32>, vector<2x8xf32>, vector<2x8xf32> -> vector<2x64xf32>
    %170 = vector.extract_strided_slice %168 {offsets = [0, 0], sizes = [2, 1], strides = [1, 1]} : vector<2x8xf32> to vector<2x1xf32>
    %171 = vector.shape_cast %170 : vector<2x1xf32> to vector<2x1xf32>
    %172 = vector.broadcast %171 : vector<2x1xf32> to vector<2x8xf32>
    %173 = vector.extract_strided_slice %168 {offsets = [0, 1], sizes = [2, 1], strides = [1, 1]} : vector<2x8xf32> to vector<2x1xf32>
    %174 = vector.shape_cast %173 : vector<2x1xf32> to vector<2x1xf32>
    %175 = vector.broadcast %174 : vector<2x1xf32> to vector<2x8xf32>
    %176 = vector.extract_strided_slice %168 {offsets = [0, 2], sizes = [2, 1], strides = [1, 1]} : vector<2x8xf32> to vector<2x1xf32>
    %177 = vector.shape_cast %176 : vector<2x1xf32> to vector<2x1xf32>
    %178 = vector.broadcast %177 : vector<2x1xf32> to vector<2x8xf32>
    %179 = vector.extract_strided_slice %168 {offsets = [0, 3], sizes = [2, 1], strides = [1, 1]} : vector<2x8xf32> to vector<2x1xf32>
    %180 = vector.shape_cast %179 : vector<2x1xf32> to vector<2x1xf32>
    %181 = vector.broadcast %180 : vector<2x1xf32> to vector<2x8xf32>
    %182 = vector.extract_strided_slice %168 {offsets = [0, 4], sizes = [2, 1], strides = [1, 1]} : vector<2x8xf32> to vector<2x1xf32>
    %183 = vector.shape_cast %182 : vector<2x1xf32> to vector<2x1xf32>
    %184 = vector.broadcast %183 : vector<2x1xf32> to vector<2x8xf32>
    %185 = vector.extract_strided_slice %168 {offsets = [0, 5], sizes = [2, 1], strides = [1, 1]} : vector<2x8xf32> to vector<2x1xf32>
    %186 = vector.shape_cast %185 : vector<2x1xf32> to vector<2x1xf32>
    %187 = vector.broadcast %186 : vector<2x1xf32> to vector<2x8xf32>
    %188 = vector.extract_strided_slice %168 {offsets = [0, 6], sizes = [2, 1], strides = [1, 1]} : vector<2x8xf32> to vector<2x1xf32>
    %189 = vector.shape_cast %188 : vector<2x1xf32> to vector<2x1xf32>
    %190 = vector.broadcast %189 : vector<2x1xf32> to vector<2x8xf32>
    %191 = vector.extract_strided_slice %168 {offsets = [0, 7], sizes = [2, 1], strides = [1, 1]} : vector<2x8xf32> to vector<2x1xf32>
    %192 = vector.shape_cast %191 : vector<2x1xf32> to vector<2x1xf32>
    %193 = vector.broadcast %192 : vector<2x1xf32> to vector<2x8xf32>
    %194 = tpu.concatenate %172, %175, %178, %181, %184, %187, %190, %193 in 1 : vector<2x8xf32>, vector<2x8xf32>, vector<2x8xf32>, vector<2x8xf32>, vector<2x8xf32>, vector<2x8xf32>, vector<2x8xf32>, vector<2x8xf32> -> vector<2x64xf32>
    %195 = arith.mulf %169, %194 : vector<2x64xf32>
    %196 = vector.extract_strided_slice %54 {offsets = [2, 0, 0], sizes = [1, 64, 20], strides = [1, 1, 1]} : vector<4x64x20xf32> to vector<1x64x20xf32>
    %197 = vector.shape_cast %196 : vector<1x64x20xf32> to vector<64x20xf32>
    %cst_29 = arith.constant dense<0.000000e+00> : vector<2x20xf32>
    %198 = tpu.matmul %195, %197, %cst_29 {dimension_numbers = #tpu.dot_dimension_numbers<[1], [0], [0], [1], [0, 0, 1, 1], [], []>, precision = #tpu.contract_precision<fp32>} : vector<2x64xf32>, vector<64x20xf32>, vector<2x20xf32> -> vector<2x20xf32>
    %199 = vector.extract_strided_slice %58 {offsets = [2, 0, 0], sizes = [1, 1, 20], strides = [1, 1, 1]} : vector<4x1x20xf32> to vector<1x1x20xf32>
    %200 = vector.shape_cast %199 : vector<1x1x20xf32> to vector<1x20xf32>
    %201 = vector.broadcast %200 : vector<1x20xf32> to vector<2x20xf32>
    %202 = arith.mulf %198, %201 : vector<2x20xf32>
    %cst_30 = arith.constant dense<0xFF800000> : vector<2xf32>
    %203 = vector.multi_reduction <maximumf>, %202, %cst_30 [1] : vector<2x20xf32> to vector<2xf32>
    %204 = vector.shape_cast %203 : vector<2xf32> to vector<2x1xf32>
    %cst_31 = arith.constant 1.000000e-30 : f32
    %205 = vector.broadcast %cst_31 : f32 to vector<2x1xf32>
    %206 = arith.maximumf %204, %205 : vector<2x1xf32>
    %cst_32 = arith.constant 1.000000e+00 : f32
    %207 = vector.broadcast %cst_32 : f32 to vector<2x1xf32>
    %208 = arith.divf %207, %206 : vector<2x1xf32>
    %209 = vector.broadcast %208 : vector<2x1xf32> to vector<2x20xf32>
    %210 = arith.mulf %202, %209 : vector<2x20xf32>
    %211 = vector.extract_strided_slice %45 {offsets = [4, 0, 0], sizes = [1, 2, 1], strides = [1, 1, 1]} : vector<8x2x1xf32> to vector<1x2x1xf32>
    %212 = vector.shape_cast %211 : vector<1x2x1xf32> to vector<2x1xf32>
    %213 = vector.extract_strided_slice %45 {offsets = [5, 0, 0], sizes = [1, 2, 1], strides = [1, 1, 1]} : vector<8x2x1xf32> to vector<1x2x1xf32>
    %214 = vector.shape_cast %213 : vector<1x2x1xf32> to vector<2x1xf32>
    %215 = arith.addf %212, %214 : vector<2x1xf32>
    %216 = math.log %206 : vector<2x1xf32>
    %217 = arith.addf %215, %216 : vector<2x1xf32>
    %218 = vector.extract_strided_slice %48 {offsets = [6, 0, 0], sizes = [1, 2, 8], strides = [1, 1, 1]} : vector<8x2x8xf32> to vector<1x2x8xf32>
    %219 = vector.shape_cast %218 : vector<1x2x8xf32> to vector<2x8xf32>
    %220 = vector.extract_strided_slice %48 {offsets = [7, 0, 0], sizes = [1, 2, 8], strides = [1, 1, 1]} : vector<8x2x8xf32> to vector<1x2x8xf32>
    %221 = vector.shape_cast %220 : vector<1x2x8xf32> to vector<2x8xf32>
    %222 = tpu.concatenate %219, %219, %219, %219, %219, %219, %219, %219 in 1 : vector<2x8xf32>, vector<2x8xf32>, vector<2x8xf32>, vector<2x8xf32>, vector<2x8xf32>, vector<2x8xf32>, vector<2x8xf32>, vector<2x8xf32> -> vector<2x64xf32>
    %223 = vector.extract_strided_slice %221 {offsets = [0, 0], sizes = [2, 1], strides = [1, 1]} : vector<2x8xf32> to vector<2x1xf32>
    %224 = vector.shape_cast %223 : vector<2x1xf32> to vector<2x1xf32>
    %225 = vector.broadcast %224 : vector<2x1xf32> to vector<2x8xf32>
    %226 = vector.extract_strided_slice %221 {offsets = [0, 1], sizes = [2, 1], strides = [1, 1]} : vector<2x8xf32> to vector<2x1xf32>
    %227 = vector.shape_cast %226 : vector<2x1xf32> to vector<2x1xf32>
    %228 = vector.broadcast %227 : vector<2x1xf32> to vector<2x8xf32>
    %229 = vector.extract_strided_slice %221 {offsets = [0, 2], sizes = [2, 1], strides = [1, 1]} : vector<2x8xf32> to vector<2x1xf32>
    %230 = vector.shape_cast %229 : vector<2x1xf32> to vector<2x1xf32>
    %231 = vector.broadcast %230 : vector<2x1xf32> to vector<2x8xf32>
    %232 = vector.extract_strided_slice %221 {offsets = [0, 3], sizes = [2, 1], strides = [1, 1]} : vector<2x8xf32> to vector<2x1xf32>
    %233 = vector.shape_cast %232 : vector<2x1xf32> to vector<2x1xf32>
    %234 = vector.broadcast %233 : vector<2x1xf32> to vector<2x8xf32>
    %235 = vector.extract_strided_slice %221 {offsets = [0, 4], sizes = [2, 1], strides = [1, 1]} : vector<2x8xf32> to vector<2x1xf32>
    %236 = vector.shape_cast %235 : vector<2x1xf32> to vector<2x1xf32>
    %237 = vector.broadcast %236 : vector<2x1xf32> to vector<2x8xf32>
    %238 = vector.extract_strided_slice %221 {offsets = [0, 5], sizes = [2, 1], strides = [1, 1]} : vector<2x8xf32> to vector<2x1xf32>
    %239 = vector.shape_cast %238 : vector<2x1xf32> to vector<2x1xf32>
    %240 = vector.broadcast %239 : vector<2x1xf32> to vector<2x8xf32>
    %241 = vector.extract_strided_slice %221 {offsets = [0, 6], sizes = [2, 1], strides = [1, 1]} : vector<2x8xf32> to vector<2x1xf32>
    %242 = vector.shape_cast %241 : vector<2x1xf32> to vector<2x1xf32>
    %243 = vector.broadcast %242 : vector<2x1xf32> to vector<2x8xf32>
    %244 = vector.extract_strided_slice %221 {offsets = [0, 7], sizes = [2, 1], strides = [1, 1]} : vector<2x8xf32> to vector<2x1xf32>
    %245 = vector.shape_cast %244 : vector<2x1xf32> to vector<2x1xf32>
    %246 = vector.broadcast %245 : vector<2x1xf32> to vector<2x8xf32>
    %247 = tpu.concatenate %225, %228, %231, %234, %237, %240, %243, %246 in 1 : vector<2x8xf32>, vector<2x8xf32>, vector<2x8xf32>, vector<2x8xf32>, vector<2x8xf32>, vector<2x8xf32>, vector<2x8xf32>, vector<2x8xf32> -> vector<2x64xf32>
    %248 = arith.mulf %222, %247 : vector<2x64xf32>
    %249 = vector.extract_strided_slice %54 {offsets = [3, 0, 0], sizes = [1, 64, 20], strides = [1, 1, 1]} : vector<4x64x20xf32> to vector<1x64x20xf32>
    %250 = vector.shape_cast %249 : vector<1x64x20xf32> to vector<64x20xf32>
    %cst_33 = arith.constant dense<0.000000e+00> : vector<2x20xf32>
    %251 = tpu.matmul %248, %250, %cst_33 {dimension_numbers = #tpu.dot_dimension_numbers<[1], [0], [0], [1], [0, 0, 1, 1], [], []>, precision = #tpu.contract_precision<fp32>} : vector<2x64xf32>, vector<64x20xf32>, vector<2x20xf32> -> vector<2x20xf32>
    %252 = vector.extract_strided_slice %58 {offsets = [3, 0, 0], sizes = [1, 1, 20], strides = [1, 1, 1]} : vector<4x1x20xf32> to vector<1x1x20xf32>
    %253 = vector.shape_cast %252 : vector<1x1x20xf32> to vector<1x20xf32>
    %254 = vector.broadcast %253 : vector<1x20xf32> to vector<2x20xf32>
    %255 = arith.mulf %251, %254 : vector<2x20xf32>
    %cst_34 = arith.constant dense<0xFF800000> : vector<2xf32>
    %256 = vector.multi_reduction <maximumf>, %255, %cst_34 [1] : vector<2x20xf32> to vector<2xf32>
    %257 = vector.shape_cast %256 : vector<2xf32> to vector<2x1xf32>
    %cst_35 = arith.constant 1.000000e-30 : f32
    %258 = vector.broadcast %cst_35 : f32 to vector<2x1xf32>
    %259 = arith.maximumf %257, %258 : vector<2x1xf32>
    %cst_36 = arith.constant 1.000000e+00 : f32
    %260 = vector.broadcast %cst_36 : f32 to vector<2x1xf32>
    %261 = arith.divf %260, %259 : vector<2x1xf32>
    %262 = vector.broadcast %261 : vector<2x1xf32> to vector<2x20xf32>
    %263 = arith.mulf %255, %262 : vector<2x20xf32>
    %264 = vector.extract_strided_slice %45 {offsets = [6, 0, 0], sizes = [1, 2, 1], strides = [1, 1, 1]} : vector<8x2x1xf32> to vector<1x2x1xf32>
    %265 = vector.shape_cast %264 : vector<1x2x1xf32> to vector<2x1xf32>
    %266 = vector.extract_strided_slice %45 {offsets = [7, 0, 0], sizes = [1, 2, 1], strides = [1, 1, 1]} : vector<8x2x1xf32> to vector<1x2x1xf32>
    %267 = vector.shape_cast %266 : vector<1x2x1xf32> to vector<2x1xf32>
    %268 = arith.addf %265, %267 : vector<2x1xf32>
    %269 = math.log %259 : vector<2x1xf32>
    %270 = arith.addf %268, %269 : vector<2x1xf32>
    %c0_37 = arith.constant 0 : index
    %c0_38 = arith.constant 0 : index
    %271 = vector.load %arg4[%c0_37, %c0_38] : memref<4x800xf32, #tpu.memory_space<vmem>>, vector<4x800xf32>
    %cst_39 = arith.constant dense<0xFF800000> : vector<4xf32>
    %272 = vector.multi_reduction <maximumf>, %271, %cst_39 [1] : vector<4x800xf32> to vector<4xf32>
    %273 = vector.shape_cast %272 : vector<4xf32> to vector<4x1xf32>
    %274 = vector.broadcast %273 : vector<4x1xf32> to vector<4x800xf32>
    %275 = arith.subf %271, %274 : vector<4x800xf32>
    %276 = math.exp %275 : vector<4x800xf32>
    %cst_40 = arith.constant dense<0.000000e+00> : vector<4xf32>
    %277 = vector.multi_reduction <add>, %276, %cst_40 [1] : vector<4x800xf32> to vector<4xf32>
    %278 = vector.shape_cast %277 : vector<4xf32> to vector<4x1xf32>
    %cst_41 = arith.constant 1.000000e+00 : f32
    %279 = vector.broadcast %cst_41 : f32 to vector<4x1xf32>
    %280 = arith.divf %279, %278 : vector<4x1xf32>
    %281 = vector.broadcast %280 : vector<4x1xf32> to vector<4x800xf32>
    %282 = arith.mulf %276, %281 : vector<4x800xf32>
    %283 = tpu.transpose %282, [1, 0] : vector<4x800xf32> -> vector<800x4xf32>
    %284 = arith.addf %111, %164 : vector<2x1xf32>
    %285 = arith.addf %217, %270 : vector<2x1xf32>
    %286 = arith.maximumf %284, %285 : vector<2x1xf32>
    %cst_42 = arith.constant 0.000000e+00 : f32
    %287 = vector.broadcast %cst_42 : f32 to vector<2x4xf32>
    %288 = tpu.concatenate %104, %104, %104, %104, %104, %104, %104, %104, %104, %104, %104, %104, %104, %104, %104, %104 in 1 : vector<2x20xf32>, vector<2x20xf32>, vector<2x20xf32>, vector<2x20xf32>, vector<2x20xf32>, vector<2x20xf32>, vector<2x20xf32>, vector<2x20xf32>, vector<2x20xf32>, vector<2x20xf32>, vector<2x20xf32>, vector<2x20xf32>, vector<2x20xf32>, vector<2x20xf32>, vector<2x20xf32>, vector<2x20xf32> -> vector<2x320xf32>
    %289 = tpu.concatenate %104, %104, %104, %104 in 1 : vector<2x20xf32>, vector<2x20xf32>, vector<2x20xf32>, vector<2x20xf32> -> vector<2x80xf32>
    %290 = tpu.concatenate %288, %289 in 1 : vector<2x320xf32>, vector<2x80xf32> -> vector<2x400xf32>
    %291 = vector.extract_strided_slice %157 {offsets = [0, 0], sizes = [2, 1], strides = [1, 1]} : vector<2x20xf32> to vector<2x1xf32>
    %292 = vector.shape_cast %291 : vector<2x1xf32> to vector<2x1xf32>
    %293 = vector.broadcast %292 : vector<2x1xf32> to vector<2x20xf32>
    %294 = vector.extract_strided_slice %157 {offsets = [0, 1], sizes = [2, 1], strides = [1, 1]} : vector<2x20xf32> to vector<2x1xf32>
    %295 = vector.shape_cast %294 : vector<2x1xf32> to vector<2x1xf32>
    %296 = vector.broadcast %295 : vector<2x1xf32> to vector<2x20xf32>
    %297 = vector.extract_strided_slice %157 {offsets = [0, 2], sizes = [2, 1], strides = [1, 1]} : vector<2x20xf32> to vector<2x1xf32>
    %298 = vector.shape_cast %297 : vector<2x1xf32> to vector<2x1xf32>
    %299 = vector.broadcast %298 : vector<2x1xf32> to vector<2x20xf32>
    %300 = vector.extract_strided_slice %157 {offsets = [0, 3], sizes = [2, 1], strides = [1, 1]} : vector<2x20xf32> to vector<2x1xf32>
    %301 = vector.shape_cast %300 : vector<2x1xf32> to vector<2x1xf32>
    %302 = vector.broadcast %301 : vector<2x1xf32> to vector<2x20xf32>
    %303 = vector.extract_strided_slice %157 {offsets = [0, 4], sizes = [2, 1], strides = [1, 1]} : vector<2x20xf32> to vector<2x1xf32>
    %304 = vector.shape_cast %303 : vector<2x1xf32> to vector<2x1xf32>
    %305 = vector.broadcast %304 : vector<2x1xf32> to vector<2x20xf32>
    %306 = vector.extract_strided_slice %157 {offsets = [0, 5], sizes = [2, 1], strides = [1, 1]} : vector<2x20xf32> to vector<2x1xf32>
    %307 = vector.shape_cast %306 : vector<2x1xf32> to vector<2x1xf32>
    %308 = vector.broadcast %307 : vector<2x1xf32> to vector<2x20xf32>
    %309 = vector.extract_strided_slice %157 {offsets = [0, 6], sizes = [2, 1], strides = [1, 1]} : vector<2x20xf32> to vector<2x1xf32>
    %310 = vector.shape_cast %309 : vector<2x1xf32> to vector<2x1xf32>
    %311 = vector.broadcast %310 : vector<2x1xf32> to vector<2x20xf32>
    %312 = vector.extract_strided_slice %157 {offsets = [0, 7], sizes = [2, 1], strides = [1, 1]} : vector<2x20xf32> to vector<2x1xf32>
    %313 = vector.shape_cast %312 : vector<2x1xf32> to vector<2x1xf32>
    %314 = vector.broadcast %313 : vector<2x1xf32> to vector<2x20xf32>
    %315 = vector.extract_strided_slice %157 {offsets = [0, 8], sizes = [2, 1], strides = [1, 1]} : vector<2x20xf32> to vector<2x1xf32>
    %316 = vector.shape_cast %315 : vector<2x1xf32> to vector<2x1xf32>
    %317 = vector.broadcast %316 : vector<2x1xf32> to vector<2x20xf32>
    %318 = vector.extract_strided_slice %157 {offsets = [0, 9], sizes = [2, 1], strides = [1, 1]} : vector<2x20xf32> to vector<2x1xf32>
    %319 = vector.shape_cast %318 : vector<2x1xf32> to vector<2x1xf32>
    %320 = vector.broadcast %319 : vector<2x1xf32> to vector<2x20xf32>
    %321 = vector.extract_strided_slice %157 {offsets = [0, 10], sizes = [2, 1], strides = [1, 1]} : vector<2x20xf32> to vector<2x1xf32>
    %322 = vector.shape_cast %321 : vector<2x1xf32> to vector<2x1xf32>
    %323 = vector.broadcast %322 : vector<2x1xf32> to vector<2x20xf32>
    %324 = vector.extract_strided_slice %157 {offsets = [0, 11], sizes = [2, 1], strides = [1, 1]} : vector<2x20xf32> to vector<2x1xf32>
    %325 = vector.shape_cast %324 : vector<2x1xf32> to vector<2x1xf32>
    %326 = vector.broadcast %325 : vector<2x1xf32> to vector<2x20xf32>
    %327 = vector.extract_strided_slice %157 {offsets = [0, 12], sizes = [2, 1], strides = [1, 1]} : vector<2x20xf32> to vector<2x1xf32>
    %328 = vector.shape_cast %327 : vector<2x1xf32> to vector<2x1xf32>
    %329 = vector.broadcast %328 : vector<2x1xf32> to vector<2x20xf32>
    %330 = vector.extract_strided_slice %157 {offsets = [0, 13], sizes = [2, 1], strides = [1, 1]} : vector<2x20xf32> to vector<2x1xf32>
    %331 = vector.shape_cast %330 : vector<2x1xf32> to vector<2x1xf32>
    %332 = vector.broadcast %331 : vector<2x1xf32> to vector<2x20xf32>
    %333 = vector.extract_strided_slice %157 {offsets = [0, 14], sizes = [2, 1], strides = [1, 1]} : vector<2x20xf32> to vector<2x1xf32>
    %334 = vector.shape_cast %333 : vector<2x1xf32> to vector<2x1xf32>
    %335 = vector.broadcast %334 : vector<2x1xf32> to vector<2x20xf32>
    %336 = vector.extract_strided_slice %157 {offsets = [0, 15], sizes = [2, 1], strides = [1, 1]} : vector<2x20xf32> to vector<2x1xf32>
    %337 = vector.shape_cast %336 : vector<2x1xf32> to vector<2x1xf32>
    %338 = vector.broadcast %337 : vector<2x1xf32> to vector<2x20xf32>
    %339 = vector.extract_strided_slice %157 {offsets = [0, 16], sizes = [2, 1], strides = [1, 1]} : vector<2x20xf32> to vector<2x1xf32>
    %340 = vector.shape_cast %339 : vector<2x1xf32> to vector<2x1xf32>
    %341 = vector.broadcast %340 : vector<2x1xf32> to vector<2x20xf32>
    %342 = vector.extract_strided_slice %157 {offsets = [0, 17], sizes = [2, 1], strides = [1, 1]} : vector<2x20xf32> to vector<2x1xf32>
    %343 = vector.shape_cast %342 : vector<2x1xf32> to vector<2x1xf32>
    %344 = vector.broadcast %343 : vector<2x1xf32> to vector<2x20xf32>
    %345 = vector.extract_strided_slice %157 {offsets = [0, 18], sizes = [2, 1], strides = [1, 1]} : vector<2x20xf32> to vector<2x1xf32>
    %346 = vector.shape_cast %345 : vector<2x1xf32> to vector<2x1xf32>
    %347 = vector.broadcast %346 : vector<2x1xf32> to vector<2x20xf32>
    %348 = vector.extract_strided_slice %157 {offsets = [0, 19], sizes = [2, 1], strides = [1, 1]} : vector<2x20xf32> to vector<2x1xf32>
    %349 = vector.shape_cast %348 : vector<2x1xf32> to vector<2x1xf32>
    %350 = vector.broadcast %349 : vector<2x1xf32> to vector<2x20xf32>
    %351 = tpu.concatenate %293, %296, %299, %302, %305, %308, %311, %314, %317, %320, %323, %326, %329, %332, %335, %338 in 1 : vector<2x20xf32>, vector<2x20xf32>, vector<2x20xf32>, vector<2x20xf32>, vector<2x20xf32>, vector<2x20xf32>, vector<2x20xf32>, vector<2x20xf32>, vector<2x20xf32>, vector<2x20xf32>, vector<2x20xf32>, vector<2x20xf32>, vector<2x20xf32>, vector<2x20xf32>, vector<2x20xf32>, vector<2x20xf32> -> vector<2x320xf32>
    %352 = tpu.concatenate %341, %344, %347, %350 in 1 : vector<2x20xf32>, vector<2x20xf32>, vector<2x20xf32>, vector<2x20xf32> -> vector<2x80xf32>
    %353 = tpu.concatenate %351, %352 in 1 : vector<2x320xf32>, vector<2x80xf32> -> vector<2x400xf32>
    %354 = arith.mulf %290, %353 : vector<2x400xf32>
    %355 = arith.subf %284, %286 : vector<2x1xf32>
    %356 = math.exp %355 : vector<2x1xf32>
    %357 = vector.broadcast %356 : vector<2x1xf32> to vector<2x400xf32>
    %358 = arith.mulf %354, %357 : vector<2x400xf32>
    %359 = vector.extract_strided_slice %283 {offsets = [0, 0], sizes = [400, 4], strides = [1, 1]} : vector<800x4xf32> to vector<400x4xf32>
    %cst_43 = arith.constant dense<0.000000e+00> : vector<2x4xf32>
    %360 = tpu.matmul %358, %359, %cst_43 {dimension_numbers = #tpu.dot_dimension_numbers<[1], [0], [0], [1], [0, 0, 1, 1], [], []>, precision = #tpu.contract_precision<fp32>} : vector<2x400xf32>, vector<400x4xf32>, vector<2x4xf32> -> vector<2x4xf32>
    %361 = arith.addf %287, %360 : vector<2x4xf32>
    %362 = tpu.concatenate %210, %210, %210, %210, %210, %210, %210, %210, %210, %210, %210, %210, %210, %210, %210, %210 in 1 : vector<2x20xf32>, vector<2x20xf32>, vector<2x20xf32>, vector<2x20xf32>, vector<2x20xf32>, vector<2x20xf32>, vector<2x20xf32>, vector<2x20xf32>, vector<2x20xf32>, vector<2x20xf32>, vector<2x20xf32>, vector<2x20xf32>, vector<2x20xf32>, vector<2x20xf32>, vector<2x20xf32>, vector<2x20xf32> -> vector<2x320xf32>
    %363 = tpu.concatenate %210, %210, %210, %210 in 1 : vector<2x20xf32>, vector<2x20xf32>, vector<2x20xf32>, vector<2x20xf32> -> vector<2x80xf32>
    %364 = tpu.concatenate %362, %363 in 1 : vector<2x320xf32>, vector<2x80xf32> -> vector<2x400xf32>
    %365 = vector.extract_strided_slice %263 {offsets = [0, 0], sizes = [2, 1], strides = [1, 1]} : vector<2x20xf32> to vector<2x1xf32>
    %366 = vector.shape_cast %365 : vector<2x1xf32> to vector<2x1xf32>
    %367 = vector.broadcast %366 : vector<2x1xf32> to vector<2x20xf32>
    %368 = vector.extract_strided_slice %263 {offsets = [0, 1], sizes = [2, 1], strides = [1, 1]} : vector<2x20xf32> to vector<2x1xf32>
    %369 = vector.shape_cast %368 : vector<2x1xf32> to vector<2x1xf32>
    %370 = vector.broadcast %369 : vector<2x1xf32> to vector<2x20xf32>
    %371 = vector.extract_strided_slice %263 {offsets = [0, 2], sizes = [2, 1], strides = [1, 1]} : vector<2x20xf32> to vector<2x1xf32>
    %372 = vector.shape_cast %371 : vector<2x1xf32> to vector<2x1xf32>
    %373 = vector.broadcast %372 : vector<2x1xf32> to vector<2x20xf32>
    %374 = vector.extract_strided_slice %263 {offsets = [0, 3], sizes = [2, 1], strides = [1, 1]} : vector<2x20xf32> to vector<2x1xf32>
    %375 = vector.shape_cast %374 : vector<2x1xf32> to vector<2x1xf32>
    %376 = vector.broadcast %375 : vector<2x1xf32> to vector<2x20xf32>
    %377 = vector.extract_strided_slice %263 {offsets = [0, 4], sizes = [2, 1], strides = [1, 1]} : vector<2x20xf32> to vector<2x1xf32>
    %378 = vector.shape_cast %377 : vector<2x1xf32> to vector<2x1xf32>
    %379 = vector.broadcast %378 : vector<2x1xf32> to vector<2x20xf32>
    %380 = vector.extract_strided_slice %263 {offsets = [0, 5], sizes = [2, 1], strides = [1, 1]} : vector<2x20xf32> to vector<2x1xf32>
    %381 = vector.shape_cast %380 : vector<2x1xf32> to vector<2x1xf32>
    %382 = vector.broadcast %381 : vector<2x1xf32> to vector<2x20xf32>
    %383 = vector.extract_strided_slice %263 {offsets = [0, 6], sizes = [2, 1], strides = [1, 1]} : vector<2x20xf32> to vector<2x1xf32>
    %384 = vector.shape_cast %383 : vector<2x1xf32> to vector<2x1xf32>
    %385 = vector.broadcast %384 : vector<2x1xf32> to vector<2x20xf32>
    %386 = vector.extract_strided_slice %263 {offsets = [0, 7], sizes = [2, 1], strides = [1, 1]} : vector<2x20xf32> to vector<2x1xf32>
    %387 = vector.shape_cast %386 : vector<2x1xf32> to vector<2x1xf32>
    %388 = vector.broadcast %387 : vector<2x1xf32> to vector<2x20xf32>
    %389 = vector.extract_strided_slice %263 {offsets = [0, 8], sizes = [2, 1], strides = [1, 1]} : vector<2x20xf32> to vector<2x1xf32>
    %390 = vector.shape_cast %389 : vector<2x1xf32> to vector<2x1xf32>
    %391 = vector.broadcast %390 : vector<2x1xf32> to vector<2x20xf32>
    %392 = vector.extract_strided_slice %263 {offsets = [0, 9], sizes = [2, 1], strides = [1, 1]} : vector<2x20xf32> to vector<2x1xf32>
    %393 = vector.shape_cast %392 : vector<2x1xf32> to vector<2x1xf32>
    %394 = vector.broadcast %393 : vector<2x1xf32> to vector<2x20xf32>
    %395 = vector.extract_strided_slice %263 {offsets = [0, 10], sizes = [2, 1], strides = [1, 1]} : vector<2x20xf32> to vector<2x1xf32>
    %396 = vector.shape_cast %395 : vector<2x1xf32> to vector<2x1xf32>
    %397 = vector.broadcast %396 : vector<2x1xf32> to vector<2x20xf32>
    %398 = vector.extract_strided_slice %263 {offsets = [0, 11], sizes = [2, 1], strides = [1, 1]} : vector<2x20xf32> to vector<2x1xf32>
    %399 = vector.shape_cast %398 : vector<2x1xf32> to vector<2x1xf32>
    %400 = vector.broadcast %399 : vector<2x1xf32> to vector<2x20xf32>
    %401 = vector.extract_strided_slice %263 {offsets = [0, 12], sizes = [2, 1], strides = [1, 1]} : vector<2x20xf32> to vector<2x1xf32>
    %402 = vector.shape_cast %401 : vector<2x1xf32> to vector<2x1xf32>
    %403 = vector.broadcast %402 : vector<2x1xf32> to vector<2x20xf32>
    %404 = vector.extract_strided_slice %263 {offsets = [0, 13], sizes = [2, 1], strides = [1, 1]} : vector<2x20xf32> to vector<2x1xf32>
    %405 = vector.shape_cast %404 : vector<2x1xf32> to vector<2x1xf32>
    %406 = vector.broadcast %405 : vector<2x1xf32> to vector<2x20xf32>
    %407 = vector.extract_strided_slice %263 {offsets = [0, 14], sizes = [2, 1], strides = [1, 1]} : vector<2x20xf32> to vector<2x1xf32>
    %408 = vector.shape_cast %407 : vector<2x1xf32> to vector<2x1xf32>
    %409 = vector.broadcast %408 : vector<2x1xf32> to vector<2x20xf32>
    %410 = vector.extract_strided_slice %263 {offsets = [0, 15], sizes = [2, 1], strides = [1, 1]} : vector<2x20xf32> to vector<2x1xf32>
    %411 = vector.shape_cast %410 : vector<2x1xf32> to vector<2x1xf32>
    %412 = vector.broadcast %411 : vector<2x1xf32> to vector<2x20xf32>
    %413 = vector.extract_strided_slice %263 {offsets = [0, 16], sizes = [2, 1], strides = [1, 1]} : vector<2x20xf32> to vector<2x1xf32>
    %414 = vector.shape_cast %413 : vector<2x1xf32> to vector<2x1xf32>
    %415 = vector.broadcast %414 : vector<2x1xf32> to vector<2x20xf32>
    %416 = vector.extract_strided_slice %263 {offsets = [0, 17], sizes = [2, 1], strides = [1, 1]} : vector<2x20xf32> to vector<2x1xf32>
    %417 = vector.shape_cast %416 : vector<2x1xf32> to vector<2x1xf32>
    %418 = vector.broadcast %417 : vector<2x1xf32> to vector<2x20xf32>
    %419 = vector.extract_strided_slice %263 {offsets = [0, 18], sizes = [2, 1], strides = [1, 1]} : vector<2x20xf32> to vector<2x1xf32>
    %420 = vector.shape_cast %419 : vector<2x1xf32> to vector<2x1xf32>
    %421 = vector.broadcast %420 : vector<2x1xf32> to vector<2x20xf32>
    %422 = vector.extract_strided_slice %263 {offsets = [0, 19], sizes = [2, 1], strides = [1, 1]} : vector<2x20xf32> to vector<2x1xf32>
    %423 = vector.shape_cast %422 : vector<2x1xf32> to vector<2x1xf32>
    %424 = vector.broadcast %423 : vector<2x1xf32> to vector<2x20xf32>
    %425 = tpu.concatenate %367, %370, %373, %376, %379, %382, %385, %388, %391, %394, %397, %400, %403, %406, %409, %412 in 1 : vector<2x20xf32>, vector<2x20xf32>, vector<2x20xf32>, vector<2x20xf32>, vector<2x20xf32>, vector<2x20xf32>, vector<2x20xf32>, vector<2x20xf32>, vector<2x20xf32>, vector<2x20xf32>, vector<2x20xf32>, vector<2x20xf32>, vector<2x20xf32>, vector<2x20xf32>, vector<2x20xf32>, vector<2x20xf32> -> vector<2x320xf32>
    %426 = tpu.concatenate %415, %418, %421, %424 in 1 : vector<2x20xf32>, vector<2x20xf32>, vector<2x20xf32>, vector<2x20xf32> -> vector<2x80xf32>
    %427 = tpu.concatenate %425, %426 in 1 : vector<2x320xf32>, vector<2x80xf32> -> vector<2x400xf32>
    %428 = arith.mulf %364, %427 : vector<2x400xf32>
    %429 = arith.subf %285, %286 : vector<2x1xf32>
    %430 = math.exp %429 : vector<2x1xf32>
    %431 = vector.broadcast %430 : vector<2x1xf32> to vector<2x400xf32>
    %432 = arith.mulf %428, %431 : vector<2x400xf32>
    %433 = vector.extract_strided_slice %283 {offsets = [400, 0], sizes = [400, 4], strides = [1, 1]} : vector<800x4xf32> to vector<400x4xf32>
    %cst_44 = arith.constant dense<0.000000e+00> : vector<2x4xf32>
    %434 = tpu.matmul %432, %433, %cst_44 {dimension_numbers = #tpu.dot_dimension_numbers<[1], [0], [0], [1], [0, 0, 1, 1], [], []>, precision = #tpu.contract_precision<fp32>} : vector<2x400xf32>, vector<400x4xf32>, vector<2x4xf32> -> vector<2x4xf32>
    %435 = arith.addf %361, %434 : vector<2x4xf32>
    %cst_45 = arith.constant 1.000000e-30 : f32
    %436 = vector.broadcast %cst_45 : f32 to vector<2x4xf32>
    %437 = arith.maximumf %435, %436 : vector<2x4xf32>
    %438 = math.log %437 : vector<2x4xf32>
    %439 = vector.broadcast %286 : vector<2x1xf32> to vector<2x4xf32>
    %440 = arith.addf %439, %438 : vector<2x4xf32>
    %c0_46 = arith.constant 0 : index
    %c0_47 = arith.constant 0 : index
    %441 = vector.load %arg5[%c0_46, %c0_47] : memref<2x4xf32, #tpu.memory_space<vmem>>, vector<2x4xf32>
    tpu.vector_store %arg5[%c0_46, %c0_47], %440 {strides = array<i32>} : memref<2x4xf32, #tpu.memory_space<vmem>>, vector<2x4xf32>,
    return
  }
}

</mosaic_0001>

<llo_original>
// kernel: ratspn_forward.1
$region0: #{ratspn_forward.1}
  #allocation0 [shape = 'u32[]', space=smem, size = 0x4, offset = 0x4, fixed_abs, tag = 'smem constant byte address 0x4 - core index']
  #allocation1 [shape = 'u32[144,128]{1,0:T(1,128)}', space=vmem, size = 0x12000, scoped, tag = 'internal scratch']
  %s0 = inlined_call_operand.vmem [shape: f32[8,2,2], index: 0, kind: input, shape index: {}]
  %s1 = inlined_call_operand.vmem [shape: f32[8,2,8], index: 1, kind: input, shape index: {}]
  %s2 = inlined_call_operand.vmem [shape: f32[8,2,8], index: 2, kind: input, shape index: {}]
  %s3 = inlined_call_operand.vmem [shape: f32[4,64,20], index: 3, kind: input, shape index: {}]
  %s4 = inlined_call_operand.vmem [shape: f32[4,800], index: 4, kind: input, shape index: {}]
  %s5 = inlined_call_operand.hbm [shape: f32[2,4], index: 5, kind: output, shape index: {}]
  %s6 = sld [smem:[#allocation0]]
  $region30: #{ratspn_forward.1} parent=0
    _
  %s8 = ssub.s32 1, %s6
  %s9 = scalar_select 0, %s8, %s6
  $region1: #{ratspn_forward.1} parent=0
    #allocation2 [shape = 'u8[1024]{0}', space=vmem, size = 0x400, scoped, tag = 'output window, operand 0, single buffered']
    #allocation3 [shape = 's32[1]{0}', space=sflag, size = 0x4, scoped, tag = 'scoped memory for ratspn_forward.1']
    %10 = vsyncpa [#allocation3], 0
    // Predicated region
    $region2: #{ratspn_forward.1} parent=1 // pred_check
      _
    $region3: #{ratspn_forward.1} parent=1 // pred_check_branch
      %12 = sbr.rel (0) target = $region5
    $region4: #{ratspn_forward.1} parent=1 // pred_region
      _
    $region5: #{ratspn_forward.1} parent=1 // pred_fallthru
      _
    // Predicated region
    $region6: #{ratspn_forward.1} parent=1 // pred_check
      _
    $region7: #{ratspn_forward.1} parent=1 // pred_check_branch
      %14 = sbr.rel (0) target = $region9
    $region8: #{ratspn_forward.1} parent=1 // pred_region
      _
    $region9: #{ratspn_forward.1} parent=1 // pred_fallthru
      _
    // Predicated region
    $region10: #{ratspn_forward.1} parent=1 // pred_check
      _
    $region11: #{ratspn_forward.1} parent=1 // pred_check_branch
      %16 = sbr.rel (0) target = $region13
    $region12: #{ratspn_forward.1} parent=1 // pred_region
      _
    $region13: #{ratspn_forward.1} parent=1 // pred_fallthru
      _
    // Predicated region
    $region14: #{ratspn_forward.1} parent=1 // pred_check
      _
    $region15: #{ratspn_forward.1} parent=1 // pred_check_branch
      %18 = sbr.rel (0) target = $region17
    $region16: #{ratspn_forward.1} parent=1 // pred_region
      _
    $region17: #{ratspn_forward.1} parent=1 // pred_fallthru
      _
    // Predicated region
    $region18: #{ratspn_forward.1} parent=1 // pred_check
      _
    $region19: #{ratspn_forward.1} parent=1 // pred_check_branch
      %20 = sbr.rel (0) target = $region21
    $region20: #{ratspn_forward.1} parent=1 // pred_region
      _
    $region21: #{ratspn_forward.1} parent=1 // pred_fallthru
      _
    %v21 = vld [vmem:[%s0] sm:$0x3]
    %v22 = vld [vmem:[%s0 + $0x2] sm:$0x3]
    %v23 = vld [vmem:[%s0 + $0x4] sm:$0x3]
    %v24 = vld [vmem:[%s0 + $0x6] sm:$0x3]
    %v25 = vld [vmem:[%s0 + $0x8] sm:$0x3]
    %v26 = vld [vmem:[%s0 + $0xa] sm:$0x3]
    %v27 = vld [vmem:[%s0 + $0xc] sm:$0x3]
    %v28 = vld [vmem:[%s0 + $0xe] sm:$0x3]
    %v29 = vld [vmem:[%s1] sm:$0x3]
    %v30 = vld [vmem:[%s1 + $0x2] sm:$0x3]
    %v31 = vld [vmem:[%s1 + $0x4] sm:$0x3]
    %v32 = vld [vmem:[%s1 + $0x6] sm:$0x3]
    %v33 = vld [vmem:[%s1 + $0x8] sm:$0x3]
    %v34 = vld [vmem:[%s1 + $0xa] sm:$0x3]
    %v35 = vld [vmem:[%s1 + $0xc] sm:$0x3]
    %v36 = vld [vmem:[%s1 + $0xe] sm:$0x3]
    %v37 = vld [vmem:[%s2] sm:$0x3]
    %v38 = vld [vmem:[%s2 + $0x2] sm:$0x3]
    %v39 = vld [vmem:[%s2 + $0x4] sm:$0x3]
    %v40 = vld [vmem:[%s2 + $0x6] sm:$0x3]
    %v41 = vld [vmem:[%s2 + $0x8] sm:$0x3]
    %v42 = vld [vmem:[%s2 + $0xa] sm:$0x3]
    %v43 = vld [vmem:[%s2 + $0xc] sm:$0x3]
    %v44 = vld [vmem:[%s2 + $0xe] sm:$0x3]
    %v45 = vsub.f32 0.0, %v37
    %v46 = vsub.f32 0.0, %v38
    %v47 = vsub.f32 0.0, %v39
    %v48 = vsub.f32 0.0, %v40
    %v49 = vsub.f32 0.0, %v41
    %v50 = vsub.f32 0.0, %v42
    %v51 = vsub.f32 0.0, %v43
    %v52 = vsub.f32 0.0, %v44
    %v53 = vmul.f32 %v45, 1.442695
    %v54 = vpow.pop %v53
    %v55 = vmul.f32 %v46, 1.442695
    %v56 = vpow.pop %v55
    %v57 = vmul.f32 %v47, 1.442695
    %v58 = vpow.pop %v57
    %v59 = vmul.f32 %v48, 1.442695
    %v60 = vpow.pop %v59
    %v61 = vmul.f32 %v49, 1.442695
    %v62 = vpow.pop %v61
    %v63 = vmul.f32 %v50, 1.442695
    %v64 = vpow.pop %v63
    %v65 = vmul.f32 %v51, 1.442695
    %v66 = vpow.pop %v65
    %v67 = vmul.f32 %v52, 1.442695
    %v68 = vpow.pop %v67
    %v69 = vadd.f32 %v54, 1.0
    %v70 = vadd.f32 %v56, 1.0
    %v71 = vadd.f32 %v58, 1.0
    %v72 = vadd.f32 %v60, 1.0
    %v73 = vadd.f32 %v62, 1.0
    %v74 = vadd.f32 %v64, 1.0
    %v75 = vadd.f32 %v66, 1.0
    %v76 = vadd.f32 %v68, 1.0
    %v77 = vrcp.pop %v69
    %v78 = vmul.f32 0.9, %v77
    %v79 = vrcp.pop %v70
    %v80 = vmul.f32 0.9, %v79
    %v81 = vrcp.pop %v71
    %v82 = vmul.f32 0.9, %v81
    %v83 = vrcp.pop %v72
    %v84 = vmul.f32 0.9, %v83
    %v85 = vrcp.pop %v73
    %v86 = vmul.f32 0.9, %v85
    %v87 = vrcp.pop %v74
    %v88 = vmul.f32 0.9, %v87
    %v89 = vrcp.pop %v75
    %v90 = vmul.f32 0.9, %v89
    %v91 = vrcp.pop %v76
    %v92 = vmul.f32 0.9, %v91
    %v93 = vadd.f32 %v78, 0.1
    %v94 = vadd.f32 %v80, 0.1
    %v95 = vadd.f32 %v82, 0.1
    %v96 = vadd.f32 %v84, 0.1
    %v97 = vadd.f32 %v86, 0.1
    %v98 = vadd.f32 %v88, 0.1
    %v99 = vadd.f32 %v90, 0.1
    %v100 = vadd.f32 %v92, 0.1
    %v101 = vlog2.pop %v93
    %v102 = vmul.f32 %v101, 0.6931472
    %v103 = vlog2.pop %v94
    %v104 = vmul.f32 %v103, 0.6931472
    %v105 = vlog2.pop %v95
    %v106 = vmul.f32 %v105, 0.6931472
    %v107 = vlog2.pop %v96
    %v108 = vmul.f32 %v107, 0.6931472
    %v109 = vlog2.pop %v97
    %v110 = vmul.f32 %v109, 0.6931472
    %v111 = vlog2.pop %v98
    %v112 = vmul.f32 %v111, 0.6931472
    %v113 = vlog2.pop %v99
    %v114 = vmul.f32 %v113, 0.6931472
    %v115 = vlog2.pop %v100
    %v116 = vmul.f32 %v115, 0.6931472
    %v117 = vmul.f32 %v102, -0.5
    %v118 = vmul.f32 %v104, -0.5
    %v119 = vmul.f32 %v106, -0.5
    %v120 = vmul.f32 %v108, -0.5
    %v121 = vmul.f32 %v110, -0.5
    %v122 = vmul.f32 %v112, -0.5
    %v123 = vmul.f32 %v114, -0.5
    %v124 = vmul.f32 %v116, -0.5
    %v125 = vrcp.pop %v93
    %v126 = vmul.f32 0.5, %v125
    %v127 = vrcp.pop %v94
    %v128 = vmul.f32 0.5, %v127
    %v129 = vrcp.pop %v95
    %v130 = vmul.f32 0.5, %v129
    %v131 = vrcp.pop %v96
    %v132 = vmul.f32 0.5, %v131
    %v133 = vrcp.pop %v97
    %v134 = vmul.f32 0.5, %v133
    %v135 = vrcp.pop %v98
    %v136 = vmul.f32 0.5, %v135
    %v137 = vrcp.pop %v99
    %v138 = vmul.f32 0.5, %v137
    %v139 = vrcp.pop %v100
    %v140 = vmul.f32 0.5, %v139
    %142 = vset.pattern.permute.xlu0 0
    %143 = vperm.xlu0 %142, %v21
    %v144 = vpop.permute.xlu0 %143
    %147 = vset.pattern.permute.xlu0 0
    %148 = vperm.xlu0 %147, %v22
    %v149 = vpop.permute.xlu0 %148
    %152 = vset.pattern.permute.xlu0 0
    %153 = vperm.xlu0 %152, %v23
    %v154 = vpop.permute.xlu0 %153
    %157 = vset.pattern.permute.xlu0 0
    %158 = vperm.xlu0 %157, %v24
    %v159 = vpop.permute.xlu0 %158
    %162 = vset.pattern.permute.xlu0 0
    %163 = vperm.xlu0 %162, %v25
    %v164 = vpop.permute.xlu0 %163
    %167 = vset.pattern.permute.xlu0 0
    %168 = vperm.xlu0 %167, %v26
    %v169 = vpop.permute.xlu0 %168
    %172 = vset.pattern.permute.xlu0 0
    %173 = vperm.xlu0 %172, %v27
    %v174 = vpop.permute.xlu0 %173
    %177 = vset.pattern.permute.xlu0 0
    %178 = vperm.xlu0 %177, %v28
    %v179 = vpop.permute.xlu0 %178
    %v181 = vlaneseq
    %v182 = vshrl.u32 %v181, 7
    %v183 = vsub.s32 0, %v182
    %v184 = vrot.slane %v29, %v183
    %v185 = vlaneseq
    %v186 = vshrl.u32 %v185, 7
    %v187 = vsub.s32 0, %v186
    %v188 = vrot.slane %v30, %v187
    %v189 = vlaneseq
    %v190 = vshrl.u32 %v189, 7
    %v191 = vsub.s32 0, %v190
    %v192 = vrot.slane %v31, %v191
    %v193 = vlaneseq
    %v194 = vshrl.u32 %v193, 7
    %v195 = vsub.s32 0, %v194
    %v196 = vrot.slane %v32, %v195
    %v197 = vlaneseq
    %v198 = vshrl.u32 %v197, 7
    %v199 = vsub.s32 0, %v198
    %v200 = vrot.slane %v33, %v199
    %v201 = vlaneseq
    %v202 = vshrl.u32 %v201, 7
    %v203 = vsub.s32 0, %v202
    %v204 = vrot.slane %v34, %v203
    %v205 = vlaneseq
    %v206 = vshrl.u32 %v205, 7
    %v207 = vsub.s32 0, %v206
    %v208 = vrot.slane %v35, %v207
    %v209 = vlaneseq
    %v210 = vshrl.u32 %v209, 7
    %v211 = vsub.s32 0, %v210
    %v212 = vrot.slane %v36, %v211
    %v213 = vsub.f32 %v144, %v184
    %v214 = vsub.f32 %v149, %v188
    %v215 = vsub.f32 %v154, %v192
    %v216 = vsub.f32 %v159, %v196
    %v217 = vsub.f32 %v164, %v200
    %v218 = vsub.f32 %v169, %v204
    %v219 = vsub.f32 %v174, %v208
    %v220 = vsub.f32 %v179, %v212
    %v221 = vmul.f32 %v213, %v213
    %v222 = vmul.f32 %v214, %v214
    %v223 = vmul.f32 %v215, %v215
    %v224 = vmul.f32 %v216, %v216
    %v225 = vmul.f32 %v217, %v217
    %v226 = vmul.f32 %v218, %v218
    %v227 = vmul.f32 %v219, %v219
    %v228 = vmul.f32 %v220, %v220
    %v229 = vlaneseq
    %v230 = vshrl.u32 %v229, 7
    %v231 = vsub.s32 0, %v230
    %v232 = vrot.slane %v126, %v231
    %v233 = vlaneseq
    %v234 = vshrl.u32 %v233, 7
    %v235 = vsub.s32 0, %v234
    %v236 = vrot.slane %v128, %v235
    %v237 = vlaneseq
    %v238 = vshrl.u32 %v237, 7
    %v239 = vsub.s32 0, %v238
    %v240 = vrot.slane %v130, %v239
    %v241 = vlaneseq
    %v242 = vshrl.u32 %v241, 7
    %v243 = vsub.s32 0, %v242
    %v244 = vrot.slane %v132, %v243
    %v245 = vlaneseq
    %v246 = vshrl.u32 %v245, 7
    %v247 = vsub.s32 0, %v246
    %v248 = vrot.slane %v134, %v247
    %v249 = vlaneseq
    %v250 = vshrl.u32 %v249, 7
    %v251 = vsub.s32 0, %v250
    %v252 = vrot.slane %v136, %v251
    %v253 = vlaneseq
    %v254 = vshrl.u32 %v253, 7
    %v255 = vsub.s32 0, %v254
    %v256 = vrot.slane %v138, %v255
    %v257 = vlaneseq
    %v258 = vshrl.u32 %v257, 7
    %v259 = vsub.s32 0, %v258
    %v260 = vrot.slane %v140, %v259
    %v261 = vmul.f32 %v221, %v232
    %v262 = vmul.f32 %v222, %v236
    %v263 = vmul.f32 %v223, %v240
    %v264 = vmul.f32 %v224, %v244
    %v265 = vmul.f32 %v225, %v248
    %v266 = vmul.f32 %v226, %v252
    %v267 = vmul.f32 %v227, %v256
    %v268 = vmul.f32 %v228, %v260
    %v269 = vlaneseq
    %v270 = vshrl.u32 %v269, 7
    %v271 = vsub.s32 0, %v270
    %v272 = vrot.slane %v117, %v271
    %v273 = vlaneseq
    %v274 = vshrl.u32 %v273, 7
    %v275 = vsub.s32 0, %v274
    %v276 = vrot.slane %v118, %v275
    %v277 = vlaneseq
    %v278 = vshrl.u32 %v277, 7
    %v279 = vsub.s32 0, %v278
    %v280 = vrot.slane %v119, %v279
    %v281 = vlaneseq
    %v282 = vshrl.u32 %v281, 7
    %v283 = vsub.s32 0, %v282
    %v284 = vrot.slane %v120, %v283
    %v285 = vlaneseq
    %v286 = vshrl.u32 %v285, 7
    %v287 = vsub.s32 0, %v286
    %v288 = vrot.slane %v121, %v287
    %v289 = vlaneseq
    %v290 = vshrl.u32 %v289, 7
    %v291 = vsub.s32 0, %v290
    %v292 = vrot.slane %v122, %v291
    %v293 = vlaneseq
    %v294 = vshrl.u32 %v293, 7
    %v295 = vsub.s32 0, %v294
    %v296 = vrot.slane %v123, %v295
    %v297 = vlaneseq
    %v298 = vshrl.u32 %v297, 7
    %v299 = vsub.s32 0, %v298
    %v300 = vrot.slane %v124, %v299
    %v301 = vsub.f32 %v272, %v261
    %v302 = vsub.f32 %v276, %v262
    %v303 = vsub.f32 %v280, %v263
    %v304 = vsub.f32 %v284, %v264
    %v305 = vsub.f32 %v288, %v265
    %v306 = vsub.f32 %v292, %v266
    %v307 = vsub.f32 %v296, %v267
    %v308 = vsub.f32 %v300, %v268
    %v309 = vadd.f32 %v301, -1.837877
    %v310 = vadd.f32 %v302, -1.837877
    %v311 = vadd.f32 %v303, -1.837877
    %v312 = vadd.f32 %v304, -1.837877
    %v313 = vadd.f32 %v305, -1.837877
    %v314 = vadd.f32 %v306, -1.837877
    %v315 = vadd.f32 %v307, -1.837877
    %v316 = vadd.f32 %v308, -1.837877
    %317 = vset.pattern.permute.xlu0 1
    %318 = vperm.xlu0 %317, %v21
    %v319 = vpop.permute.xlu0 %318
    %321 = vset.pattern.permute.xlu0 1
    %322 = vperm.xlu0 %321, %v22
    %v323 = vpop.permute.xlu0 %322
    %325 = vset.pattern.permute.xlu0 1
    %326 = vperm.xlu0 %325, %v23
    %v327 = vpop.permute.xlu0 %326
    %329 = vset.pattern.permute.xlu0 1
    %330 = vperm.xlu0 %329, %v24
    %v331 = vpop.permute.xlu0 %330
    %333 = vset.pattern.permute.xlu0 1
    %334 = vperm.xlu0 %333, %v25
    %v335 = vpop.permute.xlu0 %334
    %337 = vset.pattern.permute.xlu0 1
    %338 = vperm.xlu0 %337, %v26
    %v339 = vpop.permute.xlu0 %338
    %341 = vset.pattern.permute.xlu0 1
    %342 = vperm.xlu0 %341, %v27
    %v343 = vpop.permute.xlu0 %342
    %345 = vset.pattern.permute.xlu0 1
    %346 = vperm.xlu0 %345, %v28
    %v347 = vpop.permute.xlu0 %346
    %v349 = vlaneseq
    %v350 = vshrl.u32 %v349, 7
    %v351 = vsub.s32 1, %v350
    %v352 = vrot.slane %v29, %v351
    %v353 = vlaneseq
    %v354 = vshrl.u32 %v353, 7
    %v355 = vsub.s32 1, %v354
    %v356 = vrot.slane %v30, %v355
    %v357 = vlaneseq
    %v358 = vshrl.u32 %v357, 7
    %v359 = vsub.s32 1, %v358
    %v360 = vrot.slane %v31, %v359
    %v361 = vlaneseq
    %v362 = vshrl.u32 %v361, 7
    %v363 = vsub.s32 1, %v362
    %v364 = vrot.slane %v32, %v363
    %v365 = vlaneseq
    %v366 = vshrl.u32 %v365, 7
    %v367 = vsub.s32 1, %v366
    %v368 = vrot.slane %v33, %v367
    %v369 = vlaneseq
    %v370 = vshrl.u32 %v369, 7
    %v371 = vsub.s32 1, %v370
    %v372 = vrot.slane %v34, %v371
    %v373 = vlaneseq
    %v374 = vshrl.u32 %v373, 7
    %v375 = vsub.s32 1, %v374
    %v376 = vrot.slane %v35, %v375
    %v377 = vlaneseq
    %v378 = vshrl.u32 %v377, 7
    %v379 = vsub.s32 1, %v378
    %v380 = vrot.slane %v36, %v379
    %v381 = vsub.f32 %v319, %v352
    %v382 = vsub.f32 %v323, %v356
    %v383 = vsub.f32 %v327, %v360
    %v384 = vsub.f32 %v331, %v364
    %v385 = vsub.f32 %v335, %v368
    %v386 = vsub.f32 %v339, %v372
    %v387 = vsub.f32 %v343, %v376
    %v388 = vsub.f32 %v347, %v380
    %v389 = vmul.f32 %v381, %v381
    %v390 = vmul.f32 %v382, %v382
    %v391 = vmul.f32 %v383, %v383
    %v392 = vmul.f32 %v384, %v384
    %v393 = vmul.f32 %v385, %v385
    %v394 = vmul.f32 %v386, %v386
    %v395 = vmul.f32 %v387, %v387
    %v396 = vmul.f32 %v388, %v388
    %v397 = vlaneseq
    %v398 = vshrl.u32 %v397, 7
    %v399 = vsub.s32 1, %v398
    %v400 = vrot.slane %v126, %v399
    %v401 = vlaneseq
    %v402 = vshrl.u32 %v401, 7
    %v403 = vsub.s32 1, %v402
    %v404 = vrot.slane %v128, %v403
    %v405 = vlaneseq
    %v406 = vshrl.u32 %v405, 7
    %v407 = vsub.s32 1, %v406
    %v408 = vrot.slane %v130, %v407
    %v409 = vlaneseq
    %v410 = vshrl.u32 %v409, 7
    %v411 = vsub.s32 1, %v410
    %v412 = vrot.slane %v132, %v411
    %v413 = vlaneseq
    %v414 = vshrl.u32 %v413, 7
    %v415 = vsub.s32 1, %v414
    %v416 = vrot.slane %v134, %v415
    %v417 = vlaneseq
    %v418 = vshrl.u32 %v417, 7
    %v419 = vsub.s32 1, %v418
    %v420 = vrot.slane %v136, %v419
    %v421 = vlaneseq
    %v422 = vshrl.u32 %v421, 7
    %v423 = vsub.s32 1, %v422
    %v424 = vrot.slane %v138, %v423
    %v425 = vlaneseq
    %v426 = vshrl.u32 %v425, 7
    %v427 = vsub.s32 1, %v426
    %v428 = vrot.slane %v140, %v427
    %v429 = vmul.f32 %v389, %v400
    %v430 = vmul.f32 %v390, %v404
    %v431 = vmul.f32 %v391, %v408
    %v432 = vmul.f32 %v392, %v412
    %v433 = vmul.f32 %v393, %v416
    %v434 = vmul.f32 %v394, %v420
    %v435 = vmul.f32 %v395, %v424
    %v436 = vmul.f32 %v396, %v428
    %v437 = vlaneseq
    %v438 = vshrl.u32 %v437, 7
    %v439 = vsub.s32 1, %v438
    %v440 = vrot.slane %v117, %v439
    %v441 = vlaneseq
    %v442 = vshrl.u32 %v441, 7
    %v443 = vsub.s32 1, %v442
    %v444 = vrot.slane %v118, %v443
    %v445 = vlaneseq
    %v446 = vshrl.u32 %v445, 7
    %v447 = vsub.s32 1, %v446
    %v448 = vrot.slane %v119, %v447
    %v449 = vlaneseq
    %v450 = vshrl.u32 %v449, 7
    %v451 = vsub.s32 1, %v450
    %v452 = vrot.slane %v120, %v451
    %v453 = vlaneseq
    %v454 = vshrl.u32 %v453, 7
    %v455 = vsub.s32 1, %v454
    %v456 = vrot.slane %v121, %v455
    %v457 = vlaneseq
    %v458 = vshrl.u32 %v457, 7
    %v459 = vsub.s32 1, %v458
    %v460 = vrot.slane %v122, %v459
    %v461 = vlaneseq
    %v462 = vshrl.u32 %v461, 7
    %v463 = vsub.s32 1, %v462
    %v464 = vrot.slane %v123, %v463
    %v465 = vlaneseq
    %v466 = vshrl.u32 %v465, 7
    %v467 = vsub.s32 1, %v466
    %v468 = vrot.slane %v124, %v467
    %v469 = vsub.f32 %v440, %v429
    %v470 = vsub.f32 %v444, %v430
    %v471 = vsub.f32 %v448, %v431
    %v472 = vsub.f32 %v452, %v432
    %v473 = vsub.f32 %v456, %v433
    %v474 = vsub.f32 %v460, %v434
    %v475 = vsub.f32 %v464, %v435
    %v476 = vsub.f32 %v468, %v436
    %v477 = vadd.f32 %v309, %v469
    %v478 = vadd.f32 %v310, %v470
    %v479 = vadd.f32 %v311, %v471
    %v480 = vadd.f32 %v312, %v472
    %v481 = vadd.f32 %v313, %v473
    %v482 = vadd.f32 %v314, %v474
    %v483 = vadd.f32 %v315, %v475
    %v484 = vadd.f32 %v316, %v476
    %vm485 = vcmask 58368
    %v486 = vsel %vm485, %v477, -inf
    %487 = vmax.xlane.f32.xlu0 %v486
    %v488 = vpop.xlane.xlu0 %487
    %v489 = vsel %vm485, %v478, -inf
    %490 = vmax.xlane.f32.xlu0 %v489
    %v491 = vpop.xlane.xlu0 %490
    %v492 = vsel %vm485, %v479, -inf
    %493 = vmax.xlane.f32.xlu0 %v492
    %v494 = vpop.xlane.xlu0 %493
    %v495 = vsel %vm485, %v480, -inf
    %496 = vmax.xlane.f32.xlu0 %v495
    %v497 = vpop.xlane.xlu0 %496
    %v498 = vsel %vm485, %v481, -inf
    %499 = vmax.xlane.f32.xlu0 %v498
    %v500 = vpop.xlane.xlu0 %499
    %v501 = vsel %vm485, %v482, -inf
    %502 = vmax.xlane.f32.xlu0 %v501
    %v503 = vpop.xlane.xlu0 %502
    %v504 = vsel %vm485, %v483, -inf
    %505 = vmax.xlane.f32.xlu0 %v504
    %v506 = vpop.xlane.xlu0 %505
    %v507 = vsel %vm485, %v484, -inf
    %508 = vmax.xlane.f32.xlu0 %v507
    %v509 = vpop.xlane.xlu0 %508
    %v510 = vsub.f32 %v477, %v488
    %v511 = vsub.f32 %v478, %v491
    %v512 = vsub.f32 %v479, %v494
    %v513 = vsub.f32 %v480, %v497
    %v514 = vsub.f32 %v481, %v500
    %v515 = vsub.f32 %v482, %v503
    %v516 = vsub.f32 %v483, %v506
    %v517 = vsub.f32 %v484, %v509
    %v518 = vmul.f32 %v510, 1.442695
    %v519 = vpow.pop %v518
    %v520 = vmul.f32 %v511, 1.442695
    %v521 = vpow.pop %v520
    %v522 = vmul.f32 %v512, 1.442695
    %v523 = vpow.pop %v522
    %v524 = vmul.f32 %v513, 1.442695
    %v525 = vpow.pop %v524
    %v526 = vmul.f32 %v514, 1.442695
    %v527 = vpow.pop %v526
    %v528 = vmul.f32 %v515, 1.442695
    %v529 = vpow.pop %v528
    %v530 = vmul.f32 %v516, 1.442695
    %v531 = vpow.pop %v530
    %v532 = vmul.f32 %v517, 1.442695
    %v533 = vpow.pop %v532
    %v534 = vld [vmem:[%s3] sm:$0xff]
    %v535 = vld [vmem:[%s3 + $0x8] sm:$0xff]
    %v536 = vld [vmem:[%s3 + $0x10] sm:$0xff]
    %v537 = vld [vmem:[%s3 + $0x18] sm:$0xff]
    %v538 = vld [vmem:[%s3 + $0x20] sm:$0xff]
    %v539 = vld [vmem:[%s3 + $0x28] sm:$0xff]
    %v540 = vld [vmem:[%s3 + $0x30] sm:$0xff]
    %v541 = vld [vmem:[%s3 + $0x38] sm:$0xff]
    %v542 = vld [vmem:[%s3 + $0x40] sm:$0xff]
    %v543 = vld [vmem:[%s3 + $0x48] sm:$0xff]
    %v544 = vld [vmem:[%s3 + $0x50] sm:$0xff]
    %v545 = vld [vmem:[%s3 + $0x58] sm:$0xff]
    %v546 = vld [vmem:[%s3 + $0x60] sm:$0xff]
    %v547 = vld [vmem:[%s3 + $0x68] sm:$0xff]
    %v548 = vld [vmem:[%s3 + $0x70] sm:$0xff]
    %v549 = vld [vmem:[%s3 + $0x78] sm:$0xff]
    %v550 = vld [vmem:[%s3 + $0x80] sm:$0xff]
    %v551 = vld [vmem:[%s3 + $0x88] sm:$0xff]
    %v552 = vld [vmem:[%s3 + $0x90] sm:$0xff]
    %v553 = vld [vmem:[%s3 + $0x98] sm:$0xff]
    %v554 = vld [vmem:[%s3 + $0xa0] sm:$0xff]
    %v555 = vld [vmem:[%s3 + $0xa8] sm:$0xff]
    %v556 = vld [vmem:[%s3 + $0xb0] sm:$0xff]
    %v557 = vld [vmem:[%s3 + $0xb8] sm:$0xff]
    %v558 = vld [vmem:[%s3 + $0xc0] sm:$0xff]
    %v559 = vld [vmem:[%s3 + $0xc8] sm:$0xff]
    %v560 = vld [vmem:[%s3 + $0xd0] sm:$0xff]
    %v561 = vld [vmem:[%s3 + $0xd8] sm:$0xff]
    %v562 = vld [vmem:[%s3 + $0xe0] sm:$0xff]
    %v563 = vld [vmem:[%s3 + $0xe8] sm:$0xff]
    %v564 = vld [vmem:[%s3 + $0xf0] sm:$0xff]
    %v565 = vld [vmem:[%s3 + $0xf8] sm:$0xff]
    %vm566 = vcmask 162816
    %v567 = vsel %vm566, %v534, -inf
    %v568 = vsel %vm566, %v535, -inf
    %v569 = vmax.f32 %v567, %v568
    %v570 = vsel %vm566, %v536, -inf
    %v571 = vmax.f32 %v569, %v570
    %v572 = vsel %vm566, %v537, -inf
    %v573 = vmax.f32 %v571, %v572
    %v574 = vsel %vm566, %v538, -inf
    %v575 = vmax.f32 %v573, %v574
    %v576 = vsel %vm566, %v539, -inf
    %v577 = vmax.f32 %v575, %v576
    %v578 = vsel %vm566, %v540, -inf
    %v579 = vmax.f32 %v577, %v578
    %v580 = vsel %vm566, %v541, -inf
    %v581 = vmax.f32 %v579, %v580
    %v582 = vrot.slane %v581, 4
    %v583 = vmax.f32 %v581, %v582
    %v584 = vrot.slane %v583, 2
    %v585 = vmax.f32 %v583, %v584
    %v586 = vrot.slane %v585, 1
    %v587 = vmax.f32 %v585, %v586
    %v588 = vsel %vm566, %v542, -inf
    %v589 = vsel %vm566, %v543, -inf
    %v590 = vmax.f32 %v588, %v589
    %v591 = vsel %vm566, %v544, -inf
    %v592 = vmax.f32 %v590, %v591
    %v593 = vsel %vm566, %v545, -inf
    %v594 = vmax.f32 %v592, %v593
    %v595 = vsel %vm566, %v546, -inf
    %v596 = vmax.f32 %v594, %v595
    %v597 = vsel %vm566, %v547, -inf
    %v598 = vmax.f32 %v596, %v597
    %v599 = vsel %vm566, %v548, -inf
    %v600 = vmax.f32 %v598, %v599
    %v601 = vsel %vm566, %v549, -inf
    %v602 = vmax.f32 %v600, %v601
    %v603 = vrot.slane %v602, 4
    %v604 = vmax.f32 %v602, %v603
    %v605 = vrot.slane %v604, 2
    %v606 = vmax.f32 %v604, %v605
    %v607 = vrot.slane %v606, 1
    %v608 = vmax.f32 %v606, %v607
    %v609 = vsel %vm566, %v550, -inf
    %v610 = vsel %vm566, %v551, -inf
    %v611 = vmax.f32 %v609, %v610
    %v612 = vsel %vm566, %v552, -inf
    %v613 = vmax.f32 %v611, %v612
    %v614 = vsel %vm566, %v553, -inf
    %v615 = vmax.f32 %v613, %v614
    %v616 = vsel %vm566, %v554, -inf
    %v617 = vmax.f32 %v615, %v616
    %v618 = vsel %vm566, %v555, -inf
    %v619 = vmax.f32 %v617, %v618
    %v620 = vsel %vm566, %v556, -inf
    %v621 = vmax.f32 %v619, %v620
    %v622 = vsel %vm566, %v557, -inf
    %v623 = vmax.f32 %v621, %v622
    %v624 = vrot.slane %v623, 4
    %v625 = vmax.f32 %v623, %v624
    %v626 = vrot.slane %v625, 2
    %v627 = vmax.f32 %v625, %v626
    %v628 = vrot.slane %v627, 1
    %v629 = vmax.f32 %v627, %v628
    %v630 = vsel %vm566, %v558, -inf
    %v631 = vsel %vm566, %v559, -inf
    %v632 = vmax.f32 %v630, %v631
    %v633 = vsel %vm566, %v560, -inf
    %v634 = vmax.f32 %v632, %v633
    %v635 = vsel %vm566, %v561, -inf
    %v636 = vmax.f32 %v634, %v635
    %v637 = vsel %vm566, %v562, -inf
    %v638 = vmax.f32 %v636, %v637
    %v639 = vsel %vm566, %v563, -inf
    %v640 = vmax.f32 %v638, %v639
    %v641 = vsel %vm566, %v564, -inf
    %v642 = vmax.f32 %v640, %v641
    %v643 = vsel %vm566, %v565, -inf
    %v644 = vmax.f32 %v642, %v643
    %v645 = vrot.slane %v644, 4
    %v646 = vmax.f32 %v644, %v645
    %v647 = vrot.slane %v646, 2
    %v648 = vmax.f32 %v646, %v647
    %v649 = vrot.slane %v648, 1
    %v650 = vmax.f32 %v648, %v649
    %v651 = vsub.f32 %v534, %v587
    %v652 = vsub.f32 %v535, %v587
    %v653 = vsub.f32 %v536, %v587
    %v654 = vsub.f32 %v537, %v587
    %v655 = vsub.f32 %v538, %v587
    %v656 = vsub.f32 %v539, %v587
    %v657 = vsub.f32 %v540, %v587
    %v658 = vsub.f32 %v541, %v587
    %v659 = vsub.f32 %v542, %v608
    %v660 = vsub.f32 %v543, %v608
    %v661 = vsub.f32 %v544, %v608
    %v662 = vsub.f32 %v545, %v608
    %v663 = vsub.f32 %v546, %v608
    %v664 = vsub.f32 %v547, %v608
    %v665 = vsub.f32 %v548, %v608
    %v666 = vsub.f32 %v549, %v608
    %v667 = vsub.f32 %v550, %v629
    %v668 = vsub.f32 %v551, %v629
    %v669 = vsub.f32 %v552, %v629
    %v670 = vsub.f32 %v553, %v629
    %v671 = vsub.f32 %v554, %v629
    %v672 = vsub.f32 %v555, %v629
    %v673 = vsub.f32 %v556, %v629
    %v674 = vsub.f32 %v557, %v629
    %v675 = vsub.f32 %v558, %v650
    %v676 = vsub.f32 %v559, %v650
    %v677 = vsub.f32 %v560, %v650
    %v678 = vsub.f32 %v561, %v650
    %v679 = vsub.f32 %v562, %v650
    %v680 = vsub.f32 %v563, %v650
    %v681 = vsub.f32 %v564, %v650
    %v682 = vsub.f32 %v565, %v650
    %v683 = vmul.f32 %v651, 1.442695
    %v684 = vpow.pop %v683
    %v685 = vmul.f32 %v652, 1.442695
    %v686 = vpow.pop %v685
    %v687 = vmul.f32 %v653, 1.442695
    %v688 = vpow.pop %v687
    %v689 = vmul.f32 %v654, 1.442695
    %v690 = vpow.pop %v689
    %v691 = vmul.f32 %v655, 1.442695
    %v692 = vpow.pop %v691
    %v693 = vmul.f32 %v656, 1.442695
    %v694 = vpow.pop %v693
    %v695 = vmul.f32 %v657, 1.442695
    %v696 = vpow.pop %v695
    %v697 = vmul.f32 %v658, 1.442695
    %v698 = vpow.pop %v697
    %v699 = vmul.f32 %v659, 1.442695
    %v700 = vpow.pop %v699
    %v701 = vmul.f32 %v660, 1.442695
    %v702 = vpow.pop %v701
    %v703 = vmul.f32 %v661, 1.442695
    %v704 = vpow.pop %v703
    %v705 = vmul.f32 %v662, 1.442695
    %v706 = vpow.pop %v705
    %v707 = vmul.f32 %v663, 1.442695
    %v708 = vpow.pop %v707
    %v709 = vmul.f32 %v664, 1.442695
    %v710 = vpow.pop %v709
    %v711 = vmul.f32 %v665, 1.442695
    %v712 = vpow.pop %v711
    %v713 = vmul.f32 %v666, 1.442695
    %v714 = vpow.pop %v713
    %v715 = vmul.f32 %v667, 1.442695
    %v716 = vpow.pop %v715
    %v717 = vmul.f32 %v668, 1.442695
    %v718 = vpow.pop %v717
    %v719 = vmul.f32 %v669, 1.442695
    %v720 = vpow.pop %v719
    %v721 = vmul.f32 %v670, 1.442695
    %v722 = vpow.pop %v721
    %v723 = vmul.f32 %v671, 1.442695
    %v724 = vpow.pop %v723
    %v725 = vmul.f32 %v672, 1.442695
    %v726 = vpow.pop %v725
    %v727 = vmul.f32 %v673, 1.442695
    %v728 = vpow.pop %v727
    %v729 = vmul.f32 %v674, 1.442695
    %v730 = vpow.pop %v729
    %v731 = vmul.f32 %v675, 1.442695
    %v732 = vpow.pop %v731
    %v733 = vmul.f32 %v676, 1.442695
    %v734 = vpow.pop %v733
    %v735 = vmul.f32 %v677, 1.442695
    %v736 = vpow.pop %v735
    %v737 = vmul.f32 %v678, 1.442695
    %v738 = vpow.pop %v737
    %v739 = vmul.f32 %v679, 1.442695
    %v740 = vpow.pop %v739
    %v741 = vmul.f32 %v680, 1.442695
    %v742 = vpow.pop %v741
    %v743 = vmul.f32 %v681, 1.442695
    %v744 = vpow.pop %v743
    %v745 = vmul.f32 %v682, 1.442695
    %v746 = vpow.pop %v745
    %v747 = vsel %vm566, %v684, 0.0
    %v748 = vsel %vm566, %v686, 0.0
    %v749 = vadd.f32 %v747, %v748
    %v750 = vsel %vm566, %v688, 0.0
    %v751 = vadd.f32 %v749, %v750
    %v752 = vsel %vm566, %v690, 0.0
    %v753 = vadd.f32 %v751, %v752
    %v754 = vsel %vm566, %v692, 0.0
    %v755 = vadd.f32 %v753, %v754
    %v756 = vsel %vm566, %v694, 0.0
    %v757 = vadd.f32 %v755, %v756
    %v758 = vsel %vm566, %v696, 0.0
    %v759 = vadd.f32 %v757, %v758
    %v760 = vsel %vm566, %v698, 0.0
    %v761 = vadd.f32 %v759, %v760
    %v762 = vrot.slane %v761, 4
    %v763 = vadd.f32 %v761, %v762
    %v764 = vrot.slane %v763, 2
    %v765 = vadd.f32 %v763, %v764
    %v766 = vrot.slane %v765, 1
    %v767 = vadd.f32 %v765, %v766
    %v768 = vsel %vm566, %v700, 0.0
    %v769 = vsel %vm566, %v702, 0.0
    %v770 = vadd.f32 %v768, %v769
    %v771 = vsel %vm566, %v704, 0.0
    %v772 = vadd.f32 %v770, %v771
    %v773 = vsel %vm566, %v706, 0.0
    %v774 = vadd.f32 %v772, %v773
    %v775 = vsel %vm566, %v708, 0.0
    %v776 = vadd.f32 %v774, %v775
    %v777 = vsel %vm566, %v710, 0.0
    %v778 = vadd.f32 %v776, %v777
    %v779 = vsel %vm566, %v712, 0.0
    %v780 = vadd.f32 %v778, %v779
    %v781 = vsel %vm566, %v714, 0.0
    %v782 = vadd.f32 %v780, %v781
    %v783 = vrot.slane %v782, 4
    %v784 = vadd.f32 %v782, %v783
    %v785 = vrot.slane %v784, 2
    %v786 = vadd.f32 %v784, %v785
    %v787 = vrot.slane %v786, 1
    %v788 = vadd.f32 %v786, %v787
    %v789 = vsel %vm566, %v716, 0.0
    %v790 = vsel %vm566, %v718, 0.0
    %v791 = vadd.f32 %v789, %v790
    %v792 = vsel %vm566, %v720, 0.0
    %v793 = vadd.f32 %v791, %v792
    %v794 = vsel %vm566, %v722, 0.0
    %v795 = vadd.f32 %v793, %v794
    %v796 = vsel %vm566, %v724, 0.0
    %v797 = vadd.f32 %v795, %v796
    %v798 = vsel %vm566, %v726, 0.0
    %v799 = vadd.f32 %v797, %v798
    %v800 = vsel %vm566, %v728, 0.0
    %v801 = vadd.f32 %v799, %v800
    %v802 = vsel %vm566, %v730, 0.0
    %v803 = vadd.f32 %v801, %v802
    %v804 = vrot.slane %v803, 4
    %v805 = vadd.f32 %v803, %v804
    %v806 = vrot.slane %v805, 2
    %v807 = vadd.f32 %v805, %v806
    %v808 = vrot.slane %v807, 1
    %v809 = vadd.f32 %v807, %v808
    %v810 = vsel %vm566, %v732, 0.0
    %v811 = vsel %vm566, %v734, 0.0
    %v812 = vadd.f32 %v810, %v811
    %v813 = vsel %vm566, %v736, 0.0
    %v814 = vadd.f32 %v812, %v813
    %v815 = vsel %vm566, %v738, 0.0
    %v816 = vadd.f32 %v814, %v815
    %v817 = vsel %vm566, %v740, 0.0
    %v818 = vadd.f32 %v816, %v817
    %v819 = vsel %vm566, %v742, 0.0
    %v820 = vadd.f32 %v818, %v819
    %v821 = vsel %vm566, %v744, 0.0
    %v822 = vadd.f32 %v820, %v821
    %v823 = vsel %vm566, %v746, 0.0
    %v824 = vadd.f32 %v822, %v823
    %v825 = vrot.slane %v824, 4
    %v826 = vadd.f32 %v824, %v825
    %v827 = vrot.slane %v826, 2
    %v828 = vadd.f32 %v826, %v827
    %v829 = vrot.slane %v828, 1
    %v830 = vadd.f32 %v828, %v829
    %v831 = vrcp.pop %v767
    %v832 = vmul.f32 1.0, %v831
    %v833 = vrcp.pop %v788
    %v834 = vmul.f32 1.0, %v833
    %v835 = vrcp.pop %v809
    %v836 = vmul.f32 1.0, %v835
    %v837 = vrcp.pop %v830
    %v838 = vmul.f32 1.0, %v837
    %840 = vrot.lane.b32.xlu0 %v519, 8
    %v841 = vpop.permute.xlu0 %840
    %843 = vrot.lane.b32.xlu0 %v519, 16
    %v844 = vpop.permute.xlu0 %843
    %846 = vrot.lane.b32.xlu0 %v519, 24
    %v847 = vpop.permute.xlu0 %846
    %849 = vrot.lane.b32.xlu0 %v519, 32
    %v850 = vpop.permute.xlu0 %849
    %852 = vrot.lane.b32.xlu0 %v519, 40
    %v853 = vpop.permute.xlu0 %852
    %855 = vrot.lane.b32.xlu0 %v519, 48
    %v856 = vpop.permute.xlu0 %855
    %858 = vrot.lane.b32.xlu0 %v519, 56
    %v859 = vpop.permute.xlu0 %858
    %vm861 = vcmask 64512
    %v862 = vsel %vm861, %v519, %v841
    %vm863 = vcmask 130048
    %v864 = vsel %vm863, %v862, %v844
    %vm865 = vcmask 195584
    %v866 = vsel %vm865, %v864, %v847
    %vm867 = vcmask 261120
    %v868 = vsel %vm867, %v866, %v850
    %vm869 = vcmask 326656
    %v870 = vsel %vm869, %v868, %v853
    %vm871 = vcmask 392192
    %v872 = vsel %vm871, %v870, %v856
    %vm873 = vcmask 457728
    %v874 = vsel %vm873, %v872, %v859
    %876 = vset.pattern.permute.xlu0 0
    %877 = vperm.xlu0 %876, %v521
    %v878 = vpop.permute.xlu0 %877
    %880 = vset.pattern.permute.xlu0 1
    %881 = vperm.xlu0 %880, %v521
    %v882 = vpop.permute.xlu0 %881
    %884 = vset.pattern.permute.xlu0 2
    %885 = vperm.xlu0 %884, %v521
    %v886 = vpop.permute.xlu0 %885
    %888 = vset.pattern.permute.xlu0 3
    %889 = vperm.xlu0 %888, %v521
    %v890 = vpop.permute.xlu0 %889
    %892 = vset.pattern.permute.xlu0 4
    %893 = vperm.xlu0 %892, %v521
    %v894 = vpop.permute.xlu0 %893
    %896 = vset.pattern.permute.xlu0 5
    %897 = vperm.xlu0 %896, %v521
    %v898 = vpop.permute.xlu0 %897
    %900 = vset.pattern.permute.xlu0 6
    %901 = vperm.xlu0 %900, %v521
    %v902 = vpop.permute.xlu0 %901
    %904 = vset.pattern.permute.xlu0 7
    %905 = vperm.xlu0 %904, %v521
    %v906 = vpop.permute.xlu0 %905
    %v908 = vsel %vm861, %v878, %v882
    %v909 = vsel %vm863, %v908, %v886
    %v910 = vsel %vm865, %v909, %v890
    %v911 = vsel %vm867, %v910, %v894
    %v912 = vsel %vm869, %v911, %v898
    %v913 = vsel %vm871, %v912, %v902
    %v914 = vsel %vm873, %v913, %v906
    %v915 = vmul.f32 %v874, %v914
    %vm916 = vcmask 523264
    %v918 = vsel %vm916, %v915, 0
    %920 = vmatprep.subr.mxu0 0.0
    %v921 = vand.u32 %v684, 4294901760
    %922 = vmatpush1.msra.mxu0 %v921
    %923 = vmatprep.subr.mxu0 0.0
    %v924 = vand.u32 %v686, 4294901760
    %925 = vmatpush1.msra.mxu0 %v924
    %926 = vmatprep.subr.mxu0 0.0
    %v927 = vand.u32 %v688, 4294901760
    %928 = vmatpush1.msra.mxu0 %v927
    %929 = vmatprep.subr.mxu0 0.0
    %v930 = vand.u32 %v690, 4294901760
    %931 = vmatpush1.msra.mxu0 %v930
    %932 = vmatprep.subr.mxu0 0.0
    %v933 = vand.u32 %v692, 4294901760
    %934 = vmatpush1.msra.mxu0 %v933
    %935 = vmatprep.subr.mxu0 0.0
    %v936 = vand.u32 %v694, 4294901760
    %937 = vmatpush1.msra.mxu0 %v936
    %938 = vmatprep.subr.mxu0 0.0
    %v939 = vand.u32 %v696, 4294901760
    %940 = vmatpush1.msra.mxu0 %v939
    %941 = vmatprep.subr.mxu0 0.0
    %v942 = vand.u32 %v698, 4294901760
    %943 = vmatpush1.msra.mxu0 %v942
    %944 = vmatprep.subr.mxu0 0.0
    %945 = vmatpush1.msra.mxu0 0.0
    %946 = vmatprep.subr.mxu0 0.0
    %947 = vmatpush1.msra.mxu0 0.0
    %948 = vmatprep.subr.mxu0 0.0
    %949 = vmatpush1.msra.mxu0 0.0
    %950 = vmatprep.subr.mxu0 0.0
    %951 = vmatpush1.msra.mxu0 0.0
    %952 = vmatprep.subr.mxu0 0.0
    %953 = vmatpush1.msra.mxu0 0.0
    %954 = vmatprep.subr.mxu0 0.0
    %955 = vmatpush1.msra.mxu0 0.0
    %956 = vmatprep.subr.mxu0 0.0
    %957 = vmatpush1.msra.mxu0 0.0
    %958 = vmatprep.subr.mxu0 0.0
    %959 = vmatpush1.msra.mxu0 0.0
    %960 = vmatprep.subr.mxu0 0.0
    %961 = vmatpush1.msra.mxu0 0.0
    %962 = vmatprep.subr.mxu0 0.0
    %963 = vmatpush1.msra.mxu0 0.0
    %964 = vmatprep.subr.mxu0 0.0
    %965 = vmatpush1.msra.mxu0 0.0
    %966 = vmatprep.subr.mxu0 0.0
    %967 = vmatpush1.msra.mxu0 0.0
    %968 = vmatprep.subr.mxu0 0.0
    %969 = vmatpush1.msra.mxu0 0.0
    %970 = vmatprep.subr.mxu0 0.0
    %971 = vmatpush1.msra.mxu0 0.0
    %972 = vmatprep.subr.mxu0 0.0
    %973 = vmatpush1.msra.mxu0 0.0
    %974 = vmatprep.subr.mxu0 0.0
    %975 = vmatpush1.msra.mxu0 0.0
    %976 = vmatprep.subr.mxu0 0.0
    %977 = vmatpush1.msra.mxu0 0.0
    %978 = vmatprep.subr.mxu0 0.0
    %979 = vmatpush1.msra.mxu0 0.0
    %980 = vmatprep.subr.mxu0 0.0
    %981 = vmatpush1.msra.mxu0 0.0
    %982 = vmatprep.subr.mxu0 0.0
    %983 = vmatpush1.msra.mxu0 0.0
    %984 = vmatprep.subr.mxu0 0.0
    %985 = vmatpush1.msra.mxu0 0.0
    %986 = vmatprep.subr.mxu0 0.0
    %987 = vmatpush1.msra.mxu0 0.0
    %988 = vmatprep.subr.mxu0 0.0
    %989 = vmatpush1.msra.mxu0 0.0
    %990 = vmatprep.subr.mxu0 0.0
    %991 = vmatpush1.msra.mxu0 0.0
    %992 = vmatprep.mubr.f32.mxu0 0.0
    %v993 = vand.u32 %v918, 4294901760
    %v994 = vsub.f32 %v918, %v993
    %v995 = vand.u32 %v994, 4294901760
    %v996 = vsub.f32 %v994, %v995
    %v997 = vand.u32 %v996, 4294901760
    %998 = vmatmul.mubr.f32.gmra.mrb[0].mxu0 %v997
    %v999 = vpop.f32.mrb[0].mxu0
    %v1000 = vadd.f32 0.0, %v999
    %v1001 = vpop.f32.mrb[0].mxu0
    %1002 = vdwg.mxu0
    %1003 = vmatprep.subr.mxu0 0.0
    %v1004 = vand.u32 %v684, 4294901760
    %v1005 = vsub.f32 %v684, %v1004
    %v1006 = vand.u32 %v1005, 4294901760
    %v1007 = vsub.f32 %v1005, %v1006
    %v1008 = vand.u32 %v1007, 4294901760
    %1009 = vmatpush1.msra.mxu0 %v1008
    %1010 = vmatprep.subr.mxu0 0.0
    %v1011 = vand.u32 %v686, 4294901760
    %v1012 = vsub.f32 %v686, %v1011
    %v1013 = vand.u32 %v1012, 4294901760
    %v1014 = vsub.f32 %v1012, %v1013
    %v1015 = vand.u32 %v1014, 4294901760
    %1016 = vmatpush1.msra.mxu0 %v1015
    %1017 = vmatprep.subr.mxu0 0.0
    %v1018 = vand.u32 %v688, 4294901760
    %v1019 = vsub.f32 %v688, %v1018
    %v1020 = vand.u32 %v1019, 4294901760
    %v1021 = vsub.f32 %v1019, %v1020
    %v1022 = vand.u32 %v1021, 4294901760
    %1023 = vmatpush1.msra.mxu0 %v1022
    %1024 = vmatprep.subr.mxu0 0.0
    %v1025 = vand.u32 %v690, 4294901760
    %v1026 = vsub.f32 %v690, %v1025
    %v1027 = vand.u32 %v1026, 4294901760
    %v1028 = vsub.f32 %v1026, %v1027
    %v1029 = vand.u32 %v1028, 4294901760
    %1030 = vmatpush1.msra.mxu0 %v1029
    %1031 = vmatprep.subr.mxu0 0.0
    %v1032 = vand.u32 %v692, 4294901760
    %v1033 = vsub.f32 %v692, %v1032
    %v1034 = vand.u32 %v1033, 4294901760
    %v1035 = vsub.f32 %v1033, %v1034
    %v1036 = vand.u32 %v1035, 4294901760
    %1037 = vmatpush1.msra.mxu0 %v1036
    %1038 = vmatprep.subr.mxu0 0.0
    %v1039 = vand.u32 %v694, 4294901760
    %v1040 = vsub.f32 %v694, %v1039
    %v1041 = vand.u32 %v1040, 4294901760
    %v1042 = vsub.f32 %v1040, %v1041
    %v1043 = vand.u32 %v1042, 4294901760
    %1044 = vmatpush1.msra.mxu0 %v1043
    %1045 = vmatprep.subr.mxu0 0.0
    %v1046 = vand.u32 %v696, 4294901760
    %v1047 = vsub.f32 %v696, %v1046
    %v1048 = vand.u32 %v1047, 4294901760
    %v1049 = vsub.f32 %v1047, %v1048
    %v1050 = vand.u32 %v1049, 4294901760
    %1051 = vmatpush1.msra.mxu0 %v1050
    %1052 = vmatprep.subr.mxu0 0.0
    %v1053 = vand.u32 %v698, 4294901760
    %v1054 = vsub.f32 %v698, %v1053
    %v1055 = vand.u32 %v1054, 4294901760
    %v1056 = vsub.f32 %v1054, %v1055
    %v1057 = vand.u32 %v1056, 4294901760
    %1058 = vmatpush1.msra.mxu0 %v1057
    %1059 = vmatprep.subr.mxu0 0.0
    %1060 = vmatpush1.msra.mxu0 0.0
    %1061 = vmatprep.subr.mxu0 0.0
    %1062 = vmatpush1.msra.mxu0 0.0
    %1063 = vmatprep.subr.mxu0 0.0
    %1064 = vmatpush1.msra.mxu0 0.0
    %1065 = vmatprep.subr.mxu0 0.0
    %1066 = vmatpush1.msra.mxu0 0.0
    %1067 = vmatprep.subr.mxu0 0.0
    %1068 = vmatpush1.msra.mxu0 0.0
    %1069 = vmatprep.subr.mxu0 0.0
    %1070 = vmatpush1.msra.mxu0 0.0
    %1071 = vmatprep.subr.mxu0 0.0
    %1072 = vmatpush1.msra.mxu0 0.0
    %1073 = vmatprep.subr.mxu0 0.0
    %1074 = vmatpush1.msra.mxu0 0.0
    %1075 = vmatprep.subr.mxu0 0.0
    %1076 = vmatpush1.msra.mxu0 0.0
    %1077 = vmatprep.subr.mxu0 0.0
    %1078 = vmatpush1.msra.mxu0 0.0
    %1079 = vmatprep.subr.mxu0 0.0
    %1080 = vmatpush1.msra.mxu0 0.0
    %1081 = vmatprep.subr.mxu0 0.0
    %1082 = vmatpush1.msra.mxu0 0.0
    %1083 = vmatprep.subr.mxu0 0.0
    %1084 = vmatpush1.msra.mxu0 0.0
    %1085 = vmatprep.subr.mxu0 0.0
    %1086 = vmatpush1.msra.mxu0 0.0
    %1087 = vmatprep.subr.mxu0 0.0
    %1088 = vmatpush1.msra.mxu0 0.0
    %1089 = vmatprep.subr.mxu0 0.0
    %1090 = vmatpush1.msra.mxu0 0.0
    %1091 = vmatprep.subr.mxu0 0.0
    %1092 = vmatpush1.msra.mxu0 0.0
    %1093 = vmatprep.subr.mxu0 0.0
    %1094 = vmatpush1.msra.mxu0 0.0
    %1095 = vmatprep.subr.mxu0 0.0
    %1096 = vmatpush1.msra.mxu0 0.0
    %1097 = vmatprep.subr.mxu0 0.0
    %1098 = vmatpush1.msra.mxu0 0.0
    %1099 = vmatprep.subr.mxu0 0.0
    %1100 = vmatpush1.msra.mxu0 0.0
    %1101 = vmatprep.subr.mxu0 0.0
    %1102 = vmatpush1.msra.mxu0 0.0
    %1103 = vmatprep.subr.mxu0 0.0
    %1104 = vmatpush1.msra.mxu0 0.0
    %1105 = vmatprep.subr.mxu0 0.0
    %1106 = vmatpush1.msra.mxu0 0.0
    %1107 = vmatprep.mubr.f32.mxu0 0.0
    %v1108 = vand.u32 %v918, 4294901760
    %1109 = vmatmul.mubr.f32.gmra.mrb[0].mxu0 %v1108
    %v1110 = vpop.f32.mrb[0].mxu0
    %v1111 = vadd.f32 %v1000, %v1110
    %v1112 = vpop.f32.mrb[0].mxu0
    %1113 = vdwg.mxu0
    %1114 = vmatprep.subr.mxu0 0.0
    %v1115 = vand.u32 %v684, 4294901760
    %v1116 = vsub.f32 %v684, %v1115
    %1117 = vmatpush1.msra.mxu0 %v1116
    %1118 = vmatprep.subr.mxu0 0.0
    %v1119 = vand.u32 %v686, 4294901760
    %v1120 = vsub.f32 %v686, %v1119
    %1121 = vmatpush1.msra.mxu0 %v1120
    %1122 = vmatprep.subr.mxu0 0.0
    %v1123 = vand.u32 %v688, 4294901760
    %v1124 = vsub.f32 %v688, %v1123
    %1125 = vmatpush1.msra.mxu0 %v1124
    %1126 = vmatprep.subr.mxu0 0.0
    %v1127 = vand.u32 %v690, 4294901760
    %v1128 = vsub.f32 %v690, %v1127
    %1129 = vmatpush1.msra.mxu0 %v1128
    %1130 = vmatprep.subr.mxu0 0.0
    %v1131 = vand.u32 %v692, 4294901760
    %v1132 = vsub.f32 %v692, %v1131
    %1133 = vmatpush1.msra.mxu0 %v1132
    %1134 = vmatprep.subr.mxu0 0.0
    %v1135 = vand.u32 %v694, 4294901760
    %v1136 = vsub.f32 %v694, %v1135
    %1137 = vmatpush1.msra.mxu0 %v1136
    %1138 = vmatprep.subr.mxu0 0.0
    %v1139 = vand.u32 %v696, 4294901760
    %v1140 = vsub.f32 %v696, %v1139
    %1141 = vmatpush1.msra.mxu0 %v1140
    %1142 = vmatprep.subr.mxu0 0.0
    %v1143 = vand.u32 %v698, 4294901760
    %v1144 = vsub.f32 %v698, %v1143
    %1145 = vmatpush1.msra.mxu0 %v1144
    %1146 = vmatprep.subr.mxu0 0.0
    %1147 = vmatpush1.msra.mxu0 0.0
    %1148 = vmatprep.subr.mxu0 0.0
    %1149 = vmatpush1.msra.mxu0 0.0
    %1150 = vmatprep.subr.mxu0 0.0
    %1151 = vmatpush1.msra.mxu0 0.0
    %1152 = vmatprep.subr.mxu0 0.0
    %1153 = vmatpush1.msra.mxu0 0.0
    %1154 = vmatprep.subr.mxu0 0.0
    %1155 = vmatpush1.msra.mxu0 0.0
    %1156 = vmatprep.subr.mxu0 0.0
    %1157 = vmatpush1.msra.mxu0 0.0
    %1158 = vmatprep.subr.mxu0 0.0
    %1159 = vmatpush1.msra.mxu0 0.0
    %1160 = vmatprep.subr.mxu0 0.0
    %1161 = vmatpush1.msra.mxu0 0.0
    %1162 = vmatprep.subr.mxu0 0.0
    %1163 = vmatpush1.msra.mxu0 0.0
    %1164 = vmatprep.subr.mxu0 0.0
    %1165 = vmatpush1.msra.mxu0 0.0
    %1166 = vmatprep.subr.mxu0 0.0
    %1167 = vmatpush1.msra.mxu0 0.0
    %1168 = vmatprep.subr.mxu0 0.0
    %1169 = vmatpush1.msra.mxu0 0.0
    %1170 = vmatprep.subr.mxu0 0.0
    %1171 = vmatpush1.msra.mxu0 0.0
    %1172 = vmatprep.subr.mxu0 0.0
    %1173 = vmatpush1.msra.mxu0 0.0
    %1174 = vmatprep.subr.mxu0 0.0
    %1175 = vmatpush1.msra.mxu0 0.0
    %1176 = vmatprep.subr.mxu0 0.0
    %1177 = vmatpush1.msra.mxu0 0.0
    %1178 = vmatprep.subr.mxu0 0.0
    %1179 = vmatpush1.msra.mxu0 0.0
    %1180 = vmatprep.subr.mxu0 0.0
    %1181 = vmatpush1.msra.mxu0 0.0
    %1182 = vmatprep.subr.mxu0 0.0
    %1183 = vmatpush1.msra.mxu0 0.0
    %1184 = vmatprep.subr.mxu0 0.0
    %1185 = vmatpush1.msra.mxu0 0.0
    %1186 = vmatprep.subr.mxu0 0.0
    %1187 = vmatpush1.msra.mxu0 0.0
    %1188 = vmatprep.subr.mxu0 0.0
    %1189 = vmatpush1.msra.mxu0 0.0
    %1190 = vmatprep.subr.mxu0 0.0
    %1191 = vmatpush1.msra.mxu0 0.0
    %1192 = vmatprep.subr.mxu0 0.0
    %1193 = vmatpush1.msra.mxu0 0.0
    %1194 = vmatprep.mubr.f32.mxu0 0.0
    %v1195 = vand.u32 %v918, 4294901760
    %v1196 = vsub.f32 %v918, %v1195
    %1197 = vmatmul.mubr.f32.gmra.mrb[0].mxu0 %v1196
    %v1198 = vpop.f32.mrb[0].mxu0
    %v1199 = vadd.f32 %v1111, %v1198
    %v1200 = vpop.f32.mrb[0].mxu0
    %1201 = vdwg.mxu0
    %1202 = vmatprep.subr.mxu0 0.0
    %v1203 = vand.u32 %v684, 4294901760
    %1204 = vmatpush1.msra.mxu0 %v1203
    %1205 = vmatprep.subr.mxu0 0.0
    %v1206 = vand.u32 %v686, 4294901760
    %1207 = vmatpush1.msra.mxu0 %v1206
    %1208 = vmatprep.subr.mxu0 0.0
    %v1209 = vand.u32 %v688, 4294901760
    %1210 = vmatpush1.msra.mxu0 %v1209
    %1211 = vmatprep.subr.mxu0 0.0
    %v1212 = vand.u32 %v690, 4294901760
    %1213 = vmatpush1.msra.mxu0 %v1212
    %1214 = vmatprep.subr.mxu0 0.0
    %v1215 = vand.u32 %v692, 4294901760
    %1216 = vmatpush1.msra.mxu0 %v1215
    %1217 = vmatprep.subr.mxu0 0.0
    %v1218 = vand.u32 %v694, 4294901760
    %1219 = vmatpush1.msra.mxu0 %v1218
    %1220 = vmatprep.subr.mxu0 0.0
    %v1221 = vand.u32 %v696, 4294901760
    %1222 = vmatpush1.msra.mxu0 %v1221
    %1223 = vmatprep.subr.mxu0 0.0
    %v1224 = vand.u32 %v698, 4294901760
    %1225 = vmatpush1.msra.mxu0 %v1224
    %1226 = vmatprep.subr.mxu0 0.0
    %1227 = vmatpush1.msra.mxu0 0.0
    %1228 = vmatprep.subr.mxu0 0.0
    %1229 = vmatpush1.msra.mxu0 0.0
    %1230 = vmatprep.subr.mxu0 0.0
    %1231 = vmatpush1.msra.mxu0 0.0
    %1232 = vmatprep.subr.mxu0 0.0
    %1233 = vmatpush1.msra.mxu0 0.0
    %1234 = vmatprep.subr.mxu0 0.0
    %1235 = vmatpush1.msra.mxu0 0.0
    %1236 = vmatprep.subr.mxu0 0.0
    %1237 = vmatpush1.msra.mxu0 0.0
    %1238 = vmatprep.subr.mxu0 0.0
    %1239 = vmatpush1.msra.mxu0 0.0
    %1240 = vmatprep.subr.mxu0 0.0
    %1241 = vmatpush1.msra.mxu0 0.0
    %1242 = vmatprep.subr.mxu0 0.0
    %1243 = vmatpush1.msra.mxu0 0.0
    %1244 = vmatprep.subr.mxu0 0.0
    %1245 = vmatpush1.msra.mxu0 0.0
    %1246 = vmatprep.subr.mxu0 0.0
    %1247 = vmatpush1.msra.mxu0 0.0
    %1248 = vmatprep.subr.mxu0 0.0
    %1249 = vmatpush1.msra.mxu0 0.0
    %1250 = vmatprep.subr.mxu0 0.0
    %1251 = vmatpush1.msra.mxu0 0.0
    %1252 = vmatprep.subr.mxu0 0.0
    %1253 = vmatpush1.msra.mxu0 0.0
    %1254 = vmatprep.subr.mxu0 0.0
    %1255 = vmatpush1.msra.mxu0 0.0
    %1256 = vmatprep.subr.mxu0 0.0
    %1257 = vmatpush1.msra.mxu0 0.0
    %1258 = vmatprep.subr.mxu0 0.0
    %1259 = vmatpush1.msra.mxu0 0.0
    %1260 = vmatprep.subr.mxu0 0.0
    %1261 = vmatpush1.msra.mxu0 0.0
    %1262 = vmatprep.subr.mxu0 0.0
    %1263 = vmatpush1.msra.mxu0 0.0
    %1264 = vmatprep.subr.mxu0 0.0
    %1265 = vmatpush1.msra.mxu0 0.0
    %1266 = vmatprep.subr.mxu0 0.0
    %1267 = vmatpush1.msra.mxu0 0.0
    %1268 = vmatprep.subr.mxu0 0.0
    %1269 = vmatpush1.msra.mxu0 0.0
    %1270 = vmatprep.subr.mxu0 0.0
    %1271 = vmatpush1.msra.mxu0 0.0
    %1272 = vmatprep.subr.mxu0 0.0
    %1273 = vmatpush1.msra.mxu0 0.0
    %1274 = vmatprep.mubr.f32.mxu0 0.0
    %v1275 = vand.u32 %v918, 4294901760
    %v1276 = vsub.f32 %v918, %v1275
    %v1277 = vand.u32 %v1276, 4294901760
    %1278 = vmatmul.mubr.f32.gmra.mrb[0].mxu0 %v1277
    %v1279 = vpop.f32.mrb[0].mxu0
    %v1280 = vadd.f32 %v1199, %v1279
    %v1281 = vpop.f32.mrb[0].mxu0
    %1282 = vdwg.mxu0
    %1283 = vmatprep.subr.mxu0 0.0
    %v1284 = vand.u32 %v684, 4294901760
    %v1285 = vsub.f32 %v684, %v1284
    %v1286 = vand.u32 %v1285, 4294901760
    %1287 = vmatpush1.msra.mxu0 %v1286
    %1288 = vmatprep.subr.mxu0 0.0
    %v1289 = vand.u32 %v686, 4294901760
    %v1290 = vsub.f32 %v686, %v1289
    %v1291 = vand.u32 %v1290, 4294901760
    %1292 = vmatpush1.msra.mxu0 %v1291
    %1293 = vmatprep.subr.mxu0 0.0
    %v1294 = vand.u32 %v688, 4294901760
    %v1295 = vsub.f32 %v688, %v1294
    %v1296 = vand.u32 %v1295, 4294901760
    %1297 = vmatpush1.msra.mxu0 %v1296
    %1298 = vmatprep.subr.mxu0 0.0
    %v1299 = vand.u32 %v690, 4294901760
    %v1300 = vsub.f32 %v690, %v1299
    %v1301 = vand.u32 %v1300, 4294901760
    %1302 = vmatpush1.msra.mxu0 %v1301
    %1303 = vmatprep.subr.mxu0 0.0
    %v1304 = vand.u32 %v692, 4294901760
    %v1305 = vsub.f32 %v692, %v1304
    %v1306 = vand.u32 %v1305, 4294901760
    %1307 = vmatpush1.msra.mxu0 %v1306
    %1308 = vmatprep.subr.mxu0 0.0
    %v1309 = vand.u32 %v694, 4294901760
    %v1310 = vsub.f32 %v694, %v1309
    %v1311 = vand.u32 %v1310, 4294901760
    %1312 = vmatpush1.msra.mxu0 %v1311
    %1313 = vmatprep.subr.mxu0 0.0
    %v1314 = vand.u32 %v696, 4294901760
    %v1315 = vsub.f32 %v696, %v1314
    %v1316 = vand.u32 %v1315, 4294901760
    %1317 = vmatpush1.msra.mxu0 %v1316
    %1318 = vmatprep.subr.mxu0 0.0
    %v1319 = vand.u32 %v698, 4294901760
    %v1320 = vsub.f32 %v698, %v1319
    %v1321 = vand.u32 %v1320, 4294901760
    %1322 = vmatpush1.msra.mxu0 %v1321
    %1323 = vmatprep.subr.mxu0 0.0
    %1324 = vmatpush1.msra.mxu0 0.0
    %1325 = vmatprep.subr.mxu0 0.0
    %1326 = vmatpush1.msra.mxu0 0.0
    %1327 = vmatprep.subr.mxu0 0.0
    %1328 = vmatpush1.msra.mxu0 0.0
    %1329 = vmatprep.subr.mxu0 0.0
    %1330 = vmatpush1.msra.mxu0 0.0
    %1331 = vmatprep.subr.mxu0 0.0
    %1332 = vmatpush1.msra.mxu0 0.0
    %1333 = vmatprep.subr.mxu0 0.0
    %1334 = vmatpush1.msra.mxu0 0.0
    %1335 = vmatprep.subr.mxu0 0.0
    %1336 = vmatpush1.msra.mxu0 0.0
    %1337 = vmatprep.subr.mxu0 0.0
    %1338 = vmatpush1.msra.mxu0 0.0
    %1339 = vmatprep.subr.mxu0 0.0
    %1340 = vmatpush1.msra.mxu0 0.0
    %1341 = vmatprep.subr.mxu0 0.0
    %1342 = vmatpush1.msra.mxu0 0.0
    %1343 = vmatprep.subr.mxu0 0.0
    %1344 = vmatpush1.msra.mxu0 0.0
    %1345 = vmatprep.subr.mxu0 0.0
    %1346 = vmatpush1.msra.mxu0 0.0
    %1347 = vmatprep.subr.mxu0 0.0
    %1348 = vmatpush1.msra.mxu0 0.0
    %1349 = vmatprep.subr.mxu0 0.0
    %1350 = vmatpush1.msra.mxu0 0.0
    %1351 = vmatprep.subr.mxu0 0.0
    %1352 = vmatpush1.msra.mxu0 0.0
    %1353 = vmatprep.subr.mxu0 0.0
    %1354 = vmatpush1.msra.mxu0 0.0
    %1355 = vmatprep.subr.mxu0 0.0
    %1356 = vmatpush1.msra.mxu0 0.0
    %1357 = vmatprep.subr.mxu0 0.0
    %1358 = vmatpush1.msra.mxu0 0.0
    %1359 = vmatprep.subr.mxu0 0.0
    %1360 = vmatpush1.msra.mxu0 0.0
    %1361 = vmatprep.subr.mxu0 0.0
    %1362 = vmatpush1.msra.mxu0 0.0
    %1363 = vmatprep.subr.mxu0 0.0
    %1364 = vmatpush1.msra.mxu0 0.0
    %1365 = vmatprep.subr.mxu0 0.0
    %1366 = vmatpush1.msra.mxu0 0.0
    %1367 = vmatprep.subr.mxu0 0.0
    %1368 = vmatpush1.msra.mxu0 0.0
    %1369 = vmatprep.subr.mxu0 0.0
    %1370 = vmatpush1.msra.mxu0 0.0
    %1371 = vmatprep.mubr.f32.mxu0 0.0
    %v1372 = vand.u32 %v918, 4294901760
    %1373 = vmatmul.mubr.f32.gmra.mrb[0].mxu0 %v1372
    %v1374 = vpop.f32.mrb[0].mxu0
    %v1375 = vadd.f32 %v1280, %v1374
    %v1376 = vpop.f32.mrb[0].mxu0
    %1377 = vdwg.mxu0
    %1378 = vmatprep.subr.mxu0 0.0
    %v1379 = vand.u32 %v684, 4294901760
    %1380 = vmatpush1.msra.mxu0 %v1379
    %1381 = vmatprep.subr.mxu0 0.0
    %v1382 = vand.u32 %v686, 4294901760
    %1383 = vmatpush1.msra.mxu0 %v1382
    %1384 = vmatprep.subr.mxu0 0.0
    %v1385 = vand.u32 %v688, 4294901760
    %1386 = vmatpush1.msra.mxu0 %v1385
    %1387 = vmatprep.subr.mxu0 0.0
    %v1388 = vand.u32 %v690, 4294901760
    %1389 = vmatpush1.msra.mxu0 %v1388
    %1390 = vmatprep.subr.mxu0 0.0
    %v1391 = vand.u32 %v692, 4294901760
    %1392 = vmatpush1.msra.mxu0 %v1391
    %1393 = vmatprep.subr.mxu0 0.0
    %v1394 = vand.u32 %v694, 4294901760
    %1395 = vmatpush1.msra.mxu0 %v1394
    %1396 = vmatprep.subr.mxu0 0.0
    %v1397 = vand.u32 %v696, 4294901760
    %1398 = vmatpush1.msra.mxu0 %v1397
    %1399 = vmatprep.subr.mxu0 0.0
    %v1400 = vand.u32 %v698, 4294901760
    %1401 = vmatpush1.msra.mxu0 %v1400
    %1402 = vmatprep.subr.mxu0 0.0
    %1403 = vmatpush1.msra.mxu0 0.0
    %1404 = vmatprep.subr.mxu0 0.0
    %1405 = vmatpush1.msra.mxu0 0.0
    %1406 = vmatprep.subr.mxu0 0.0
    %1407 = vmatpush1.msra.mxu0 0.0
    %1408 = vmatprep.subr.mxu0 0.0
    %1409 = vmatpush1.msra.mxu0 0.0
    %1410 = vmatprep.subr.mxu0 0.0
    %1411 = vmatpush1.msra.mxu0 0.0
    %1412 = vmatprep.subr.mxu0 0.0
    %1413 = vmatpush1.msra.mxu0 0.0
    %1414 = vmatprep.subr.mxu0 0.0
    %1415 = vmatpush1.msra.mxu0 0.0
    %1416 = vmatprep.subr.mxu0 0.0
    %1417 = vmatpush1.msra.mxu0 0.0
    %1418 = vmatprep.subr.mxu0 0.0
    %1419 = vmatpush1.msra.mxu0 0.0
    %1420 = vmatprep.subr.mxu0 0.0
    %1421 = vmatpush1.msra.mxu0 0.0
    %1422 = vmatprep.subr.mxu0 0.0
    %1423 = vmatpush1.msra.mxu0 0.0
    %1424 = vmatprep.subr.mxu0 0.0
    %1425 = vmatpush1.msra.mxu0 0.0
    %1426 = vmatprep.subr.mxu0 0.0
    %1427 = vmatpush1.msra.mxu0 0.0
    %1428 = vmatprep.subr.mxu0 0.0
    %1429 = vmatpush1.msra.mxu0 0.0
    %1430 = vmatprep.subr.mxu0 0.0
    %1431 = vmatpush1.msra.mxu0 0.0
    %1432 = vmatprep.subr.mxu0 0.0
    %1433 = vmatpush1.msra.mxu0 0.0
    %1434 = vmatprep.subr.mxu0 0.0
    %1435 = vmatpush1.msra.mxu0 0.0
    %1436 = vmatprep.subr.mxu0 0.0
    %1437 = vmatpush1.msra.mxu0 0.0
    %1438 = vmatprep.subr.mxu0 0.0
    %1439 = vmatpush1.msra.mxu0 0.0
    %1440 = vmatprep.subr.mxu0 0.0
    %1441 = vmatpush1.msra.mxu0 0.0
    %1442 = vmatprep.subr.mxu0 0.0
    %1443 = vmatpush1.msra.mxu0 0.0
    %1444 = vmatprep.subr.mxu0 0.0
    %1445 = vmatpush1.msra.mxu0 0.0
    %1446 = vmatprep.subr.mxu0 0.0
    %1447 = vmatpush1.msra.mxu0 0.0
    %1448 = vmatprep.subr.mxu0 0.0
    %1449 = vmatpush1.msra.mxu0 0.0
    %1450 = vmatprep.mubr.f32.mxu0 0.0
    %v1451 = vand.u32 %v918, 4294901760
    %1452 = vmatmul.mubr.f32.gmra.mrb[0].mxu0 %v1451
    %v1453 = vpop.f32.mrb[0].mxu0
    %v1454 = vadd.f32 %v1375, %v1453
    %v1455 = vpop.f32.mrb[0].mxu0
    %1456 = vdwg.mxu0
    %v1457 = vmul.f32 %v1454, %v832
    %vm1458 = vcmask 156672
    %v1459 = vsel %vm1458, %v1457, -inf
    %1460 = vmax.xlane.f32.xlu0 %v1459
    %v1461 = vpop.xlane.xlu0 %1460
    %v1462 = vmax.f32 %v1461, 1e-30
    %v1463 = vrcp.pop %v1462
    %v1464 = vmul.f32 1.0, %v1463
    %v1465 = vmul.f32 %v1457, %v1464
    %v1466 = vadd.f32 %v488, %v491
    %v1467 = vlog2.pop %v1462
    %v1468 = vmul.f32 %v1467, 0.6931472
    %v1469 = vadd.f32 %v1466, %v1468
    %1471 = vrot.lane.b32.xlu0 %v523, 8
    %v1472 = vpop.permute.xlu0 %1471
    %1474 = vrot.lane.b32.xlu0 %v523, 16
    %v1475 = vpop.permute.xlu0 %1474
    %1477 = vrot.lane.b32.xlu0 %v523, 24
    %v1478 = vpop.permute.xlu0 %1477
    %1480 = vrot.lane.b32.xlu0 %v523, 32
    %v1481 = vpop.permute.xlu0 %1480
    %1483 = vrot.lane.b32.xlu0 %v523, 40
    %v1484 = vpop.permute.xlu0 %1483
    %1486 = vrot.lane.b32.xlu0 %v523, 48
    %v1487 = vpop.permute.xlu0 %1486
    %1489 = vrot.lane.b32.xlu0 %v523, 56
    %v1490 = vpop.permute.xlu0 %1489
    %v1492 = vsel %vm861, %v523, %v1472
    %v1493 = vsel %vm863, %v1492, %v1475
    %v1494 = vsel %vm865, %v1493, %v1478
    %v1495 = vsel %vm867, %v1494, %v1481
    %v1496 = vsel %vm869, %v1495, %v1484
    %v1497 = vsel %vm871, %v1496, %v1487
    %v1498 = vsel %vm873, %v1497, %v1490
    %1500 = vset.pattern.permute.xlu0 0
    %1501 = vperm.xlu0 %1500, %v525
    %v1502 = vpop.permute.xlu0 %1501
    %1504 = vset.pattern.permute.xlu0 1
    %1505 = vperm.xlu0 %1504, %v525
    %v1506 = vpop.permute.xlu0 %1505
    %1508 = vset.pattern.permute.xlu0 2
    %1509 = vperm.xlu0 %1508, %v525
    %v1510 = vpop.permute.xlu0 %1509
    %1512 = vset.pattern.permute.xlu0 3
    %1513 = vperm.xlu0 %1512, %v525
    %v1514 = vpop.permute.xlu0 %1513
    %1516 = vset.pattern.permute.xlu0 4
    %1517 = vperm.xlu0 %1516, %v525
    %v1518 = vpop.permute.xlu0 %1517
    %1520 = vset.pattern.permute.xlu0 5
    %1521 = vperm.xlu0 %1520, %v525
    %v1522 = vpop.permute.xlu0 %1521
    %1524 = vset.pattern.permute.xlu0 6
    %1525 = vperm.xlu0 %1524, %v525
    %v1526 = vpop.permute.xlu0 %1525
    %1528 = vset.pattern.permute.xlu0 7
    %1529 = vperm.xlu0 %1528, %v525
    %v1530 = vpop.permute.xlu0 %1529
    %v1532 = vsel %vm861, %v1502, %v1506
    %v1533 = vsel %vm863, %v1532, %v1510
    %v1534 = vsel %vm865, %v1533, %v1514
    %v1535 = vsel %vm867, %v1534, %v1518
    %v1536 = vsel %vm869, %v1535, %v1522
    %v1537 = vsel %vm871, %v1536, %v1526
    %v1538 = vsel %vm873, %v1537, %v1530
    %v1539 = vmul.f32 %v1498, %v1538
    %v1541 = vsel %vm916, %v1539, 0
    %1543 = vmatprep.subr.mxu0 0.0
    %v1544 = vand.u32 %v700, 4294901760
    %1545 = vmatpush1.msra.mxu0 %v1544
    %1546 = vmatprep.subr.mxu0 0.0
    %v1547 = vand.u32 %v702, 4294901760
    %1548 = vmatpush1.msra.mxu0 %v1547
    %1549 = vmatprep.subr.mxu0 0.0
    %v1550 = vand.u32 %v704, 4294901760
    %1551 = vmatpush1.msra.mxu0 %v1550
    %1552 = vmatprep.subr.mxu0 0.0
    %v1553 = vand.u32 %v706, 4294901760
    %1554 = vmatpush1.msra.mxu0 %v1553
    %1555 = vmatprep.subr.mxu0 0.0
    %v1556 = vand.u32 %v708, 4294901760
    %1557 = vmatpush1.msra.mxu0 %v1556
    %1558 = vmatprep.subr.mxu0 0.0
    %v1559 = vand.u32 %v710, 4294901760
    %1560 = vmatpush1.msra.mxu0 %v1559
    %1561 = vmatprep.subr.mxu0 0.0
    %v1562 = vand.u32 %v712, 4294901760
    %1563 = vmatpush1.msra.mxu0 %v1562
    %1564 = vmatprep.subr.mxu0 0.0
    %v1565 = vand.u32 %v714, 4294901760
    %1566 = vmatpush1.msra.mxu0 %v1565
    %1567 = vmatprep.subr.mxu0 0.0
    %1568 = vmatpush1.msra.mxu0 0.0
    %1569 = vmatprep.subr.mxu0 0.0
    %1570 = vmatpush1.msra.mxu0 0.0
    %1571 = vmatprep.subr.mxu0 0.0
    %1572 = vmatpush1.msra.mxu0 0.0
    %1573 = vmatprep.subr.mxu0 0.0
    %1574 = vmatpush1.msra.mxu0 0.0
    %1575 = vmatprep.subr.mxu0 0.0
    %1576 = vmatpush1.msra.mxu0 0.0
    %1577 = vmatprep.subr.mxu0 0.0
    %1578 = vmatpush1.msra.mxu0 0.0
    %1579 = vmatprep.subr.mxu0 0.0
    %1580 = vmatpush1.msra.mxu0 0.0
    %1581 = vmatprep.subr.mxu0 0.0
    %1582 = vmatpush1.msra.mxu0 0.0
    %1583 = vmatprep.subr.mxu0 0.0
    %1584 = vmatpush1.msra.mxu0 0.0
    %1585 = vmatprep.subr.mxu0 0.0
    %1586 = vmatpush1.msra.mxu0 0.0
    %1587 = vmatprep.subr.mxu0 0.0
    %1588 = vmatpush1.msra.mxu0 0.0
    %1589 = vmatprep.subr.mxu0 0.0
    %1590 = vmatpush1.msra.mxu0 0.0
    %1591 = vmatprep.subr.mxu0 0.0
    %1592 = vmatpush1.msra.mxu0 0.0
    %1593 = vmatprep.subr.mxu0 0.0
    %1594 = vmatpush1.msra.mxu0 0.0
    %1595 = vmatprep.subr.mxu0 0.0
    %1596 = vmatpush1.msra.mxu0 0.0
    %1597 = vmatprep.subr.mxu0 0.0
    %1598 = vmatpush1.msra.mxu0 0.0
    %1599 = vmatprep.subr.mxu0 0.0
    %1600 = vmatpush1.msra.mxu0 0.0
    %1601 = vmatprep.subr.mxu0 0.0
    %1602 = vmatpush1.msra.mxu0 0.0
    %1603 = vmatprep.subr.mxu0 0.0
    %1604 = vmatpush1.msra.mxu0 0.0
    %1605 = vmatprep.subr.mxu0 0.0
    %1606 = vmatpush1.msra.mxu0 0.0
    %1607 = vmatprep.subr.mxu0 0.0
    %1608 = vmatpush1.msra.mxu0 0.0
    %1609 = vmatprep.subr.mxu0 0.0
    %1610 = vmatpush1.msra.mxu0 0.0
    %1611 = vmatprep.subr.mxu0 0.0
    %1612 = vmatpush1.msra.mxu0 0.0
    %1613 = vmatprep.subr.mxu0 0.0
    %1614 = vmatpush1.msra.mxu0 0.0
    %1615 = vmatprep.mubr.f32.mxu0 0.0
    %v1616 = vand.u32 %v1541, 4294901760
    %v1617 = vsub.f32 %v1541, %v1616
    %v1618 = vand.u32 %v1617, 4294901760
    %v1619 = vsub.f32 %v1617, %v1618
    %v1620 = vand.u32 %v1619, 4294901760
    %1621 = vmatmul.mubr.f32.gmra.mrb[0].mxu0 %v1620
    %v1622 = vpop.f32.mrb[0].mxu0
    %v1623 = vadd.f32 0.0, %v1622
    %v1624 = vpop.f32.mrb[0].mxu0
    %1625 = vdwg.mxu0
    %1626 = vmatprep.subr.mxu0 0.0
    %v1627 = vand.u32 %v700, 4294901760
    %v1628 = vsub.f32 %v700, %v1627
    %v1629 = vand.u32 %v1628, 4294901760
    %v1630 = vsub.f32 %v1628, %v1629
    %v1631 = vand.u32 %v1630, 4294901760
    %1632 = vmatpush1.msra.mxu0 %v1631
    %1633 = vmatprep.subr.mxu0 0.0
    %v1634 = vand.u32 %v702, 4294901760
    %v1635 = vsub.f32 %v702, %v1634
    %v1636 = vand.u32 %v1635, 4294901760
    %v1637 = vsub.f32 %v1635, %v1636
    %v1638 = vand.u32 %v1637, 4294901760
    %1639 = vmatpush1.msra.mxu0 %v1638
    %1640 = vmatprep.subr.mxu0 0.0
    %v1641 = vand.u32 %v704, 4294901760
    %v1642 = vsub.f32 %v704, %v1641
    %v1643 = vand.u32 %v1642, 4294901760
    %v1644 = vsub.f32 %v1642, %v1643
    %v1645 = vand.u32 %v1644, 4294901760
    %1646 = vmatpush1.msra.mxu0 %v1645
    %1647 = vmatprep.subr.mxu0 0.0
    %v1648 = vand.u32 %v706, 4294901760
    %v1649 = vsub.f32 %v706, %v1648
    %v1650 = vand.u32 %v1649, 4294901760
    %v1651 = vsub.f32 %v1649, %v1650
    %v1652 = vand.u32 %v1651, 4294901760
    %1653 = vmatpush1.msra.mxu0 %v1652
    %1654 = vmatprep.subr.mxu0 0.0
    %v1655 = vand.u32 %v708, 4294901760
    %v1656 = vsub.f32 %v708, %v1655
    %v1657 = vand.u32 %v1656, 4294901760
    %v1658 = vsub.f32 %v1656, %v1657
    %v1659 = vand.u32 %v1658, 4294901760
    %1660 = vmatpush1.msra.mxu0 %v1659
    %1661 = vmatprep.subr.mxu0 0.0
    %v1662 = vand.u32 %v710, 4294901760
    %v1663 = vsub.f32 %v710, %v1662
    %v1664 = vand.u32 %v1663, 4294901760
    %v1665 = vsub.f32 %v1663, %v1664
    %v1666 = vand.u32 %v1665, 4294901760
    %1667 = vmatpush1.msra.mxu0 %v1666
    %1668 = vmatprep.subr.mxu0 0.0
    %v1669 = vand.u32 %v712, 4294901760
    %v1670 = vsub.f32 %v712, %v1669
    %v1671 = vand.u32 %v1670, 4294901760
    %v1672 = vsub.f32 %v1670, %v1671
    %v1673 = vand.u32 %v1672, 4294901760
    %1674 = vmatpush1.msra.mxu0 %v1673
    %1675 = vmatprep.subr.mxu0 0.0
    %v1676 = vand.u32 %v714, 4294901760
    %v1677 = vsub.f32 %v714, %v1676
    %v1678 = vand.u32 %v1677, 4294901760
    %v1679 = vsub.f32 %v1677, %v1678
    %v1680 = vand.u32 %v1679, 4294901760
    %1681 = vmatpush1.msra.mxu0 %v1680
    %1682 = vmatprep.subr.mxu0 0.0
    %1683 = vmatpush1.msra.mxu0 0.0
    %1684 = vmatprep.subr.mxu0 0.0
    %1685 = vmatpush1.msra.mxu0 0.0
    %1686 = vmatprep.subr.mxu0 0.0
    %1687 = vmatpush1.msra.mxu0 0.0
    %1688 = vmatprep.subr.mxu0 0.0
    %1689 = vmatpush1.msra.mxu0 0.0
    %1690 = vmatprep.subr.mxu0 0.0
    %1691 = vmatpush1.msra.mxu0 0.0
    %1692 = vmatprep.subr.mxu0 0.0
    %1693 = vmatpush1.msra.mxu0 0.0
    %1694 = vmatprep.subr.mxu0 0.0
    %1695 = vmatpush1.msra.mxu0 0.0
    %1696 = vmatprep.subr.mxu0 0.0
    %1697 = vmatpush1.msra.mxu0 0.0
    %1698 = vmatprep.subr.mxu0 0.0
    %1699 = vmatpush1.msra.mxu0 0.0
    %1700 = vmatprep.subr.mxu0 0.0
    %1701 = vmatpush1.msra.mxu0 0.0
    %1702 = vmatprep.subr.mxu0 0.0
    %1703 = vmatpush1.msra.mxu0 0.0
    %1704 = vmatprep.subr.mxu0 0.0
    %1705 = vmatpush1.msra.mxu0 0.0
    %1706 = vmatprep.subr.mxu0 0.0
    %1707 = vmatpush1.msra.mxu0 0.0
    %1708 = vmatprep.subr.mxu0 0.0
    %1709 = vmatpush1.msra.mxu0 0.0
    %1710 = vmatprep.subr.mxu0 0.0
    %1711 = vmatpush1.msra.mxu0 0.0
    %1712 = vmatprep.subr.mxu0 0.0
    %1713 = vmatpush1.msra.mxu0 0.0
    %1714 = vmatprep.subr.mxu0 0.0
    %1715 = vmatpush1.msra.mxu0 0.0
    %1716 = vmatprep.subr.mxu0 0.0
    %1717 = vmatpush1.msra.mxu0 0.0
    %1718 = vmatprep.subr.mxu0 0.0
    %1719 = vmatpush1.msra.mxu0 0.0
    %1720 = vmatprep.subr.mxu0 0.0
    %1721 = vmatpush1.msra.mxu0 0.0
    %1722 = vmatprep.subr.mxu0 0.0
    %1723 = vmatpush1.msra.mxu0 0.0
    %1724 = vmatprep.subr.mxu0 0.0
    %1725 = vmatpush1.msra.mxu0 0.0
    %1726 = vmatprep.subr.mxu0 0.0
    %1727 = vmatpush1.msra.mxu0 0.0
    %1728 = vmatprep.subr.mxu0 0.0
    %1729 = vmatpush1.msra.mxu0 0.0
    %1730 = vmatprep.mubr.f32.mxu0 0.0
    %v1731 = vand.u32 %v1541, 4294901760
    %1732 = vmatmul.mubr.f32.gmra.mrb[0].mxu0 %v1731
    %v1733 = vpop.f32.mrb[0].mxu0
    %v1734 = vadd.f32 %v1623, %v1733
    %v1735 = vpop.f32.mrb[0].mxu0
    %1736 = vdwg.mxu0
    %1737 = vmatprep.subr.mxu0 0.0
    %v1738 = vand.u32 %v700, 4294901760
    %v1739 = vsub.f32 %v700, %v1738
    %1740 = vmatpush1.msra.mxu0 %v1739
    %1741 = vmatprep.subr.mxu0 0.0
    %v1742 = vand.u32 %v702, 4294901760
    %v1743 = vsub.f32 %v702, %v1742
    %1744 = vmatpush1.msra.mxu0 %v1743
    %1745 = vmatprep.subr.mxu0 0.0
    %v1746 = vand.u32 %v704, 4294901760
    %v1747 = vsub.f32 %v704, %v1746
    %1748 = vmatpush1.msra.mxu0 %v1747
    %1749 = vmatprep.subr.mxu0 0.0
    %v1750 = vand.u32 %v706, 4294901760
    %v1751 = vsub.f32 %v706, %v1750
    %1752 = vmatpush1.msra.mxu0 %v1751
    %1753 = vmatprep.subr.mxu0 0.0
    %v1754 = vand.u32 %v708, 4294901760
    %v1755 = vsub.f32 %v708, %v1754
    %1756 = vmatpush1.msra.mxu0 %v1755
    %1757 = vmatprep.subr.mxu0 0.0
    %v1758 = vand.u32 %v710, 4294901760
    %v1759 = vsub.f32 %v710, %v1758
    %1760 = vmatpush1.msra.mxu0 %v1759
    %1761 = vmatprep.subr.mxu0 0.0
    %v1762 = vand.u32 %v712, 4294901760
    %v1763 = vsub.f32 %v712, %v1762
    %1764 = vmatpush1.msra.mxu0 %v1763
    %1765 = vmatprep.subr.mxu0 0.0
    %v1766 = vand.u32 %v714, 4294901760
    %v1767 = vsub.f32 %v714, %v1766
    %1768 = vmatpush1.msra.mxu0 %v1767
    %1769 = vmatprep.subr.mxu0 0.0
    %1770 = vmatpush1.msra.mxu0 0.0
    %1771 = vmatprep.subr.mxu0 0.0
    %1772 = vmatpush1.msra.mxu0 0.0
    %1773 = vmatprep.subr.mxu0 0.0
    %1774 = vmatpush1.msra.mxu0 0.0
    %1775 = vmatprep.subr.mxu0 0.0
    %1776 = vmatpush1.msra.mxu0 0.0
    %1777 = vmatprep.subr.mxu0 0.0
    %1778 = vmatpush1.msra.mxu0 0.0
    %1779 = vmatprep.subr.mxu0 0.0
    %1780 = vmatpush1.msra.mxu0 0.0
    %1781 = vmatprep.subr.mxu0 0.0
    %1782 = vmatpush1.msra.mxu0 0.0
    %1783 = vmatprep.subr.mxu0 0.0
    %1784 = vmatpush1.msra.mxu0 0.0
    %1785 = vmatprep.subr.mxu0 0.0
    %1786 = vmatpush1.msra.mxu0 0.0
    %1787 = vmatprep.subr.mxu0 0.0
    %1788 = vmatpush1.msra.mxu0 0.0
    %1789 = vmatprep.subr.mxu0 0.0
    %1790 = vmatpush1.msra.mxu0 0.0
    %1791 = vmatprep.subr.mxu0 0.0
    %1792 = vmatpush1.msra.mxu0 0.0
    %1793 = vmatprep.subr.mxu0 0.0
    %1794 = vmatpush1.msra.mxu0 0.0
    %1795 = vmatprep.subr.mxu0 0.0
    %1796 = vmatpush1.msra.mxu0 0.0
    %1797 = vmatprep.subr.mxu0 0.0
    %1798 = vmatpush1.msra.mxu0 0.0
    %1799 = vmatprep.subr.mxu0 0.0
    %1800 = vmatpush1.msra.mxu0 0.0
    %1801 = vmatprep.subr.mxu0 0.0
    %1802 = vmatpush1.msra.mxu0 0.0
    %1803 = vmatprep.subr.mxu0 0.0
    %1804 = vmatpush1.msra.mxu0 0.0
    %1805 = vmatprep.subr.mxu0 0.0
    %1806 = vmatpush1.msra.mxu0 0.0
    %1807 = vmatprep.subr.mxu0 0.0
    %1808 = vmatpush1.msra.mxu0 0.0
    %1809 = vmatprep.subr.mxu0 0.0
    %1810 = vmatpush1.msra.mxu0 0.0
    %1811 = vmatprep.subr.mxu0 0.0
    %1812 = vmatpush1.msra.mxu0 0.0
    %1813 = vmatprep.subr.mxu0 0.0
    %1814 = vmatpush1.msra.mxu0 0.0
    %1815 = vmatprep.subr.mxu0 0.0
    %1816 = vmatpush1.msra.mxu0 0.0
    %1817 = vmatprep.mubr.f32.mxu0 0.0
    %v1818 = vand.u32 %v1541, 4294901760
    %v1819 = vsub.f32 %v1541, %v1818
    %1820 = vmatmul.mubr.f32.gmra.mrb[0].mxu0 %v1819
    %v1821 = vpop.f32.mrb[0].mxu0
    %v1822 = vadd.f32 %v1734, %v1821
    %v1823 = vpop.f32.mrb[0].mxu0
    %1824 = vdwg.mxu0
    %1825 = vmatprep.subr.mxu0 0.0
    %v1826 = vand.u32 %v700, 4294901760
    %1827 = vmatpush1.msra.mxu0 %v1826
    %1828 = vmatprep.subr.mxu0 0.0
    %v1829 = vand.u32 %v702, 4294901760
    %1830 = vmatpush1.msra.mxu0 %v1829
    %1831 = vmatprep.subr.mxu0 0.0
    %v1832 = vand.u32 %v704, 4294901760
    %1833 = vmatpush1.msra.mxu0 %v1832
    %1834 = vmatprep.subr.mxu0 0.0
    %v1835 = vand.u32 %v706, 4294901760
    %1836 = vmatpush1.msra.mxu0 %v1835
    %1837 = vmatprep.subr.mxu0 0.0
    %v1838 = vand.u32 %v708, 4294901760
    %1839 = vmatpush1.msra.mxu0 %v1838
    %1840 = vmatprep.subr.mxu0 0.0
    %v1841 = vand.u32 %v710, 4294901760
    %1842 = vmatpush1.msra.mxu0 %v1841
    %1843 = vmatprep.subr.mxu0 0.0
    %v1844 = vand.u32 %v712, 4294901760
    %1845 = vmatpush1.msra.mxu0 %v1844
    %1846 = vmatprep.subr.mxu0 0.0
    %v1847 = vand.u32 %v714, 4294901760
    %1848 = vmatpush1.msra.mxu0 %v1847
    %1849 = vmatprep.subr.mxu0 0.0
    %1850 = vmatpush1.msra.mxu0 0.0
    %1851 = vmatprep.subr.mxu0 0.0
    %1852 = vmatpush1.msra.mxu0 0.0
    %1853 = vmatprep.subr.mxu0 0.0
    %1854 = vmatpush1.msra.mxu0 0.0
    %1855 = vmatprep.subr.mxu0 0.0
    %1856 = vmatpush1.msra.mxu0 0.0
    %1857 = vmatprep.subr.mxu0 0.0
    %1858 = vmatpush1.msra.mxu0 0.0
    %1859 = vmatprep.subr.mxu0 0.0
    %1860 = vmatpush1.msra.mxu0 0.0
    %1861 = vmatprep.subr.mxu0 0.0
    %1862 = vmatpush1.msra.mxu0 0.0
    %1863 = vmatprep.subr.mxu0 0.0
    %1864 = vmatpush1.msra.mxu0 0.0
    %1865 = vmatprep.subr.mxu0 0.0
    %1866 = vmatpush1.msra.mxu0 0.0
    %1867 = vmatprep.subr.mxu0 0.0
    %1868 = vmatpush1.msra.mxu0 0.0
    %1869 = vmatprep.subr.mxu0 0.0
    %1870 = vmatpush1.msra.mxu0 0.0
    %1871 = vmatprep.subr.mxu0 0.0
    %1872 = vmatpush1.msra.mxu0 0.0
    %1873 = vmatprep.subr.mxu0 0.0
    %1874 = vmatpush1.msra.mxu0 0.0
    %1875 = vmatprep.subr.mxu0 0.0
    %1876 = vmatpush1.msra.mxu0 0.0
    %1877 = vmatprep.subr.mxu0 0.0
    %1878 = vmatpush1.msra.mxu0 0.0
    %1879 = vmatprep.subr.mxu0 0.0
    %1880 = vmatpush1.msra.mxu0 0.0
    %1881 = vmatprep.subr.mxu0 0.0
    %1882 = vmatpush1.msra.mxu0 0.0
    %1883 = vmatprep.subr.mxu0 0.0
    %1884 = vmatpush1.msra.mxu0 0.0
    %1885 = vmatprep.subr.mxu0 0.0
    %1886 = vmatpush1.msra.mxu0 0.0
    %1887 = vmatprep.subr.mxu0 0.0
    %1888 = vmatpush1.msra.mxu0 0.0
    %1889 = vmatprep.subr.mxu0 0.0
    %1890 = vmatpush1.msra.mxu0 0.0
    %1891 = vmatprep.subr.mxu0 0.0
    %1892 = vmatpush1.msra.mxu0 0.0
    %1893 = vmatprep.subr.mxu0 0.0
    %1894 = vmatpush1.msra.mxu0 0.0
    %1895 = vmatprep.subr.mxu0 0.0
    %1896 = vmatpush1.msra.mxu0 0.0
    %1897 = vmatprep.mubr.f32.mxu0 0.0
    %v1898 = vand.u32 %v1541, 4294901760
    %v1899 = vsub.f32 %v1541, %v1898
    %v1900 = vand.u32 %v1899, 4294901760
    %1901 = vmatmul.mubr.f32.gmra.mrb[0].mxu0 %v1900
    %v1902 = vpop.f32.mrb[0].mxu0
    %v1903 = vadd.f32 %v1822, %v1902
    %v1904 = vpop.f32.mrb[0].mxu0
    %1905 = vdwg.mxu0
    %1906 = vmatprep.subr.mxu0 0.0
    %v1907 = vand.u32 %v700, 4294901760
    %v1908 = vsub.f32 %v700, %v1907
    %v1909 = vand.u32 %v1908, 4294901760
    %1910 = vmatpush1.msra.mxu0 %v1909
    %1911 = vmatprep.subr.mxu0 0.0
    %v1912 = vand.u32 %v702, 4294901760
    %v1913 = vsub.f32 %v702, %v1912
    %v1914 = vand.u32 %v1913, 4294901760
    %1915 = vmatpush1.msra.mxu0 %v1914
    %1916 = vmatprep.subr.mxu0 0.0
    %v1917 = vand.u32 %v704, 4294901760
    %v1918 = vsub.f32 %v704, %v1917
    %v1919 = vand.u32 %v1918, 4294901760
    %1920 = vmatpush1.msra.mxu0 %v1919
    %1921 = vmatprep.subr.mxu0 0.0
    %v1922 = vand.u32 %v706, 4294901760
    %v1923 = vsub.f32 %v706, %v1922
    %v1924 = vand.u32 %v1923, 4294901760
    %1925 = vmatpush1.msra.mxu0 %v1924
    %1926 = vmatprep.subr.mxu0 0.0
    %v1927 = vand.u32 %v708, 4294901760
    %v1928 = vsub.f32 %v708, %v1927
    %v1929 = vand.u32 %v1928, 4294901760
    %1930 = vmatpush1.msra.mxu0 %v1929
    %1931 = vmatprep.subr.mxu0 0.0
    %v1932 = vand.u32 %v710, 4294901760
    %v1933 = vsub.f32 %v710, %v1932
    %v1934 = vand.u32 %v1933, 4294901760
    %1935 = vmatpush1.msra.mxu0 %v1934
    %1936 = vmatprep.subr.mxu0 0.0
    %v1937 = vand.u32 %v712, 4294901760
    %v1938 = vsub.f32 %v712, %v1937
    %v1939 = vand.u32 %v1938, 4294901760
    %1940 = vmatpush1.msra.mxu0 %v1939
    %1941 = vmatprep.subr.mxu0 0.0
    %v1942 = vand.u32 %v714, 4294901760
    %v1943 = vsub.f32 %v714, %v1942
    %v1944 = vand.u32 %v1943, 4294901760
    %1945 = vmatpush1.msra.mxu0 %v1944
    %1946 = vmatprep.subr.mxu0 0.0
    %1947 = vmatpush1.msra.mxu0 0.0
    %1948 = vmatprep.subr.mxu0 0.0
    %1949 = vmatpush1.msra.mxu0 0.0
    %1950 = vmatprep.subr.mxu0 0.0
    %1951 = vmatpush1.msra.mxu0 0.0
    %1952 = vmatprep.subr.mxu0 0.0
    %1953 = vmatpush1.msra.mxu0 0.0
    %1954 = vmatprep.subr.mxu0 0.0
    %1955 = vmatpush1.msra.mxu0 0.0
    %1956 = vmatprep.subr.mxu0 0.0
    %1957 = vmatpush1.msra.mxu0 0.0
    %1958 = vmatprep.subr.mxu0 0.0
    %1959 = vmatpush1.msra.mxu0 0.0
    %1960 = vmatprep.subr.mxu0 0.0
    %1961 = vmatpush1.msra.mxu0 0.0
    %1962 = vmatprep.subr.mxu0 0.0
    %1963 = vmatpush1.msra.mxu0 0.0
    %1964 = vmatprep.subr.mxu0 0.0
    %1965 = vmatpush1.msra.mxu0 0.0
    %1966 = vmatprep.subr.mxu0 0.0
    %1967 = vmatpush1.msra.mxu0 0.0
    %1968 = vmatprep.subr.mxu0 0.0
    %1969 = vmatpush1.msra.mxu0 0.0
    %1970 = vmatprep.subr.mxu0 0.0
    %1971 = vmatpush1.msra.mxu0 0.0
    %1972 = vmatprep.subr.mxu0 0.0
    %1973 = vmatpush1.msra.mxu0 0.0
    %1974 = vmatprep.subr.mxu0 0.0
    %1975 = vmatpush1.msra.mxu0 0.0
    %1976 = vmatprep.subr.mxu0 0.0
    %1977 = vmatpush1.msra.mxu0 0.0
    %1978 = vmatprep.subr.mxu0 0.0
    %1979 = vmatpush1.msra.mxu0 0.0
    %1980 = vmatprep.subr.mxu0 0.0
    %1981 = vmatpush1.msra.mxu0 0.0
    %1982 = vmatprep.subr.mxu0 0.0
    %1983 = vmatpush1.msra.mxu0 0.0
    %1984 = vmatprep.subr.mxu0 0.0
    %1985 = vmatpush1.msra.mxu0 0.0
    %1986 = vmatprep.subr.mxu0 0.0
    %1987 = vmatpush1.msra.mxu0 0.0
    %1988 = vmatprep.subr.mxu0 0.0
    %1989 = vmatpush1.msra.mxu0 0.0
    %1990 = vmatprep.subr.mxu0 0.0
    %1991 = vmatpush1.msra.mxu0 0.0
    %1992 = vmatprep.subr.mxu0 0.0
    %1993 = vmatpush1.msra.mxu0 0.0
    %1994 = vmatprep.mubr.f32.mxu0 0.0
    %v1995 = vand.u32 %v1541, 4294901760
    %1996 = vmatmul.mubr.f32.gmra.mrb[0].mxu0 %v1995
    %v1997 = vpop.f32.mrb[0].mxu0
    %v1998 = vadd.f32 %v1903, %v1997
    %v1999 = vpop.f32.mrb[0].mxu0
    %2000 = vdwg.mxu0
    %2001 = vmatprep.subr.mxu0 0.0
    %v2002 = vand.u32 %v700, 4294901760
    %2003 = vmatpush1.msra.mxu0 %v2002
    %2004 = vmatprep.subr.mxu0 0.0
    %v2005 = vand.u32 %v702, 4294901760
    %2006 = vmatpush1.msra.mxu0 %v2005
    %2007 = vmatprep.subr.mxu0 0.0
    %v2008 = vand.u32 %v704, 4294901760
    %2009 = vmatpush1.msra.mxu0 %v2008
    %2010 = vmatprep.subr.mxu0 0.0
    %v2011 = vand.u32 %v706, 4294901760
    %2012 = vmatpush1.msra.mxu0 %v2011
    %2013 = vmatprep.subr.mxu0 0.0
    %v2014 = vand.u32 %v708, 4294901760
    %2015 = vmatpush1.msra.mxu0 %v2014
    %2016 = vmatprep.subr.mxu0 0.0
    %v2017 = vand.u32 %v710, 4294901760
    %2018 = vmatpush1.msra.mxu0 %v2017
    %2019 = vmatprep.subr.mxu0 0.0
    %v2020 = vand.u32 %v712, 4294901760
    %2021 = vmatpush1.msra.mxu0 %v2020
    %2022 = vmatprep.subr.mxu0 0.0
    %v2023 = vand.u32 %v714, 4294901760
    %2024 = vmatpush1.msra.mxu0 %v2023
    %2025 = vmatprep.subr.mxu0 0.0
    %2026 = vmatpush1.msra.mxu0 0.0
    %2027 = vmatprep.subr.mxu0 0.0
    %2028 = vmatpush1.msra.mxu0 0.0
    %2029 = vmatprep.subr.mxu0 0.0
    %2030 = vmatpush1.msra.mxu0 0.0
    %2031 = vmatprep.subr.mxu0 0.0
    %2032 = vmatpush1.msra.mxu0 0.0
    %2033 = vmatprep.subr.mxu0 0.0
    %2034 = vmatpush1.msra.mxu0 0.0
    %2035 = vmatprep.subr.mxu0 0.0
    %2036 = vmatpush1.msra.mxu0 0.0
    %2037 = vmatprep.subr.mxu0 0.0
    %2038 = vmatpush1.msra.mxu0 0.0
    %2039 = vmatprep.subr.mxu0 0.0
    %2040 = vmatpush1.msra.mxu0 0.0
    %2041 = vmatprep.subr.mxu0 0.0
    %2042 = vmatpush1.msra.mxu0 0.0
    %2043 = vmatprep.subr.mxu0 0.0
    %2044 = vmatpush1.msra.mxu0 0.0
    %2045 = vmatprep.subr.mxu0 0.0
    %2046 = vmatpush1.msra.mxu0 0.0
    %2047 = vmatprep.subr.mxu0 0.0
    %2048 = vmatpush1.msra.mxu0 0.0
    %2049 = vmatprep.subr.mxu0 0.0
    %2050 = vmatpush1.msra.mxu0 0.0
    %2051 = vmatprep.subr.mxu0 0.0
    %2052 = vmatpush1.msra.mxu0 0.0
    %2053 = vmatprep.subr.mxu0 0.0
    %2054 = vmatpush1.msra.mxu0 0.0
    %2055 = vmatprep.subr.mxu0 0.0
    %2056 = vmatpush1.msra.mxu0 0.0
    %2057 = vmatprep.subr.mxu0 0.0
    %2058 = vmatpush1.msra.mxu0 0.0
    %2059 = vmatprep.subr.mxu0 0.0
    %2060 = vmatpush1.msra.mxu0 0.0
    %2061 = vmatprep.subr.mxu0 0.0
    %2062 = vmatpush1.msra.mxu0 0.0
    %2063 = vmatprep.subr.mxu0 0.0
    %2064 = vmatpush1.msra.mxu0 0.0
    %2065 = vmatprep.subr.mxu0 0.0
    %2066 = vmatpush1.msra.mxu0 0.0
    %2067 = vmatprep.subr.mxu0 0.0
    %2068 = vmatpush1.msra.mxu0 0.0
    %2069 = vmatprep.subr.mxu0 0.0
    %2070 = vmatpush1.msra.mxu0 0.0
    %2071 = vmatprep.subr.mxu0 0.0
    %2072 = vmatpush1.msra.mxu0 0.0
    %2073 = vmatprep.mubr.f32.mxu0 0.0
    %v2074 = vand.u32 %v1541, 4294901760
    %2075 = vmatmul.mubr.f32.gmra.mrb[0].mxu0 %v2074
    %v2076 = vpop.f32.mrb[0].mxu0
    %v2077 = vadd.f32 %v1998, %v2076
    %v2078 = vpop.f32.mrb[0].mxu0
    %2079 = vdwg.mxu0
    %v2080 = vmul.f32 %v2077, %v834
    %v2081 = vsel %vm1458, %v2080, -inf
    %2082 = vmax.xlane.f32.xlu0 %v2081
    %v2083 = vpop.xlane.xlu0 %2082
    %v2084 = vmax.f32 %v2083, 1e-30
    %v2085 = vrcp.pop %v2084
    %v2086 = vmul.f32 1.0, %v2085
    %v2087 = vmul.f32 %v2080, %v2086
    %v2088 = vadd.f32 %v494, %v497
    %v2089 = vlog2.pop %v2084
    %v2090 = vmul.f32 %v2089, 0.6931472
    %v2091 = vadd.f32 %v2088, %v2090
    %2093 = vrot.lane.b32.xlu0 %v527, 8
    %v2094 = vpop.permute.xlu0 %2093
    %2096 = vrot.lane.b32.xlu0 %v527, 16
    %v2097 = vpop.permute.xlu0 %2096
    %2099 = vrot.lane.b32.xlu0 %v527, 24
    %v2100 = vpop.permute.xlu0 %2099
    %2102 = vrot.lane.b32.xlu0 %v527, 32
    %v2103 = vpop.permute.xlu0 %2102
    %2105 = vrot.lane.b32.xlu0 %v527, 40
    %v2106 = vpop.permute.xlu0 %2105
    %2108 = vrot.lane.b32.xlu0 %v527, 48
    %v2109 = vpop.permute.xlu0 %2108
    %2111 = vrot.lane.b32.xlu0 %v527, 56
    %v2112 = vpop.permute.xlu0 %2111
    %v2114 = vsel %vm861, %v527, %v2094
    %v2115 = vsel %vm863, %v2114, %v2097
    %v2116 = vsel %vm865, %v2115, %v2100
    %v2117 = vsel %vm867, %v2116, %v2103
    %v2118 = vsel %vm869, %v2117, %v2106
    %v2119 = vsel %vm871, %v2118, %v2109
    %v2120 = vsel %vm873, %v2119, %v2112
    %2122 = vset.pattern.permute.xlu0 0
    %2123 = vperm.xlu0 %2122, %v529
    %v2124 = vpop.permute.xlu0 %2123
    %2126 = vset.pattern.permute.xlu0 1
    %2127 = vperm.xlu0 %2126, %v529
    %v2128 = vpop.permute.xlu0 %2127
    %2130 = vset.pattern.permute.xlu0 2
    %2131 = vperm.xlu0 %2130, %v529
    %v2132 = vpop.permute.xlu0 %2131
    %2134 = vset.pattern.permute.xlu0 3
    %2135 = vperm.xlu0 %2134, %v529
    %v2136 = vpop.permute.xlu0 %2135
    %2138 = vset.pattern.permute.xlu0 4
    %2139 = vperm.xlu0 %2138, %v529
    %v2140 = vpop.permute.xlu0 %2139
    %2142 = vset.pattern.permute.xlu0 5
    %2143 = vperm.xlu0 %2142, %v529
    %v2144 = vpop.permute.xlu0 %2143
    %2146 = vset.pattern.permute.xlu0 6
    %2147 = vperm.xlu0 %2146, %v529
    %v2148 = vpop.permute.xlu0 %2147
    %2150 = vset.pattern.permute.xlu0 7
    %2151 = vperm.xlu0 %2150, %v529
    %v2152 = vpop.permute.xlu0 %2151
    %v2154 = vsel %vm861, %v2124, %v2128
    %v2155 = vsel %vm863, %v2154, %v2132
    %v2156 = vsel %vm865, %v2155, %v2136
    %v2157 = vsel %vm867, %v2156, %v2140
    %v2158 = vsel %vm869, %v2157, %v2144
    %v2159 = vsel %vm871, %v2158, %v2148
    %v2160 = vsel %vm873, %v2159, %v2152
    %v2161 = vmul.f32 %v2120, %v2160
    %v2163 = vsel %vm916, %v2161, 0
    %2165 = vmatprep.subr.mxu0 0.0
    %v2166 = vand.u32 %v716, 4294901760
    %2167 = vmatpush1.msra.mxu0 %v2166
    %2168 = vmatprep.subr.mxu0 0.0
    %v2169 = vand.u32 %v718, 4294901760
    %2170 = vmatpush1.msra.mxu0 %v2169
    %2171 = vmatprep.subr.mxu0 0.0
    %v2172 = vand.u32 %v720, 4294901760
    %2173 = vmatpush1.msra.mxu0 %v2172
    %2174 = vmatprep.subr.mxu0 0.0
    %v2175 = vand.u32 %v722, 4294901760
    %2176 = vmatpush1.msra.mxu0 %v2175
    %2177 = vmatprep.subr.mxu0 0.0
    %v2178 = vand.u32 %v724, 4294901760
    %2179 = vmatpush1.msra.mxu0 %v2178
    %2180 = vmatprep.subr.mxu0 0.0
    %v2181 = vand.u32 %v726, 4294901760
    %2182 = vmatpush1.msra.mxu0 %v2181
    %2183 = vmatprep.subr.mxu0 0.0
    %v2184 = vand.u32 %v728, 4294901760
    %2185 = vmatpush1.msra.mxu0 %v2184
    %2186 = vmatprep.subr.mxu0 0.0
    %v2187 = vand.u32 %v730, 4294901760
    %2188 = vmatpush1.msra.mxu0 %v2187
    %2189 = vmatprep.subr.mxu0 0.0
    %2190 = vmatpush1.msra.mxu0 0.0
    %2191 = vmatprep.subr.mxu0 0.0
    %2192 = vmatpush1.msra.mxu0 0.0
    %2193 = vmatprep.subr.mxu0 0.0
    %2194 = vmatpush1.msra.mxu0 0.0
    %2195 = vmatprep.subr.mxu0 0.0
    %2196 = vmatpush1.msra.mxu0 0.0
    %2197 = vmatprep.subr.mxu0 0.0
    %2198 = vmatpush1.msra.mxu0 0.0
    %2199 = vmatprep.subr.mxu0 0.0
    %2200 = vmatpush1.msra.mxu0 0.0
    %2201 = vmatprep.subr.mxu0 0.0
    %2202 = vmatpush1.msra.mxu0 0.0
    %2203 = vmatprep.subr.mxu0 0.0
    %2204 = vmatpush1.msra.mxu0 0.0
    %2205 = vmatprep.subr.mxu0 0.0
    %2206 = vmatpush1.msra.mxu0 0.0
    %2207 = vmatprep.subr.mxu0 0.0
    %2208 = vmatpush1.msra.mxu0 0.0
    %2209 = vmatprep.subr.mxu0 0.0
    %2210 = vmatpush1.msra.mxu0 0.0
    %2211 = vmatprep.subr.mxu0 0.0
    %2212 = vmatpush1.msra.mxu0 0.0
    %2213 = vmatprep.subr.mxu0 0.0
    %2214 = vmatpush1.msra.mxu0 0.0
    %2215 = vmatprep.subr.mxu0 0.0
    %2216 = vmatpush1.msra.mxu0 0.0
    %2217 = vmatprep.subr.mxu0 0.0
    %2218 = vmatpush1.msra.mxu0 0.0
    %2219 = vmatprep.subr.mxu0 0.0
    %2220 = vmatpush1.msra.mxu0 0.0
    %2221 = vmatprep.subr.mxu0 0.0
    %2222 = vmatpush1.msra.mxu0 0.0
    %2223 = vmatprep.subr.mxu0 0.0
    %2224 = vmatpush1.msra.mxu0 0.0
    %2225 = vmatprep.subr.mxu0 0.0
    %2226 = vmatpush1.msra.mxu0 0.0
    %2227 = vmatprep.subr.mxu0 0.0
    %2228 = vmatpush1.msra.mxu0 0.0
    %2229 = vmatprep.subr.mxu0 0.0
    %2230 = vmatpush1.msra.mxu0 0.0
    %2231 = vmatprep.subr.mxu0 0.0
    %2232 = vmatpush1.msra.mxu0 0.0
    %2233 = vmatprep.subr.mxu0 0.0
    %2234 = vmatpush1.msra.mxu0 0.0
    %2235 = vmatprep.subr.mxu0 0.0
    %2236 = vmatpush1.msra.mxu0 0.0
    %2237 = vmatprep.mubr.f32.mxu0 0.0
    %v2238 = vand.u32 %v2163, 4294901760
    %v2239 = vsub.f32 %v2163, %v2238
    %v2240 = vand.u32 %v2239, 4294901760
    %v2241 = vsub.f32 %v2239, %v2240
    %v2242 = vand.u32 %v2241, 4294901760
    %2243 = vmatmul.mubr.f32.gmra.mrb[0].mxu0 %v2242
    %v2244 = vpop.f32.mrb[0].mxu0
    %v2245 = vadd.f32 0.0, %v2244
    %v2246 = vpop.f32.mrb[0].mxu0
    %2247 = vdwg.mxu0
    %2248 = vmatprep.subr.mxu0 0.0
    %v2249 = vand.u32 %v716, 4294901760
    %v2250 = vsub.f32 %v716, %v2249
    %v2251 = vand.u32 %v2250, 4294901760
    %v2252 = vsub.f32 %v2250, %v2251
    %v2253 = vand.u32 %v2252, 4294901760
    %2254 = vmatpush1.msra.mxu0 %v2253
    %2255 = vmatprep.subr.mxu0 0.0
    %v2256 = vand.u32 %v718, 4294901760
    %v2257 = vsub.f32 %v718, %v2256
    %v2258 = vand.u32 %v2257, 4294901760
    %v2259 = vsub.f32 %v2257, %v2258
    %v2260 = vand.u32 %v2259, 4294901760
    %2261 = vmatpush1.msra.mxu0 %v2260
    %2262 = vmatprep.subr.mxu0 0.0
    %v2263 = vand.u32 %v720, 4294901760
    %v2264 = vsub.f32 %v720, %v2263
    %v2265 = vand.u32 %v2264, 4294901760
    %v2266 = vsub.f32 %v2264, %v2265
    %v2267 = vand.u32 %v2266, 4294901760
    %2268 = vmatpush1.msra.mxu0 %v2267
    %2269 = vmatprep.subr.mxu0 0.0
    %v2270 = vand.u32 %v722, 4294901760
    %v2271 = vsub.f32 %v722, %v2270
    %v2272 = vand.u32 %v2271, 4294901760
    %v2273 = vsub.f32 %v2271, %v2272
    %v2274 = vand.u32 %v2273, 4294901760
    %2275 = vmatpush1.msra.mxu0 %v2274
    %2276 = vmatprep.subr.mxu0 0.0
    %v2277 = vand.u32 %v724, 4294901760
    %v2278 = vsub.f32 %v724, %v2277
    %v2279 = vand.u32 %v2278, 4294901760
    %v2280 = vsub.f32 %v2278, %v2279
    %v2281 = vand.u32 %v2280, 4294901760
    %2282 = vmatpush1.msra.mxu0 %v2281
    %2283 = vmatprep.subr.mxu0 0.0
    %v2284 = vand.u32 %v726, 4294901760
    %v2285 = vsub.f32 %v726, %v2284
    %v2286 = vand.u32 %v2285, 4294901760
    %v2287 = vsub.f32 %v2285, %v2286
    %v2288 = vand.u32 %v2287, 4294901760
    %2289 = vmatpush1.msra.mxu0 %v2288
    %2290 = vmatprep.subr.mxu0 0.0
    %v2291 = vand.u32 %v728, 4294901760
    %v2292 = vsub.f32 %v728, %v2291
    %v2293 = vand.u32 %v2292, 4294901760
    %v2294 = vsub.f32 %v2292, %v2293
    %v2295 = vand.u32 %v2294, 4294901760
    %2296 = vmatpush1.msra.mxu0 %v2295
    %2297 = vmatprep.subr.mxu0 0.0
    %v2298 = vand.u32 %v730, 4294901760
    %v2299 = vsub.f32 %v730, %v2298
    %v2300 = vand.u32 %v2299, 4294901760
    %v2301 = vsub.f32 %v2299, %v2300
    %v2302 = vand.u32 %v2301, 4294901760
    %2303 = vmatpush1.msra.mxu0 %v2302
    %2304 = vmatprep.subr.mxu0 0.0
    %2305 = vmatpush1.msra.mxu0 0.0
    %2306 = vmatprep.subr.mxu0 0.0
    %2307 = vmatpush1.msra.mxu0 0.0
    %2308 = vmatprep.subr.mxu0 0.0
    %2309 = vmatpush1.msra.mxu0 0.0
    %2310 = vmatprep.subr.mxu0 0.0
    %2311 = vmatpush1.msra.mxu0 0.0
    %2312 = vmatprep.subr.mxu0 0.0
    %2313 = vmatpush1.msra.mxu0 0.0
    %2314 = vmatprep.subr.mxu0 0.0
    %2315 = vmatpush1.msra.mxu0 0.0
    %2316 = vmatprep.subr.mxu0 0.0
    %2317 = vmatpush1.msra.mxu0 0.0
    %2318 = vmatprep.subr.mxu0 0.0
    %2319 = vmatpush1.msra.mxu0 0.0
    %2320 = vmatprep.subr.mxu0 0.0
    %2321 = vmatpush1.msra.mxu0 0.0
    %2322 = vmatprep.subr.mxu0 0.0
    %2323 = vmatpush1.msra.mxu0 0.0
    %2324 = vmatprep.subr.mxu0 0.0
    %2325 = vmatpush1.msra.mxu0 0.0
    %2326 = vmatprep.subr.mxu0 0.0
    %2327 = vmatpush1.msra.mxu0 0.0
    %2328 = vmatprep.subr.mxu0 0.0
    %2329 = vmatpush1.msra.mxu0 0.0
    %2330 = vmatprep.subr.mxu0 0.0
    %2331 = vmatpush1.msra.mxu0 0.0
    %2332 = vmatprep.subr.mxu0 0.0
    %2333 = vmatpush1.msra.mxu0 0.0
    %2334 = vmatprep.subr.mxu0 0.0
    %2335 = vmatpush1.msra.mxu0 0.0
    %2336 = vmatprep.subr.mxu0 0.0
    %2337 = vmatpush1.msra.mxu0 0.0
    %2338 = vmatprep.subr.mxu0 0.0
    %2339 = vmatpush1.msra.mxu0 0.0
    %2340 = vmatprep.subr.mxu0 0.0
    %2341 = vmatpush1.msra.mxu0 0.0
    %2342 = vmatprep.subr.mxu0 0.0
    %2343 = vmatpush1.msra.mxu0 0.0
    %2344 = vmatprep.subr.mxu0 0.0
    %2345 = vmatpush1.msra.mxu0 0.0
    %2346 = vmatprep.subr.mxu0 0.0
    %2347 = vmatpush1.msra.mxu0 0.0
    %2348 = vmatprep.subr.mxu0 0.0
    %2349 = vmatpush1.msra.mxu0 0.0
    %2350 = vmatprep.subr.mxu0 0.0
    %2351 = vmatpush1.msra.mxu0 0.0
    %2352 = vmatprep.mubr.f32.mxu0 0.0
    %v2353 = vand.u32 %v2163, 4294901760
    %2354 = vmatmul.mubr.f32.gmra.mrb[0].mxu0 %v2353
    %v2355 = vpop.f32.mrb[0].mxu0
    %v2356 = vadd.f32 %v2245, %v2355
    %v2357 = vpop.f32.mrb[0].mxu0
    %2358 = vdwg.mxu0
    %2359 = vmatprep.subr.mxu0 0.0
    %v2360 = vand.u32 %v716, 4294901760
    %v2361 = vsub.f32 %v716, %v2360
    %2362 = vmatpush1.msra.mxu0 %v2361
    %2363 = vmatprep.subr.mxu0 0.0
    %v2364 = vand.u32 %v718, 4294901760
    %v2365 = vsub.f32 %v718, %v2364
    %2366 = vmatpush1.msra.mxu0 %v2365
    %2367 = vmatprep.subr.mxu0 0.0
    %v2368 = vand.u32 %v720, 4294901760
    %v2369 = vsub.f32 %v720, %v2368
    %2370 = vmatpush1.msra.mxu0 %v2369
    %2371 = vmatprep.subr.mxu0 0.0
    %v2372 = vand.u32 %v722, 4294901760
    %v2373 = vsub.f32 %v722, %v2372
    %2374 = vmatpush1.msra.mxu0 %v2373
    %2375 = vmatprep.subr.mxu0 0.0
    %v2376 = vand.u32 %v724, 4294901760
    %v2377 = vsub.f32 %v724, %v2376
    %2378 = vmatpush1.msra.mxu0 %v2377
    %2379 = vmatprep.subr.mxu0 0.0
    %v2380 = vand.u32 %v726, 4294901760
    %v2381 = vsub.f32 %v726, %v2380
    %2382 = vmatpush1.msra.mxu0 %v2381
    %2383 = vmatprep.subr.mxu0 0.0
    %v2384 = vand.u32 %v728, 4294901760
    %v2385 = vsub.f32 %v728, %v2384
    %2386 = vmatpush1.msra.mxu0 %v2385
    %2387 = vmatprep.subr.mxu0 0.0
    %v2388 = vand.u32 %v730, 4294901760
    %v2389 = vsub.f32 %v730, %v2388
    %2390 = vmatpush1.msra.mxu0 %v2389
    %2391 = vmatprep.subr.mxu0 0.0
    %2392 = vmatpush1.msra.mxu0 0.0
    %2393 = vmatprep.subr.mxu0 0.0
    %2394 = vmatpush1.msra.mxu0 0.0
    %2395 = vmatprep.subr.mxu0 0.0
    %2396 = vmatpush1.msra.mxu0 0.0
    %2397 = vmatprep.subr.mxu0 0.0
    %2398 = vmatpush1.msra.mxu0 0.0
    %2399 = vmatprep.subr.mxu0 0.0
    %2400 = vmatpush1.msra.mxu0 0.0
    %2401 = vmatprep.subr.mxu0 0.0
    %2402 = vmatpush1.msra.mxu0 0.0
    %2403 = vmatprep.subr.mxu0 0.0
    %2404 = vmatpush1.msra.mxu0 0.0
    %2405 = vmatprep.subr.mxu0 0.0
    %2406 = vmatpush1.msra.mxu0 0.0
    %2407 = vmatprep.subr.mxu0 0.0
    %2408 = vmatpush1.msra.mxu0 0.0
    %2409 = vmatprep.subr.mxu0 0.0
    %2410 = vmatpush1.msra.mxu0 0.0
    %2411 = vmatprep.subr.mxu0 0.0
    %2412 = vmatpush1.msra.mxu0 0.0
    %2413 = vmatprep.subr.mxu0 0.0
    %2414 = vmatpush1.msra.mxu0 0.0
    %2415 = vmatprep.subr.mxu0 0.0
    %2416 = vmatpush1.msra.mxu0 0.0
    %2417 = vmatprep.subr.mxu0 0.0
    %2418 = vmatpush1.msra.mxu0 0.0
    %2419 = vmatprep.subr.mxu0 0.0
    %2420 = vmatpush1.msra.mxu0 0.0
    %2421 = vmatprep.subr.mxu0 0.0
    %2422 = vmatpush1.msra.mxu0 0.0
    %2423 = vmatprep.subr.mxu0 0.0
    %2424 = vmatpush1.msra.mxu0 0.0
    %2425 = vmatprep.subr.mxu0 0.0
    %2426 = vmatpush1.msra.mxu0 0.0
    %2427 = vmatprep.subr.mxu0 0.0
    %2428 = vmatpush1.msra.mxu0 0.0
    %2429 = vmatprep.subr.mxu0 0.0
    %2430 = vmatpush1.msra.mxu0 0.0
    %2431 = vmatprep.subr.mxu0 0.0
    %2432 = vmatpush1.msra.mxu0 0.0
    %2433 = vmatprep.subr.mxu0 0.0
    %2434 = vmatpush1.msra.mxu0 0.0
    %2435 = vmatprep.subr.mxu0 0.0
    %2436 = vmatpush1.msra.mxu0 0.0
    %2437 = vmatprep.subr.mxu0 0.0
    %2438 = vmatpush1.msra.mxu0 0.0
    %2439 = vmatprep.mubr.f32.mxu0 0.0
    %v2440 = vand.u32 %v2163, 4294901760
    %v2441 = vsub.f32 %v2163, %v2440
    %2442 = vmatmul.mubr.f32.gmra.mrb[0].mxu0 %v2441
    %v2443 = vpop.f32.mrb[0].mxu0
    %v2444 = vadd.f32 %v2356, %v2443
    %v2445 = vpop.f32.mrb[0].mxu0
    %2446 = vdwg.mxu0
    %2447 = vmatprep.subr.mxu0 0.0
    %v2448 = vand.u32 %v716, 4294901760
    %2449 = vmatpush1.msra.mxu0 %v2448
    %2450 = vmatprep.subr.mxu0 0.0
    %v2451 = vand.u32 %v718, 4294901760
    %2452 = vmatpush1.msra.mxu0 %v2451
    %2453 = vmatprep.subr.mxu0 0.0
    %v2454 = vand.u32 %v720, 4294901760
    %2455 = vmatpush1.msra.mxu0 %v2454
    %2456 = vmatprep.subr.mxu0 0.0
    %v2457 = vand.u32 %v722, 4294901760
    %2458 = vmatpush1.msra.mxu0 %v2457
    %2459 = vmatprep.subr.mxu0 0.0
    %v2460 = vand.u32 %v724, 4294901760
    %2461 = vmatpush1.msra.mxu0 %v2460
    %2462 = vmatprep.subr.mxu0 0.0
    %v2463 = vand.u32 %v726, 4294901760
    %2464 = vmatpush1.msra.mxu0 %v2463
    %2465 = vmatprep.subr.mxu0 0.0
    %v2466 = vand.u32 %v728, 4294901760
    %2467 = vmatpush1.msra.mxu0 %v2466
    %2468 = vmatprep.subr.mxu0 0.0
    %v2469 = vand.u32 %v730, 4294901760
    %2470 = vmatpush1.msra.mxu0 %v2469
    %2471 = vmatprep.subr.mxu0 0.0
    %2472 = vmatpush1.msra.mxu0 0.0
    %2473 = vmatprep.subr.mxu0 0.0
    %2474 = vmatpush1.msra.mxu0 0.0
    %2475 = vmatprep.subr.mxu0 0.0
    %2476 = vmatpush1.msra.mxu0 0.0
    %2477 = vmatprep.subr.mxu0 0.0
    %2478 = vmatpush1.msra.mxu0 0.0
    %2479 = vmatprep.subr.mxu0 0.0
    %2480 = vmatpush1.msra.mxu0 0.0
    %2481 = vmatprep.subr.mxu0 0.0
    %2482 = vmatpush1.msra.mxu0 0.0
    %2483 = vmatprep.subr.mxu0 0.0
    %2484 = vmatpush1.msra.mxu0 0.0
    %2485 = vmatprep.subr.mxu0 0.0
    %2486 = vmatpush1.msra.mxu0 0.0
    %2487 = vmatprep.subr.mxu0 0.0
    %2488 = vmatpush1.msra.mxu0 0.0
    %2489 = vmatprep.subr.mxu0 0.0
    %2490 = vmatpush1.msra.mxu0 0.0
    %2491 = vmatprep.subr.mxu0 0.0
    %2492 = vmatpush1.msra.mxu0 0.0
    %2493 = vmatprep.subr.mxu0 0.0
    %2494 = vmatpush1.msra.mxu0 0.0
    %2495 = vmatprep.subr.mxu0 0.0
    %2496 = vmatpush1.msra.mxu0 0.0
    %2497 = vmatprep.subr.mxu0 0.0
    %2498 = vmatpush1.msra.mxu0 0.0
    %2499 = vmatprep.subr.mxu0 0.0
    %2500 = vmatpush1.msra.mxu0 0.0
    %2501 = vmatprep.subr.mxu0 0.0
    %2502 = vmatpush1.msra.mxu0 0.0
    %2503 = vmatprep.subr.mxu0 0.0
    %2504 = vmatpush1.msra.mxu0 0.0
    %2505 = vmatprep.subr.mxu0 0.0
    %2506 = vmatpush1.msra.mxu0 0.0
    %2507 = vmatprep.subr.mxu0 0.0
    %2508 = vmatpush1.msra.mxu0 0.0
    %2509 = vmatprep.subr.mxu0 0.0
    %2510 = vmatpush1.msra.mxu0 0.0
    %2511 = vmatprep.subr.mxu0 0.0
    %2512 = vmatpush1.msra.mxu0 0.0
    %2513 = vmatprep.subr.mxu0 0.0
    %2514 = vmatpush1.msra.mxu0 0.0
    %2515 = vmatprep.subr.mxu0 0.0
    %2516 = vmatpush1.msra.mxu0 0.0
    %2517 = vmatprep.subr.mxu0 0.0
    %2518 = vmatpush1.msra.mxu0 0.0
    %2519 = vmatprep.mubr.f32.mxu0 0.0
    %v2520 = vand.u32 %v2163, 4294901760
    %v2521 = vsub.f32 %v2163, %v2520
    %v2522 = vand.u32 %v2521, 4294901760
    %2523 = vmatmul.mubr.f32.gmra.mrb[0].mxu0 %v2522
    %v2524 = vpop.f32.mrb[0].mxu0
    %v2525 = vadd.f32 %v2444, %v2524
    %v2526 = vpop.f32.mrb[0].mxu0
    %2527 = vdwg.mxu0
    %2528 = vmatprep.subr.mxu0 0.0
    %v2529 = vand.u32 %v716, 4294901760
    %v2530 = vsub.f32 %v716, %v2529
    %v2531 = vand.u32 %v2530, 4294901760
    %2532 = vmatpush1.msra.mxu0 %v2531
    %2533 = vmatprep.subr.mxu0 0.0
    %v2534 = vand.u32 %v718, 4294901760
    %v2535 = vsub.f32 %v718, %v2534
    %v2536 = vand.u32 %v2535, 4294901760
    %2537 = vmatpush1.msra.mxu0 %v2536
    %2538 = vmatprep.subr.mxu0 0.0
    %v2539 = vand.u32 %v720, 4294901760
    %v2540 = vsub.f32 %v720, %v2539
    %v2541 = vand.u32 %v2540, 4294901760
    %2542 = vmatpush1.msra.mxu0 %v2541
    %2543 = vmatprep.subr.mxu0 0.0
    %v2544 = vand.u32 %v722, 4294901760
    %v2545 = vsub.f32 %v722, %v2544
    %v2546 = vand.u32 %v2545, 4294901760
    %2547 = vmatpush1.msra.mxu0 %v2546
    %2548 = vmatprep.subr.mxu0 0.0
    %v2549 = vand.u32 %v724, 4294901760
    %v2550 = vsub.f32 %v724, %v2549
    %v2551 = vand.u32 %v2550, 4294901760
    %2552 = vmatpush1.msra.mxu0 %v2551
    %2553 = vmatprep.subr.mxu0 0.0
    %v2554 = vand.u32 %v726, 4294901760
    %v2555 = vsub.f32 %v726, %v2554
    %v2556 = vand.u32 %v2555, 4294901760
    %2557 = vmatpush1.msra.mxu0 %v2556
    %2558 = vmatprep.subr.mxu0 0.0
    %v2559 = vand.u32 %v728, 4294901760
    %v2560 = vsub.f32 %v728, %v2559
    %v2561 = vand.u32 %v2560, 4294901760
    %2562 = vmatpush1.msra.mxu0 %v2561
    %2563 = vmatprep.subr.mxu0 0.0
    %v2564 = vand.u32 %v730, 4294901760
    %v2565 = vsub.f32 %v730, %v2564
    %v2566 = vand.u32 %v2565, 4294901760
    %2567 = vmatpush1.msra.mxu0 %v2566
    %2568 = vmatprep.subr.mxu0 0.0
    %2569 = vmatpush1.msra.mxu0 0.0
    %2570 = vmatprep.subr.mxu0 0.0
    %2571 = vmatpush1.msra.mxu0 0.0
    %2572 = vmatprep.subr.mxu0 0.0
    %2573 = vmatpush1.msra.mxu0 0.0
    %2574 = vmatprep.subr.mxu0 0.0
    %2575 = vmatpush1.msra.mxu0 0.0
    %2576 = vmatprep.subr.mxu0 0.0
    %2577 = vmatpush1.msra.mxu0 0.0
    %2578 = vmatprep.subr.mxu0 0.0
    %2579 = vmatpush1.msra.mxu0 0.0
    %2580 = vmatprep.subr.mxu0 0.0
    %2581 = vmatpush1.msra.mxu0 0.0
    %2582 = vmatprep.subr.mxu0 0.0
    %2583 = vmatpush1.msra.mxu0 0.0
    %2584 = vmatprep.subr.mxu0 0.0
    %2585 = vmatpush1.msra.mxu0 0.0
    %2586 = vmatprep.subr.mxu0 0.0
    %2587 = vmatpush1.msra.mxu0 0.0
    %2588 = vmatprep.subr.mxu0 0.0
    %2589 = vmatpush1.msra.mxu0 0.0
    %2590 = vmatprep.subr.mxu0 0.0
    %2591 = vmatpush1.msra.mxu0 0.0
    %2592 = vmatprep.subr.mxu0 0.0
    %2593 = vmatpush1.msra.mxu0 0.0
    %2594 = vmatprep.subr.mxu0 0.0
    %2595 = vmatpush1.msra.mxu0 0.0
    %2596 = vmatprep.subr.mxu0 0.0
    %2597 = vmatpush1.msra.mxu0 0.0
    %2598 = vmatprep.subr.mxu0 0.0
    %2599 = vmatpush1.msra.mxu0 0.0
    %2600 = vmatprep.subr.mxu0 0.0
    %2601 = vmatpush1.msra.mxu0 0.0
    %2602 = vmatprep.subr.mxu0 0.0
    %2603 = vmatpush1.msra.mxu0 0.0
    %2604 = vmatprep.subr.mxu0 0.0
    %2605 = vmatpush1.msra.mxu0 0.0
    %2606 = vmatprep.subr.mxu0 0.0
    %2607 = vmatpush1.msra.mxu0 0.0
    %2608 = vmatprep.subr.mxu0 0.0
    %2609 = vmatpush1.msra.mxu0 0.0
    %2610 = vmatprep.subr.mxu0 0.0
    %2611 = vmatpush1.msra.mxu0 0.0
    %2612 = vmatprep.subr.mxu0 0.0
    %2613 = vmatpush1.msra.mxu0 0.0
    %2614 = vmatprep.subr.mxu0 0.0
    %2615 = vmatpush1.msra.mxu0 0.0
    %2616 = vmatprep.mubr.f32.mxu0 0.0
    %v2617 = vand.u32 %v2163, 4294901760
    %2618 = vmatmul.mubr.f32.gmra.mrb[0].mxu0 %v2617
    %v2619 = vpop.f32.mrb[0].mxu0
    %v2620 = vadd.f32 %v2525, %v2619
    %v2621 = vpop.f32.mrb[0].mxu0
    %2622 = vdwg.mxu0
    %2623 = vmatprep.subr.mxu0 0.0
    %v2624 = vand.u32 %v716, 4294901760
    %2625 = vmatpush1.msra.mxu0 %v2624
    %2626 = vmatprep.subr.mxu0 0.0
    %v2627 = vand.u32 %v718, 4294901760
    %2628 = vmatpush1.msra.mxu0 %v2627
    %2629 = vmatprep.subr.mxu0 0.0
    %v2630 = vand.u32 %v720, 4294901760
    %2631 = vmatpush1.msra.mxu0 %v2630
    %2632 = vmatprep.subr.mxu0 0.0
    %v2633 = vand.u32 %v722, 4294901760
    %2634 = vmatpush1.msra.mxu0 %v2633
    %2635 = vmatprep.subr.mxu0 0.0
    %v2636 = vand.u32 %v724, 4294901760
    %2637 = vmatpush1.msra.mxu0 %v2636
    %2638 = vmatprep.subr.mxu0 0.0
    %v2639 = vand.u32 %v726, 4294901760
    %2640 = vmatpush1.msra.mxu0 %v2639
    %2641 = vmatprep.subr.mxu0 0.0
    %v2642 = vand.u32 %v728, 4294901760
    %2643 = vmatpush1.msra.mxu0 %v2642
    %2644 = vmatprep.subr.mxu0 0.0
    %v2645 = vand.u32 %v730, 4294901760
    %2646 = vmatpush1.msra.mxu0 %v2645
    %2647 = vmatprep.subr.mxu0 0.0
    %2648 = vmatpush1.msra.mxu0 0.0
    %2649 = vmatprep.subr.mxu0 0.0
    %2650 = vmatpush1.msra.mxu0 0.0
    %2651 = vmatprep.subr.mxu0 0.0
    %2652 = vmatpush1.msra.mxu0 0.0
    %2653 = vmatprep.subr.mxu0 0.0
    %2654 = vmatpush1.msra.mxu0 0.0
    %2655 = vmatprep.subr.mxu0 0.0
    %2656 = vmatpush1.msra.mxu0 0.0
    %2657 = vmatprep.subr.mxu0 0.0
    %2658 = vmatpush1.msra.mxu0 0.0
    %2659 = vmatprep.subr.mxu0 0.0
    %2660 = vmatpush1.msra.mxu0 0.0
    %2661 = vmatprep.subr.mxu0 0.0
    %2662 = vmatpush1.msra.mxu0 0.0
    %2663 = vmatprep.subr.mxu0 0.0
    %2664 = vmatpush1.msra.mxu0 0.0
    %2665 = vmatprep.subr.mxu0 0.0
    %2666 = vmatpush1.msra.mxu0 0.0
    %2667 = vmatprep.subr.mxu0 0.0
    %2668 = vmatpush1.msra.mxu0 0.0
    %2669 = vmatprep.subr.mxu0 0.0
    %2670 = vmatpush1.msra.mxu0 0.0
    %2671 = vmatprep.subr.mxu0 0.0
    %2672 = vmatpush1.msra.mxu0 0.0
    %2673 = vmatprep.subr.mxu0 0.0
    %2674 = vmatpush1.msra.mxu0 0.0
    %2675 = vmatprep.subr.mxu0 0.0
    %2676 = vmatpush1.msra.mxu0 0.0
    %2677 = vmatprep.subr.mxu0 0.0
    %2678 = vmatpush1.msra.mxu0 0.0
    %2679 = vmatprep.subr.mxu0 0.0
    %2680 = vmatpush1.msra.mxu0 0.0
    %2681 = vmatprep.subr.mxu0 0.0
    %2682 = vmatpush1.msra.mxu0 0.0
    %2683 = vmatprep.subr.mxu0 0.0
    %2684 = vmatpush1.msra.mxu0 0.0
    %2685 = vmatprep.subr.mxu0 0.0
    %2686 = vmatpush1.msra.mxu0 0.0
    %2687 = vmatprep.subr.mxu0 0.0
    %2688 = vmatpush1.msra.mxu0 0.0
    %2689 = vmatprep.subr.mxu0 0.0
    %2690 = vmatpush1.msra.mxu0 0.0
    %2691 = vmatprep.subr.mxu0 0.0
    %2692 = vmatpush1.msra.mxu0 0.0
    %2693 = vmatprep.subr.mxu0 0.0
    %2694 = vmatpush1.msra.mxu0 0.0
    %2695 = vmatprep.mubr.f32.mxu0 0.0
    %v2696 = vand.u32 %v2163, 4294901760
    %2697 = vmatmul.mubr.f32.gmra.mrb[0].mxu0 %v2696
    %v2698 = vpop.f32.mrb[0].mxu0
    %v2699 = vadd.f32 %v2620, %v2698
    %v2700 = vpop.f32.mrb[0].mxu0
    %2701 = vdwg.mxu0
    %v2702 = vmul.f32 %v2699, %v836
    %v2703 = vsel %vm1458, %v2702, -inf
    %2704 = vmax.xlane.f32.xlu0 %v2703
    %v2705 = vpop.xlane.xlu0 %2704
    %v2706 = vmax.f32 %v2705, 1e-30
    %v2707 = vrcp.pop %v2706
    %v2708 = vmul.f32 1.0, %v2707
    %v2709 = vmul.f32 %v2702, %v2708
    %v2710 = vadd.f32 %v500, %v503
    %v2711 = vlog2.pop %v2706
    %v2712 = vmul.f32 %v2711, 0.6931472
    %v2713 = vadd.f32 %v2710, %v2712
    %2715 = vrot.lane.b32.xlu0 %v531, 8
    %v2716 = vpop.permute.xlu0 %2715
    %2718 = vrot.lane.b32.xlu0 %v531, 16
    %v2719 = vpop.permute.xlu0 %2718
    %2721 = vrot.lane.b32.xlu0 %v531, 24
    %v2722 = vpop.permute.xlu0 %2721
    %2724 = vrot.lane.b32.xlu0 %v531, 32
    %v2725 = vpop.permute.xlu0 %2724
    %2727 = vrot.lane.b32.xlu0 %v531, 40
    %v2728 = vpop.permute.xlu0 %2727
    %2730 = vrot.lane.b32.xlu0 %v531, 48
    %v2731 = vpop.permute.xlu0 %2730
    %2733 = vrot.lane.b32.xlu0 %v531, 56
    %v2734 = vpop.permute.xlu0 %2733
    %v2736 = vsel %vm861, %v531, %v2716
    %v2737 = vsel %vm863, %v2736, %v2719
    %v2738 = vsel %vm865, %v2737, %v2722
    %v2739 = vsel %vm867, %v2738, %v2725
    %v2740 = vsel %vm869, %v2739, %v2728
    %v2741 = vsel %vm871, %v2740, %v2731
    %v2742 = vsel %vm873, %v2741, %v2734
    %2744 = vset.pattern.permute.xlu0 0
    %2745 = vperm.xlu0 %2744, %v533
    %v2746 = vpop.permute.xlu0 %2745
    %2748 = vset.pattern.permute.xlu0 1
    %2749 = vperm.xlu0 %2748, %v533
    %v2750 = vpop.permute.xlu0 %2749
    %2752 = vset.pattern.permute.xlu0 2
    %2753 = vperm.xlu0 %2752, %v533
    %v2754 = vpop.permute.xlu0 %2753
    %2756 = vset.pattern.permute.xlu0 3
    %2757 = vperm.xlu0 %2756, %v533
    %v2758 = vpop.permute.xlu0 %2757
    %2760 = vset.pattern.permute.xlu0 4
    %2761 = vperm.xlu0 %2760, %v533
    %v2762 = vpop.permute.xlu0 %2761
    %2764 = vset.pattern.permute.xlu0 5
    %2765 = vperm.xlu0 %2764, %v533
    %v2766 = vpop.permute.xlu0 %2765
    %2768 = vset.pattern.permute.xlu0 6
    %2769 = vperm.xlu0 %2768, %v533
    %v2770 = vpop.permute.xlu0 %2769
    %2772 = vset.pattern.permute.xlu0 7
    %2773 = vperm.xlu0 %2772, %v533
    %v2774 = vpop.permute.xlu0 %2773
    %v2776 = vsel %vm861, %v2746, %v2750
    %v2777 = vsel %vm863, %v2776, %v2754
    %v2778 = vsel %vm865, %v2777, %v2758
    %v2779 = vsel %vm867, %v2778, %v2762
    %v2780 = vsel %vm869, %v2779, %v2766
    %v2781 = vsel %vm871, %v2780, %v2770
    %v2782 = vsel %vm873, %v2781, %v2774
    %v2783 = vmul.f32 %v2742, %v2782
    %v2785 = vsel %vm916, %v2783, 0
    %2787 = vmatprep.subr.mxu0 0.0
    %v2788 = vand.u32 %v732, 4294901760
    %2789 = vmatpush1.msra.mxu0 %v2788
    %2790 = vmatprep.subr.mxu0 0.0
    %v2791 = vand.u32 %v734, 4294901760
    %2792 = vmatpush1.msra.mxu0 %v2791
    %2793 = vmatprep.subr.mxu0 0.0
    %v2794 = vand.u32 %v736, 4294901760
    %2795 = vmatpush1.msra.mxu0 %v2794
    %2796 = vmatprep.subr.mxu0 0.0
    %v2797 = vand.u32 %v738, 4294901760
    %2798 = vmatpush1.msra.mxu0 %v2797
    %2799 = vmatprep.subr.mxu0 0.0
    %v2800 = vand.u32 %v740, 4294901760
    %2801 = vmatpush1.msra.mxu0 %v2800
    %2802 = vmatprep.subr.mxu0 0.0
    %v2803 = vand.u32 %v742, 4294901760
    %2804 = vmatpush1.msra.mxu0 %v2803
    %2805 = vmatprep.subr.mxu0 0.0
    %v2806 = vand.u32 %v744, 4294901760
    %2807 = vmatpush1.msra.mxu0 %v2806
    %2808 = vmatprep.subr.mxu0 0.0
    %v2809 = vand.u32 %v746, 4294901760
    %2810 = vmatpush1.msra.mxu0 %v2809
    %2811 = vmatprep.subr.mxu0 0.0
    %2812 = vmatpush1.msra.mxu0 0.0
    %2813 = vmatprep.subr.mxu0 0.0
    %2814 = vmatpush1.msra.mxu0 0.0
    %2815 = vmatprep.subr.mxu0 0.0
    %2816 = vmatpush1.msra.mxu0 0.0
    %2817 = vmatprep.subr.mxu0 0.0
    %2818 = vmatpush1.msra.mxu0 0.0
    %2819 = vmatprep.subr.mxu0 0.0
    %2820 = vmatpush1.msra.mxu0 0.0
    %2821 = vmatprep.subr.mxu0 0.0
    %2822 = vmatpush1.msra.mxu0 0.0
    %2823 = vmatprep.subr.mxu0 0.0
    %2824 = vmatpush1.msra.mxu0 0.0
    %2825 = vmatprep.subr.mxu0 0.0
    %2826 = vmatpush1.msra.mxu0 0.0
    %2827 = vmatprep.subr.mxu0 0.0
    %2828 = vmatpush1.msra.mxu0 0.0
    %2829 = vmatprep.subr.mxu0 0.0
    %2830 = vmatpush1.msra.mxu0 0.0
    %2831 = vmatprep.subr.mxu0 0.0
    %2832 = vmatpush1.msra.mxu0 0.0
    %2833 = vmatprep.subr.mxu0 0.0
    %2834 = vmatpush1.msra.mxu0 0.0
    %2835 = vmatprep.subr.mxu0 0.0
    %2836 = vmatpush1.msra.mxu0 0.0
    %2837 = vmatprep.subr.mxu0 0.0
    %2838 = vmatpush1.msra.mxu0 0.0
    %2839 = vmatprep.subr.mxu0 0.0
    %2840 = vmatpush1.msra.mxu0 0.0
    %2841 = vmatprep.subr.mxu0 0.0
    %2842 = vmatpush1.msra.mxu0 0.0
    %2843 = vmatprep.subr.mxu0 0.0
    %2844 = vmatpush1.msra.mxu0 0.0
    %2845 = vmatprep.subr.mxu0 0.0
    %2846 = vmatpush1.msra.mxu0 0.0
    %2847 = vmatprep.subr.mxu0 0.0
    %2848 = vmatpush1.msra.mxu0 0.0
    %2849 = vmatprep.subr.mxu0 0.0
    %2850 = vmatpush1.msra.mxu0 0.0
    %2851 = vmatprep.subr.mxu0 0.0
    %2852 = vmatpush1.msra.mxu0 0.0
    %2853 = vmatprep.subr.mxu0 0.0
    %2854 = vmatpush1.msra.mxu0 0.0
    %2855 = vmatprep.subr.mxu0 0.0
    %2856 = vmatpush1.msra.mxu0 0.0
    %2857 = vmatprep.subr.mxu0 0.0
    %2858 = vmatpush1.msra.mxu0 0.0
    %2859 = vmatprep.mubr.f32.mxu0 0.0
    %v2860 = vand.u32 %v2785, 4294901760
    %v2861 = vsub.f32 %v2785, %v2860
    %v2862 = vand.u32 %v2861, 4294901760
    %v2863 = vsub.f32 %v2861, %v2862
    %v2864 = vand.u32 %v2863, 4294901760
    %2865 = vmatmul.mubr.f32.gmra.mrb[0].mxu0 %v2864
    %v2866 = vpop.f32.mrb[0].mxu0
    %v2867 = vadd.f32 0.0, %v2866
    %v2868 = vpop.f32.mrb[0].mxu0
    %2869 = vdwg.mxu0
    %2870 = vmatprep.subr.mxu0 0.0
    %v2871 = vand.u32 %v732, 4294901760
    %v2872 = vsub.f32 %v732, %v2871
    %v2873 = vand.u32 %v2872, 4294901760
    %v2874 = vsub.f32 %v2872, %v2873
    %v2875 = vand.u32 %v2874, 4294901760
    %2876 = vmatpush1.msra.mxu0 %v2875
    %2877 = vmatprep.subr.mxu0 0.0
    %v2878 = vand.u32 %v734, 4294901760
    %v2879 = vsub.f32 %v734, %v2878
    %v2880 = vand.u32 %v2879, 4294901760
    %v2881 = vsub.f32 %v2879, %v2880
    %v2882 = vand.u32 %v2881, 4294901760
    %2883 = vmatpush1.msra.mxu0 %v2882
    %2884 = vmatprep.subr.mxu0 0.0
    %v2885 = vand.u32 %v736, 4294901760
    %v2886 = vsub.f32 %v736, %v2885
    %v2887 = vand.u32 %v2886, 4294901760
    %v2888 = vsub.f32 %v2886, %v2887
    %v2889 = vand.u32 %v2888, 4294901760
    %2890 = vmatpush1.msra.mxu0 %v2889
    %2891 = vmatprep.subr.mxu0 0.0
    %v2892 = vand.u32 %v738, 4294901760
    %v2893 = vsub.f32 %v738, %v2892
    %v2894 = vand.u32 %v2893, 4294901760
    %v2895 = vsub.f32 %v2893, %v2894
    %v2896 = vand.u32 %v2895, 4294901760
    %2897 = vmatpush1.msra.mxu0 %v2896
    %2898 = vmatprep.subr.mxu0 0.0
    %v2899 = vand.u32 %v740, 4294901760
    %v2900 = vsub.f32 %v740, %v2899
    %v2901 = vand.u32 %v2900, 4294901760
    %v2902 = vsub.f32 %v2900, %v2901
    %v2903 = vand.u32 %v2902, 4294901760
    %2904 = vmatpush1.msra.mxu0 %v2903
    %2905 = vmatprep.subr.mxu0 0.0
    %v2906 = vand.u32 %v742, 4294901760
    %v2907 = vsub.f32 %v742, %v2906
    %v2908 = vand.u32 %v2907, 4294901760
    %v2909 = vsub.f32 %v2907, %v2908
    %v2910 = vand.u32 %v2909, 4294901760
    %2911 = vmatpush1.msra.mxu0 %v2910
    %2912 = vmatprep.subr.mxu0 0.0
    %v2913 = vand.u32 %v744, 4294901760
    %v2914 = vsub.f32 %v744, %v2913
    %v2915 = vand.u32 %v2914, 4294901760
    %v2916 = vsub.f32 %v2914, %v2915
    %v2917 = vand.u32 %v2916, 4294901760
    %2918 = vmatpush1.msra.mxu0 %v2917
    %2919 = vmatprep.subr.mxu0 0.0
    %v2920 = vand.u32 %v746, 4294901760
    %v2921 = vsub.f32 %v746, %v2920
    %v2922 = vand.u32 %v2921, 4294901760
    %v2923 = vsub.f32 %v2921, %v2922
    %v2924 = vand.u32 %v2923, 4294901760
    %2925 = vmatpush1.msra.mxu0 %v2924
    %2926 = vmatprep.subr.mxu0 0.0
    %2927 = vmatpush1.msra.mxu0 0.0
    %2928 = vmatprep.subr.mxu0 0.0
    %2929 = vmatpush1.msra.mxu0 0.0
    %2930 = vmatprep.subr.mxu0 0.0
    %2931 = vmatpush1.msra.mxu0 0.0
    %2932 = vmatprep.subr.mxu0 0.0
    %2933 = vmatpush1.msra.mxu0 0.0
    %2934 = vmatprep.subr.mxu0 0.0
    %2935 = vmatpush1.msra.mxu0 0.0
    %2936 = vmatprep.subr.mxu0 0.0
    %2937 = vmatpush1.msra.mxu0 0.0
    %2938 = vmatprep.subr.mxu0 0.0
    %2939 = vmatpush1.msra.mxu0 0.0
    %2940 = vmatprep.subr.mxu0 0.0
    %2941 = vmatpush1.msra.mxu0 0.0
    %2942 = vmatprep.subr.mxu0 0.0
    %2943 = vmatpush1.msra.mxu0 0.0
    %2944 = vmatprep.subr.mxu0 0.0
    %2945 = vmatpush1.msra.mxu0 0.0
    %2946 = vmatprep.subr.mxu0 0.0
    %2947 = vmatpush1.msra.mxu0 0.0
    %2948 = vmatprep.subr.mxu0 0.0
    %2949 = vmatpush1.msra.mxu0 0.0
    %2950 = vmatprep.subr.mxu0 0.0
    %2951 = vmatpush1.msra.mxu0 0.0
    %2952 = vmatprep.subr.mxu0 0.0
    %2953 = vmatpush1.msra.mxu0 0.0
    %2954 = vmatprep.subr.mxu0 0.0
    %2955 = vmatpush1.msra.mxu0 0.0
    %2956 = vmatprep.subr.mxu0 0.0
    %2957 = vmatpush1.msra.mxu0 0.0
    %2958 = vmatprep.subr.mxu0 0.0
    %2959 = vmatpush1.msra.mxu0 0.0
    %2960 = vmatprep.subr.mxu0 0.0
    %2961 = vmatpush1.msra.mxu0 0.0
    %2962 = vmatprep.subr.mxu0 0.0
    %2963 = vmatpush1.msra.mxu0 0.0
    %2964 = vmatprep.subr.mxu0 0.0
    %2965 = vmatpush1.msra.mxu0 0.0
    %2966 = vmatprep.subr.mxu0 0.0
    %2967 = vmatpush1.msra.mxu0 0.0
    %2968 = vmatprep.subr.mxu0 0.0
    %2969 = vmatpush1.msra.mxu0 0.0
    %2970 = vmatprep.subr.mxu0 0.0
    %2971 = vmatpush1.msra.mxu0 0.0
    %2972 = vmatprep.subr.mxu0 0.0
    %2973 = vmatpush1.msra.mxu0 0.0
    %2974 = vmatprep.mubr.f32.mxu0 0.0
    %v2975 = vand.u32 %v2785, 4294901760
    %2976 = vmatmul.mubr.f32.gmra.mrb[0].mxu0 %v2975
    %v2977 = vpop.f32.mrb[0].mxu0
    %v2978 = vadd.f32 %v2867, %v2977
    %v2979 = vpop.f32.mrb[0].mxu0
    %2980 = vdwg.mxu0
    %2981 = vmatprep.subr.mxu0 0.0
    %v2982 = vand.u32 %v732, 4294901760
    %v2983 = vsub.f32 %v732, %v2982
    %2984 = vmatpush1.msra.mxu0 %v2983
    %2985 = vmatprep.subr.mxu0 0.0
    %v2986 = vand.u32 %v734, 4294901760
    %v2987 = vsub.f32 %v734, %v2986
    %2988 = vmatpush1.msra.mxu0 %v2987
    %2989 = vmatprep.subr.mxu0 0.0
    %v2990 = vand.u32 %v736, 4294901760
    %v2991 = vsub.f32 %v736, %v2990
    %2992 = vmatpush1.msra.mxu0 %v2991
    %2993 = vmatprep.subr.mxu0 0.0
    %v2994 = vand.u32 %v738, 4294901760
    %v2995 = vsub.f32 %v738, %v2994
    %2996 = vmatpush1.msra.mxu0 %v2995
    %2997 = vmatprep.subr.mxu0 0.0
    %v2998 = vand.u32 %v740, 4294901760
    %v2999 = vsub.f32 %v740, %v2998
    %3000 = vmatpush1.msra.mxu0 %v2999
    %3001 = vmatprep.subr.mxu0 0.0
    %v3002 = vand.u32 %v742, 4294901760
    %v3003 = vsub.f32 %v742, %v3002
    %3004 = vmatpush1.msra.mxu0 %v3003
    %3005 = vmatprep.subr.mxu0 0.0
    %v3006 = vand.u32 %v744, 4294901760
    %v3007 = vsub.f32 %v744, %v3006
    %3008 = vmatpush1.msra.mxu0 %v3007
    %3009 = vmatprep.subr.mxu0 0.0
    %v3010 = vand.u32 %v746, 4294901760
    %v3011 = vsub.f32 %v746, %v3010
    %3012 = vmatpush1.msra.mxu0 %v3011
    %3013 = vmatprep.subr.mxu0 0.0
    %3014 = vmatpush1.msra.mxu0 0.0
    %3015 = vmatprep.subr.mxu0 0.0
    %3016 = vmatpush1.msra.mxu0 0.0
    %3017 = vmatprep.subr.mxu0 0.0
    %3018 = vmatpush1.msra.mxu0 0.0
    %3019 = vmatprep.subr.mxu0 0.0
    %3020 = vmatpush1.msra.mxu0 0.0
    %3021 = vmatprep.subr.mxu0 0.0
    %3022 = vmatpush1.msra.mxu0 0.0
    %3023 = vmatprep.subr.mxu0 0.0
    %3024 = vmatpush1.msra.mxu0 0.0
    %3025 = vmatprep.subr.mxu0 0.0
    %3026 = vmatpush1.msra.mxu0 0.0
    %3027 = vmatprep.subr.mxu0 0.0
    %3028 = vmatpush1.msra.mxu0 0.0
    %3029 = vmatprep.subr.mxu0 0.0
    %3030 = vmatpush1.msra.mxu0 0.0
    %3031 = vmatprep.subr.mxu0 0.0
    %3032 = vmatpush1.msra.mxu0 0.0
    %3033 = vmatprep.subr.mxu0 0.0
    %3034 = vmatpush1.msra.mxu0 0.0
    %3035 = vmatprep.subr.mxu0 0.0
    %3036 = vmatpush1.msra.mxu0 0.0
    %3037 = vmatprep.subr.mxu0 0.0
    %3038 = vmatpush1.msra.mxu0 0.0
    %3039 = vmatprep.subr.mxu0 0.0
    %3040 = vmatpush1.msra.mxu0 0.0
    %3041 = vmatprep.subr.mxu0 0.0
    %3042 = vmatpush1.msra.mxu0 0.0
    %3043 = vmatprep.subr.mxu0 0.0
    %3044 = vmatpush1.msra.mxu0 0.0
    %3045 = vmatprep.subr.mxu0 0.0
    %3046 = vmatpush1.msra.mxu0 0.0
    %3047 = vmatprep.subr.mxu0 0.0
    %3048 = vmatpush1.msra.mxu0 0.0
    %3049 = vmatprep.subr.mxu0 0.0
    %3050 = vmatpush1.msra.mxu0 0.0
    %3051 = vmatprep.subr.mxu0 0.0
    %3052 = vmatpush1.msra.mxu0 0.0
    %3053 = vmatprep.subr.mxu0 0.0
    %3054 = vmatpush1.msra.mxu0 0.0
    %3055 = vmatprep.subr.mxu0 0.0
    %3056 = vmatpush1.msra.mxu0 0.0
    %3057 = vmatprep.subr.mxu0 0.0
    %3058 = vmatpush1.msra.mxu0 0.0
    %3059 = vmatprep.subr.mxu0 0.0
    %3060 = vmatpush1.msra.mxu0 0.0
    %3061 = vmatprep.mubr.f32.mxu0 0.0
    %v3062 = vand.u32 %v2785, 4294901760
    %v3063 = vsub.f32 %v2785, %v3062
    %3064 = vmatmul.mubr.f32.gmra.mrb[0].mxu0 %v3063
    %v3065 = vpop.f32.mrb[0].mxu0
    %v3066 = vadd.f32 %v2978, %v3065
    %v3067 = vpop.f32.mrb[0].mxu0
    %3068 = vdwg.mxu0
    %3069 = vmatprep.subr.mxu0 0.0
    %v3070 = vand.u32 %v732, 4294901760
    %3071 = vmatpush1.msra.mxu0 %v3070
    %3072 = vmatprep.subr.mxu0 0.0
    %v3073 = vand.u32 %v734, 4294901760
    %3074 = vmatpush1.msra.mxu0 %v3073
    %3075 = vmatprep.subr.mxu0 0.0
    %v3076 = vand.u32 %v736, 4294901760
    %3077 = vmatpush1.msra.mxu0 %v3076
    %3078 = vmatprep.subr.mxu0 0.0
    %v3079 = vand.u32 %v738, 4294901760
    %3080 = vmatpush1.msra.mxu0 %v3079
    %3081 = vmatprep.subr.mxu0 0.0
    %v3082 = vand.u32 %v740, 4294901760
    %3083 = vmatpush1.msra.mxu0 %v3082
    %3084 = vmatprep.subr.mxu0 0.0
    %v3085 = vand.u32 %v742, 4294901760
    %3086 = vmatpush1.msra.mxu0 %v3085
    %3087 = vmatprep.subr.mxu0 0.0
    %v3088 = vand.u32 %v744, 4294901760
    %3089 = vmatpush1.msra.mxu0 %v3088
    %3090 = vmatprep.subr.mxu0 0.0
    %v3091 = vand.u32 %v746, 4294901760
    %3092 = vmatpush1.msra.mxu0 %v3091
    %3093 = vmatprep.subr.mxu0 0.0
    %3094 = vmatpush1.msra.mxu0 0.0
    %3095 = vmatprep.subr.mxu0 0.0
    %3096 = vmatpush1.msra.mxu0 0.0
    %3097 = vmatprep.subr.mxu0 0.0
    %3098 = vmatpush1.msra.mxu0 0.0
    %3099 = vmatprep.subr.mxu0 0.0
    %3100 = vmatpush1.msra.mxu0 0.0
    %3101 = vmatprep.subr.mxu0 0.0
    %3102 = vmatpush1.msra.mxu0 0.0
    %3103 = vmatprep.subr.mxu0 0.0
    %3104 = vmatpush1.msra.mxu0 0.0
    %3105 = vmatprep.subr.mxu0 0.0
    %3106 = vmatpush1.msra.mxu0 0.0
    %3107 = vmatprep.subr.mxu0 0.0
    %3108 = vmatpush1.msra.mxu0 0.0
    %3109 = vmatprep.subr.mxu0 0.0
    %3110 = vmatpush1.msra.mxu0 0.0
    %3111 = vmatprep.subr.mxu0 0.0
    %3112 = vmatpush1.msra.mxu0 0.0
    %3113 = vmatprep.subr.mxu0 0.0
    %3114 = vmatpush1.msra.mxu0 0.0
    %3115 = vmatprep.subr.mxu0 0.0
    %3116 = vmatpush1.msra.mxu0 0.0
    %3117 = vmatprep.subr.mxu0 0.0
    %3118 = vmatpush1.msra.mxu0 0.0
    %3119 = vmatprep.subr.mxu0 0.0
    %3120 = vmatpush1.msra.mxu0 0.0
    %3121 = vmatprep.subr.mxu0 0.0
    %3122 = vmatpush1.msra.mxu0 0.0
    %3123 = vmatprep.subr.mxu0 0.0
    %3124 = vmatpush1.msra.mxu0 0.0
    %3125 = vmatprep.subr.mxu0 0.0
    %3126 = vmatpush1.msra.mxu0 0.0
    %3127 = vmatprep.subr.mxu0 0.0
    %3128 = vmatpush1.msra.mxu0 0.0
    %3129 = vmatprep.subr.mxu0 0.0
    %3130 = vmatpush1.msra.mxu0 0.0
    %3131 = vmatprep.subr.mxu0 0.0
    %3132 = vmatpush1.msra.mxu0 0.0
    %3133 = vmatprep.subr.mxu0 0.0
    %3134 = vmatpush1.msra.mxu0 0.0
    %3135 = vmatprep.subr.mxu0 0.0
    %3136 = vmatpush1.msra.mxu0 0.0
    %3137 = vmatprep.subr.mxu0 0.0
    %3138 = vmatpush1.msra.mxu0 0.0
    %3139 = vmatprep.subr.mxu0 0.0
    %3140 = vmatpush1.msra.mxu0 0.0
    %3141 = vmatprep.mubr.f32.mxu0 0.0
    %v3142 = vand.u32 %v2785, 4294901760
    %v3143 = vsub.f32 %v2785, %v3142
    %v3144 = vand.u32 %v3143, 4294901760
    %3145 = vmatmul.mubr.f32.gmra.mrb[0].mxu0 %v3144
    %v3146 = vpop.f32.mrb[0].mxu0
    %v3147 = vadd.f32 %v3066, %v3146
    %v3148 = vpop.f32.mrb[0].mxu0
    %3149 = vdwg.mxu0
    %3150 = vmatprep.subr.mxu0 0.0
    %v3151 = vand.u32 %v732, 4294901760
    %v3152 = vsub.f32 %v732, %v3151
    %v3153 = vand.u32 %v3152, 4294901760
    %3154 = vmatpush1.msra.mxu0 %v3153
    %3155 = vmatprep.subr.mxu0 0.0
    %v3156 = vand.u32 %v734, 4294901760
    %v3157 = vsub.f32 %v734, %v3156
    %v3158 = vand.u32 %v3157, 4294901760
    %3159 = vmatpush1.msra.mxu0 %v3158
    %3160 = vmatprep.subr.mxu0 0.0
    %v3161 = vand.u32 %v736, 4294901760
    %v3162 = vsub.f32 %v736, %v3161
    %v3163 = vand.u32 %v3162, 4294901760
    %3164 = vmatpush1.msra.mxu0 %v3163
    %3165 = vmatprep.subr.mxu0 0.0
    %v3166 = vand.u32 %v738, 4294901760
    %v3167 = vsub.f32 %v738, %v3166
    %v3168 = vand.u32 %v3167, 4294901760
    %3169 = vmatpush1.msra.mxu0 %v3168
    %3170 = vmatprep.subr.mxu0 0.0
    %v3171 = vand.u32 %v740, 4294901760
    %v3172 = vsub.f32 %v740, %v3171
    %v3173 = vand.u32 %v3172, 4294901760
    %3174 = vmatpush1.msra.mxu0 %v3173
    %3175 = vmatprep.subr.mxu0 0.0
    %v3176 = vand.u32 %v742, 4294901760
    %v3177 = vsub.f32 %v742, %v3176
    %v3178 = vand.u32 %v3177, 4294901760
    %3179 = vmatpush1.msra.mxu0 %v3178
    %3180 = vmatprep.subr.mxu0 0.0
    %v3181 = vand.u32 %v744, 4294901760
    %v3182 = vsub.f32 %v744, %v3181
    %v3183 = vand.u32 %v3182, 4294901760
    %3184 = vmatpush1.msra.mxu0 %v3183
    %3185 = vmatprep.subr.mxu0 0.0
    %v3186 = vand.u32 %v746, 4294901760
    %v3187 = vsub.f32 %v746, %v3186
    %v3188 = vand.u32 %v3187, 4294901760
    %3189 = vmatpush1.msra.mxu0 %v3188
    %3190 = vmatprep.subr.mxu0 0.0
    %3191 = vmatpush1.msra.mxu0 0.0
    %3192 = vmatprep.subr.mxu0 0.0
    %3193 = vmatpush1.msra.mxu0 0.0
    %3194 = vmatprep.subr.mxu0 0.0
    %3195 = vmatpush1.msra.mxu0 0.0
    %3196 = vmatprep.subr.mxu0 0.0
    %3197 = vmatpush1.msra.mxu0 0.0
    %3198 = vmatprep.subr.mxu0 0.0
    %3199 = vmatpush1.msra.mxu0 0.0
    %3200 = vmatprep.subr.mxu0 0.0
    %3201 = vmatpush1.msra.mxu0 0.0
    %3202 = vmatprep.subr.mxu0 0.0
    %3203 = vmatpush1.msra.mxu0 0.0
    %3204 = vmatprep.subr.mxu0 0.0
    %3205 = vmatpush1.msra.mxu0 0.0
    %3206 = vmatprep.subr.mxu0 0.0
    %3207 = vmatpush1.msra.mxu0 0.0
    %3208 = vmatprep.subr.mxu0 0.0
    %3209 = vmatpush1.msra.mxu0 0.0
    %3210 = vmatprep.subr.mxu0 0.0
    %3211 = vmatpush1.msra.mxu0 0.0
    %3212 = vmatprep.subr.mxu0 0.0
    %3213 = vmatpush1.msra.mxu0 0.0
    %3214 = vmatprep.subr.mxu0 0.0
    %3215 = vmatpush1.msra.mxu0 0.0
    %3216 = vmatprep.subr.mxu0 0.0
    %3217 = vmatpush1.msra.mxu0 0.0
    %3218 = vmatprep.subr.mxu0 0.0
    %3219 = vmatpush1.msra.mxu0 0.0
    %3220 = vmatprep.subr.mxu0 0.0
    %3221 = vmatpush1.msra.mxu0 0.0
    %3222 = vmatprep.subr.mxu0 0.0
    %3223 = vmatpush1.msra.mxu0 0.0
    %3224 = vmatprep.subr.mxu0 0.0
    %3225 = vmatpush1.msra.mxu0 0.0
    %3226 = vmatprep.subr.mxu0 0.0
    %3227 = vmatpush1.msra.mxu0 0.0
    %3228 = vmatprep.subr.mxu0 0.0
    %3229 = vmatpush1.msra.mxu0 0.0
    %3230 = vmatprep.subr.mxu0 0.0
    %3231 = vmatpush1.msra.mxu0 0.0
    %3232 = vmatprep.subr.mxu0 0.0
    %3233 = vmatpush1.msra.mxu0 0.0
    %3234 = vmatprep.subr.mxu0 0.0
    %3235 = vmatpush1.msra.mxu0 0.0
    %3236 = vmatprep.subr.mxu0 0.0
    %3237 = vmatpush1.msra.mxu0 0.0
    %3238 = vmatprep.mubr.f32.mxu0 0.0
    %v3239 = vand.u32 %v2785, 4294901760
    %3240 = vmatmul.mubr.f32.gmra.mrb[0].mxu0 %v3239
    %v3241 = vpop.f32.mrb[0].mxu0
    %v3242 = vadd.f32 %v3147, %v3241
    %v3243 = vpop.f32.mrb[0].mxu0
    %3244 = vdwg.mxu0
    %3245 = vmatprep.subr.mxu0 0.0
    %v3246 = vand.u32 %v732, 4294901760
    %3247 = vmatpush1.msra.mxu0 %v3246
    %3248 = vmatprep.subr.mxu0 0.0
    %v3249 = vand.u32 %v734, 4294901760
    %3250 = vmatpush1.msra.mxu0 %v3249
    %3251 = vmatprep.subr.mxu0 0.0
    %v3252 = vand.u32 %v736, 4294901760
    %3253 = vmatpush1.msra.mxu0 %v3252
    %3254 = vmatprep.subr.mxu0 0.0
    %v3255 = vand.u32 %v738, 4294901760
    %3256 = vmatpush1.msra.mxu0 %v3255
    %3257 = vmatprep.subr.mxu0 0.0
    %v3258 = vand.u32 %v740, 4294901760
    %3259 = vmatpush1.msra.mxu0 %v3258
    %3260 = vmatprep.subr.mxu0 0.0
    %v3261 = vand.u32 %v742, 4294901760
    %3262 = vmatpush1.msra.mxu0 %v3261
    %3263 = vmatprep.subr.mxu0 0.0
    %v3264 = vand.u32 %v744, 4294901760
    %3265 = vmatpush1.msra.mxu0 %v3264
    %3266 = vmatprep.subr.mxu0 0.0
    %v3267 = vand.u32 %v746, 4294901760
    %3268 = vmatpush1.msra.mxu0 %v3267
    %3269 = vmatprep.subr.mxu0 0.0
    %3270 = vmatpush1.msra.mxu0 0.0
    %3271 = vmatprep.subr.mxu0 0.0
    %3272 = vmatpush1.msra.mxu0 0.0
    %3273 = vmatprep.subr.mxu0 0.0
    %3274 = vmatpush1.msra.mxu0 0.0
    %3275 = vmatprep.subr.mxu0 0.0
    %3276 = vmatpush1.msra.mxu0 0.0
    %3277 = vmatprep.subr.mxu0 0.0
    %3278 = vmatpush1.msra.mxu0 0.0
    %3279 = vmatprep.subr.mxu0 0.0
    %3280 = vmatpush1.msra.mxu0 0.0
    %3281 = vmatprep.subr.mxu0 0.0
    %3282 = vmatpush1.msra.mxu0 0.0
    %3283 = vmatprep.subr.mxu0 0.0
    %3284 = vmatpush1.msra.mxu0 0.0
    %3285 = vmatprep.subr.mxu0 0.0
    %3286 = vmatpush1.msra.mxu0 0.0
    %3287 = vmatprep.subr.mxu0 0.0
    %3288 = vmatpush1.msra.mxu0 0.0
    %3289 = vmatprep.subr.mxu0 0.0
    %3290 = vmatpush1.msra.mxu0 0.0
    %3291 = vmatprep.subr.mxu0 0.0
    %3292 = vmatpush1.msra.mxu0 0.0
    %3293 = vmatprep.subr.mxu0 0.0
    %3294 = vmatpush1.msra.mxu0 0.0
    %3295 = vmatprep.subr.mxu0 0.0
    %3296 = vmatpush1.msra.mxu0 0.0
    %3297 = vmatprep.subr.mxu0 0.0
    %3298 = vmatpush1.msra.mxu0 0.0
    %3299 = vmatprep.subr.mxu0 0.0
    %3300 = vmatpush1.msra.mxu0 0.0
    %3301 = vmatprep.subr.mxu0 0.0
    %3302 = vmatpush1.msra.mxu0 0.0
    %3303 = vmatprep.subr.mxu0 0.0
    %3304 = vmatpush1.msra.mxu0 0.0
    %3305 = vmatprep.subr.mxu0 0.0
    %3306 = vmatpush1.msra.mxu0 0.0
    %3307 = vmatprep.subr.mxu0 0.0
    %3308 = vmatpush1.msra.mxu0 0.0
    %3309 = vmatprep.subr.mxu0 0.0
    %3310 = vmatpush1.msra.mxu0 0.0
    %3311 = vmatprep.subr.mxu0 0.0
    %3312 = vmatpush1.msra.mxu0 0.0
    %3313 = vmatprep.subr.mxu0 0.0
    %3314 = vmatpush1.msra.mxu0 0.0
    %3315 = vmatprep.subr.mxu0 0.0
    %3316 = vmatpush1.msra.mxu0 0.0
    %3317 = vmatprep.mubr.f32.mxu0 0.0
    %v3318 = vand.u32 %v2785, 4294901760
    %3319 = vmatmul.mubr.f32.gmra.mrb[0].mxu0 %v3318
    %v3320 = vpop.f32.mrb[0].mxu0
    %v3321 = vadd.f32 %v3242, %v3320
    %v3322 = vpop.f32.mrb[0].mxu0
    %3323 = vdwg.mxu0
    %v3324 = vmul.f32 %v3321, %v838
    %v3325 = vsel %vm1458, %v3324, -inf
    %3326 = vmax.xlane.f32.xlu0 %v3325
    %v3327 = vpop.xlane.xlu0 %3326
    %v3328 = vmax.f32 %v3327, 1e-30
    %v3329 = vrcp.pop %v3328
    %v3330 = vmul.f32 1.0, %v3329
    %v3331 = vmul.f32 %v3324, %v3330
    %v3332 = vadd.f32 %v506, %v509
    %v3333 = vlog2.pop %v3328
    %v3334 = vmul.f32 %v3333, 0.6931472
    %v3335 = vadd.f32 %v3332, %v3334
    %v3336 = vld [vmem:[%s4] sm:$0xff]
    %v3337 = vld [vmem:[%s4 + $0x8] sm:$0xff]
    %v3338 = vld [vmem:[%s4 + $0x10] sm:$0xff]
    %v3339 = vld [vmem:[%s4 + $0x18] sm:$0xf]
    %v3343 = vcombine.high %v3336, %v3336
    %v3344 = vcombine.high %v3337, %v3337
    %v3345 = vcombine.high %v3338, %v3338
    %vm3349 = vcmask 1043456
    %v3350 = vsel %vm3349, %v3336, -inf
    %v3351 = vsel %vm3349, %v3343, -inf
    %v3352 = vsel %vm3349, %v3337, -inf
    %v3353 = vsel %vm3349, %v3344, -inf
    %v3354 = vsel %vm3349, %v3338, -inf
    %v3355 = vmax.f32 %v3350, %v3354
    %v3356 = vsel %vm3349, %v3345, -inf
    %v3357 = vmax.f32 %v3351, %v3356
    %vm3358 = vcmask 257024
    %v3359 = vsel %vm3358, %v3339, -inf
    %v3360 = vmax.f32 %v3352, %v3359
    %v3361 = vmax.f32 %v3355, %v3357
    %v3362 = vmax.f32 %v3360, %v3353
    %v3363 = vmax.f32 %v3361, %v3362
    %3364 = vmax.xlane.f32.xlu0 %v3363
    %v3365 = vpop.xlane.xlu0 %3364
    %v3368 = vunpack.c.l.s4 839922192
    %v3369 = vunpack.c.0.s8 %v3368
    %v3370 = vlaneseq
    %v3371 = vshrl.u32 %v3370, 7
    %v3372 = vsub.s32 %v3369, %v3371
    %v3373 = vrot.slane %v3365, %v3372
    %v3375 = vsub.f32 %v3336, %v3373
    %v3376 = vsub.f32 %v3337, %v3373
    %v3377 = vsub.f32 %v3338, %v3373
    %v3378 = vsub.f32 %v3339, %v3373
    %v3379 = vmul.f32 %v3375, 1.442695
    %v3380 = vpow.pop %v3379
    %v3381 = vmul.f32 %v3376, 1.442695
    %v3382 = vpow.pop %v3381
    %v3383 = vmul.f32 %v3377, 1.442695
    %v3384 = vpow.pop %v3383
    %v3385 = vmul.f32 %v3378, 1.442695
    %v3386 = vpow.pop %v3385
    %v3390 = vcombine.high %v3380, %v3380
    %v3391 = vcombine.high %v3382, %v3382
    %v3392 = vcombine.high %v3384, %v3384
    %v3396 = vsel %vm3349, %v3380, 0.0
    %v3397 = vsel %vm3349, %v3390, 0.0
    %v3398 = vadd.f32 %v3396, %v3397
    %v3399 = vsel %vm3349, %v3382, 0.0
    %v3400 = vadd.f32 %v3398, %v3399
    %v3401 = vsel %vm3349, %v3391, 0.0
    %v3402 = vadd.f32 %v3400, %v3401
    %v3403 = vsel %vm3349, %v3384, 0.0
    %v3404 = vadd.f32 %v3402, %v3403
    %v3405 = vsel %vm3349, %v3392, 0.0
    %v3406 = vadd.f32 %v3404, %v3405
    %v3407 = vsel %vm3358, %v3386, 0.0
    %v3408 = vadd.f32 %v3406, %v3407
    %3409 = vadd.xlane.f32.xlu0 %v3408
    %v3410 = vpop.xlane.xlu0 %3409
    %v3411 = vrcp.pop %v3410
    %v3412 = vmul.f32 1.0, %v3411
    %v3415 = vunpack.c.l.s4 839922192
    %v3416 = vunpack.c.0.s8 %v3415
    %v3417 = vlaneseq
    %v3418 = vshrl.u32 %v3417, 7
    %v3419 = vsub.s32 %v3416, %v3418
    %v3420 = vrot.slane %v3412, %v3419
    %v3422 = vmul.f32 %v3380, %v3420
    %v3423 = vmul.f32 %v3382, %v3420
    %v3424 = vmul.f32 %v3384, %v3420
    %v3425 = vmul.f32 %v3386, %v3420
    %v3426 = vadd.f32 %v1469, %v2091
    %v3427 = vadd.f32 %v2713, %v3335
    %v3428 = vmax.f32 %v3426, %v3427
    %3430 = vrot.lane.b32.xlu0 %v1465, 20
    %v3431 = vpop.permute.xlu0 %3430
    %3433 = vrot.lane.b32.xlu0 %v1465, 40
    %v3434 = vpop.permute.xlu0 %3433
    %3436 = vrot.lane.b32.xlu0 %v1465, 60
    %v3437 = vpop.permute.xlu0 %3436
    %3439 = vrot.lane.b32.xlu0 %v1465, 80
    %v3440 = vpop.permute.xlu0 %3439
    %3442 = vrot.lane.b32.xlu0 %v1465, 100
    %v3443 = vpop.permute.xlu0 %3442
    %3445 = vrot.lane.b32.xlu0 %v1465, 120
    %v3446 = vpop.permute.xlu0 %3445
    %3448 = vrot.lane.b32.xlu0 %v1465, 12
    %v3449 = vpop.permute.xlu0 %3448
    %3451 = vrot.lane.b32.xlu0 %v1465, 32
    %v3452 = vpop.permute.xlu0 %3451
    %3454 = vrot.lane.b32.xlu0 %v1465, 52
    %v3455 = vpop.permute.xlu0 %3454
    %3457 = vrot.lane.b32.xlu0 %v1465, 72
    %v3458 = vpop.permute.xlu0 %3457
    %3460 = vrot.lane.b32.xlu0 %v1465, 92
    %v3461 = vpop.permute.xlu0 %3460
    %3463 = vrot.lane.b32.xlu0 %v1465, 112
    %v3464 = vpop.permute.xlu0 %3463
    %3466 = vrot.lane.b32.xlu0 %v1465, 4
    %v3467 = vpop.permute.xlu0 %3466
    %3469 = vrot.lane.b32.xlu0 %v1465, 24
    %v3470 = vpop.permute.xlu0 %3469
    %3472 = vrot.lane.b32.xlu0 %v1465, 44
    %v3473 = vpop.permute.xlu0 %3472
    %v3475 = vsel %vm566, %v1465, %v3431
    %v3476 = vsel %vm869, %v3475, %v3434
    %vm3477 = vcmask 490496
    %v3478 = vsel %vm3477, %v3476, %v3437
    %vm3479 = vcmask 654336
    %v3480 = vsel %vm3479, %v3478, %v3440
    %vm3481 = vcmask 818176
    %v3482 = vsel %vm3481, %v3480, %v3443
    %vm3483 = vcmask 982016
    %v3484 = vsel %vm3483, %v3482, %v3446
    %vm3485 = vcmask 97280
    %v3486 = vsel %vm3485, %v3446, %v3449
    %v3487 = vsel %vm867, %v3486, %v3452
    %vm3488 = vcmask 424960
    %v3489 = vsel %vm3488, %v3487, %v3455
    %vm3490 = vcmask 588800
    %v3491 = vsel %vm3490, %v3489, %v3458
    %vm3492 = vcmask 752640
    %v3493 = vsel %vm3492, %v3491, %v3461
    %vm3494 = vcmask 916480
    %v3495 = vsel %vm3494, %v3493, %v3464
    %vm3496 = vcmask 31744
    %v3497 = vsel %vm3496, %v3464, %v3467
    %v3498 = vsel %vm865, %v3497, %v3470
    %vm3499 = vcmask 359424
    %v3500 = vsel %vm3499, %v3498, %v3473
    %3502 = vrot.lane.b32.xlu0 %v3478, 64
    %v3503 = vpop.permute.xlu0 %3502
    %v3505 = vsel %vm916, %v3500, %v3503
    %3507 = vset.pattern.permute.xlu0 0
    %3508 = vperm.xlu0 %3507, %v2087
    %v3509 = vpop.permute.xlu0 %3508
    %3511 = vset.pattern.permute.xlu0 1
    %3512 = vperm.xlu0 %3511, %v2087
    %v3513 = vpop.permute.xlu0 %3512
    %3515 = vset.pattern.permute.xlu0 2
    %3516 = vperm.xlu0 %3515, %v2087
    %v3517 = vpop.permute.xlu0 %3516
    %3519 = vset.pattern.permute.xlu0 3
    %3520 = vperm.xlu0 %3519, %v2087
    %v3521 = vpop.permute.xlu0 %3520
    %3523 = vset.pattern.permute.xlu0 4
    %3524 = vperm.xlu0 %3523, %v2087
    %v3525 = vpop.permute.xlu0 %3524
    %3527 = vset.pattern.permute.xlu0 5
    %3528 = vperm.xlu0 %3527, %v2087
    %v3529 = vpop.permute.xlu0 %3528
    %3531 = vset.pattern.permute.xlu0 6
    %3532 = vperm.xlu0 %3531, %v2087
    %v3533 = vpop.permute.xlu0 %3532
    %3535 = vset.pattern.permute.xlu0 7
    %3536 = vperm.xlu0 %3535, %v2087
    %v3537 = vpop.permute.xlu0 %3536
    %3539 = vset.pattern.permute.xlu0 8
    %3540 = vperm.xlu0 %3539, %v2087
    %v3541 = vpop.permute.xlu0 %3540
    %3543 = vset.pattern.permute.xlu0 9
    %3544 = vperm.xlu0 %3543, %v2087
    %v3545 = vpop.permute.xlu0 %3544
    %3547 = vset.pattern.permute.xlu0 10
    %3548 = vperm.xlu0 %3547, %v2087
    %v3549 = vpop.permute.xlu0 %3548
    %3551 = vset.pattern.permute.xlu0 11
    %3552 = vperm.xlu0 %3551, %v2087
    %v3553 = vpop.permute.xlu0 %3552
    %3555 = vset.pattern.permute.xlu0 12
    %3556 = vperm.xlu0 %3555, %v2087
    %v3557 = vpop.permute.xlu0 %3556
    %3559 = vset.pattern.permute.xlu0 13
    %3560 = vperm.xlu0 %3559, %v2087
    %v3561 = vpop.permute.xlu0 %3560
    %3563 = vset.pattern.permute.xlu0 14
    %3564 = vperm.xlu0 %3563, %v2087
    %v3565 = vpop.permute.xlu0 %3564
    %3567 = vset.pattern.permute.xlu0 15
    %3568 = vperm.xlu0 %3567, %v2087
    %v3569 = vpop.permute.xlu0 %3568
    %3571 = vset.pattern.permute.xlu0 16
    %3572 = vperm.xlu0 %3571, %v2087
    %v3573 = vpop.permute.xlu0 %3572
    %3575 = vset.pattern.permute.xlu0 17
    %3576 = vperm.xlu0 %3575, %v2087
    %v3577 = vpop.permute.xlu0 %3576
    %3579 = vset.pattern.permute.xlu0 18
    %3580 = vperm.xlu0 %3579, %v2087
    %v3581 = vpop.permute.xlu0 %3580
    %3583 = vset.pattern.permute.xlu0 19
    %3584 = vperm.xlu0 %3583, %v2087
    %v3585 = vpop.permute.xlu0 %3584
    %v3587 = vsel %vm566, %v3509, %v3513
    %v3588 = vsel %vm869, %v3587, %v3517
    %v3589 = vsel %vm3477, %v3588, %v3521
    %v3590 = vsel %vm3479, %v3589, %v3525
    %v3591 = vsel %vm3481, %v3590, %v3529
    %v3592 = vsel %vm3483, %v3591, %v3533
    %v3593 = vsel %vm3485, %v3533, %v3537
    %v3594 = vsel %vm867, %v3593, %v3541
    %v3595 = vsel %vm3488, %v3594, %v3545
    %v3596 = vsel %vm3490, %v3595, %v3549
    %v3597 = vsel %vm3492, %v3596, %v3553
    %v3598 = vsel %vm3494, %v3597, %v3557
    %v3599 = vsel %vm3496, %v3557, %v3561
    %v3600 = vsel %vm865, %v3599, %v3565
    %v3601 = vsel %vm3499, %v3600, %v3569
    %v3602 = vsel %vm566, %v3573, %v3577
    %v3603 = vsel %vm869, %v3602, %v3581
    %v3604 = vsel %vm3477, %v3603, %v3585
    %3606 = vrot.lane.b32.xlu0 %v3604, 64
    %v3607 = vpop.permute.xlu0 %3606
    %v3609 = vsel %vm916, %v3601, %v3607
    %v3610 = vmul.f32 %v3484, %v3592
    %v3611 = vmul.f32 %v3495, %v3598
    %v3612 = vmul.f32 %v3505, %v3609
    %v3613 = vmul.f32 %v3503, %v3607
    %v3614 = vsub.f32 %v3426, %v3428
    %v3615 = vmul.f32 %v3614, 1.442695
    %v3616 = vpow.pop %v3615
    %v3617 = vmul.f32 %v3610, %v3616
    %v3618 = vmul.f32 %v3611, %v3616
    %v3619 = vmul.f32 %v3612, %v3616
    %v3620 = vmul.f32 %v3613, %v3616
    %3622 = vrot.lane.b32.xlu0 %v2709, 20
    %v3623 = vpop.permute.xlu0 %3622
    %3625 = vrot.lane.b32.xlu0 %v2709, 40
    %v3626 = vpop.permute.xlu0 %3625
    %3628 = vrot.lane.b32.xlu0 %v2709, 60
    %v3629 = vpop.permute.xlu0 %3628
    %3631 = vrot.lane.b32.xlu0 %v2709, 80
    %v3632 = vpop.permute.xlu0 %3631
    %3634 = vrot.lane.b32.xlu0 %v2709, 100
    %v3635 = vpop.permute.xlu0 %3634
    %3637 = vrot.lane.b32.xlu0 %v2709, 120
    %v3638 = vpop.permute.xlu0 %3637
    %3640 = vrot.lane.b32.xlu0 %v2709, 12
    %v3641 = vpop.permute.xlu0 %3640
    %3643 = vrot.lane.b32.xlu0 %v2709, 32
    %v3644 = vpop.permute.xlu0 %3643
    %3646 = vrot.lane.b32.xlu0 %v2709, 52
    %v3647 = vpop.permute.xlu0 %3646
    %3649 = vrot.lane.b32.xlu0 %v2709, 72
    %v3650 = vpop.permute.xlu0 %3649
    %3652 = vrot.lane.b32.xlu0 %v2709, 92
    %v3653 = vpop.permute.xlu0 %3652
    %3655 = vrot.lane.b32.xlu0 %v2709, 112
    %v3656 = vpop.permute.xlu0 %3655
    %3658 = vrot.lane.b32.xlu0 %v2709, 4
    %v3659 = vpop.permute.xlu0 %3658
    %3661 = vrot.lane.b32.xlu0 %v2709, 24
    %v3662 = vpop.permute.xlu0 %3661
    %3664 = vrot.lane.b32.xlu0 %v2709, 44
    %v3665 = vpop.permute.xlu0 %3664
    %v3667 = vsel %vm566, %v2709, %v3623
    %v3668 = vsel %vm869, %v3667, %v3626
    %v3669 = vsel %vm3477, %v3668, %v3629
    %v3670 = vsel %vm3479, %v3669, %v3632
    %v3671 = vsel %vm3481, %v3670, %v3635
    %v3672 = vsel %vm3483, %v3671, %v3638
    %v3673 = vsel %vm3485, %v3638, %v3641
    %v3674 = vsel %vm867, %v3673, %v3644
    %v3675 = vsel %vm3488, %v3674, %v3647
    %v3676 = vsel %vm3490, %v3675, %v3650
    %v3677 = vsel %vm3492, %v3676, %v3653
    %v3678 = vsel %vm3494, %v3677, %v3656
    %v3679 = vsel %vm3496, %v3656, %v3659
    %v3680 = vsel %vm865, %v3679, %v3662
    %v3681 = vsel %vm3499, %v3680, %v3665
    %3683 = vrot.lane.b32.xlu0 %v3669, 64
    %v3684 = vpop.permute.xlu0 %3683
    %v3686 = vsel %vm916, %v3681, %v3684
    %3688 = vset.pattern.permute.xlu0 0
    %3689 = vperm.xlu0 %3688, %v3331
    %v3690 = vpop.permute.xlu0 %3689
    %3692 = vset.pattern.permute.xlu0 1
    %3693 = vperm.xlu0 %3692, %v3331
    %v3694 = vpop.permute.xlu0 %3693
    %3696 = vset.pattern.permute.xlu0 2
    %3697 = vperm.xlu0 %3696, %v3331
    %v3698 = vpop.permute.xlu0 %3697
    %3700 = vset.pattern.permute.xlu0 3
    %3701 = vperm.xlu0 %3700, %v3331
    %v3702 = vpop.permute.xlu0 %3701
    %3704 = vset.pattern.permute.xlu0 4
    %3705 = vperm.xlu0 %3704, %v3331
    %v3706 = vpop.permute.xlu0 %3705
    %3708 = vset.pattern.permute.xlu0 5
    %3709 = vperm.xlu0 %3708, %v3331
    %v3710 = vpop.permute.xlu0 %3709
    %3712 = vset.pattern.permute.xlu0 6
    %3713 = vperm.xlu0 %3712, %v3331
    %v3714 = vpop.permute.xlu0 %3713
    %3716 = vset.pattern.permute.xlu0 7
    %3717 = vperm.xlu0 %3716, %v3331
    %v3718 = vpop.permute.xlu0 %3717
    %3720 = vset.pattern.permute.xlu0 8
    %3721 = vperm.xlu0 %3720, %v3331
    %v3722 = vpop.permute.xlu0 %3721
    %3724 = vset.pattern.permute.xlu0 9
    %3725 = vperm.xlu0 %3724, %v3331
    %v3726 = vpop.permute.xlu0 %3725
    %3728 = vset.pattern.permute.xlu0 10
    %3729 = vperm.xlu0 %3728, %v3331
    %v3730 = vpop.permute.xlu0 %3729
    %3732 = vset.pattern.permute.xlu0 11
    %3733 = vperm.xlu0 %3732, %v3331
    %v3734 = vpop.permute.xlu0 %3733
    %3736 = vset.pattern.permute.xlu0 12
    %3737 = vperm.xlu0 %3736, %v3331
    %v3738 = vpop.permute.xlu0 %3737
    %3740 = vset.pattern.permute.xlu0 13
    %3741 = vperm.xlu0 %3740, %v3331
    %v3742 = vpop.permute.xlu0 %3741
    %3744 = vset.pattern.permute.xlu0 14
    %3745 = vperm.xlu0 %3744, %v3331
    %v3746 = vpop.permute.xlu0 %3745
    %3748 = vset.pattern.permute.xlu0 15
    %3749 = vperm.xlu0 %3748, %v3331
    %v3750 = vpop.permute.xlu0 %3749
    %3752 = vset.pattern.permute.xlu0 16
    %3753 = vperm.xlu0 %3752, %v3331
    %v3754 = vpop.permute.xlu0 %3753
    %3756 = vset.pattern.permute.xlu0 17
    %3757 = vperm.xlu0 %3756, %v3331
    %v3758 = vpop.permute.xlu0 %3757
    %3760 = vset.pattern.permute.xlu0 18
    %3761 = vperm.xlu0 %3760, %v3331
    %v3762 = vpop.permute.xlu0 %3761
    %3764 = vset.pattern.permute.xlu0 19
    %3765 = vperm.xlu0 %3764, %v3331
    %v3766 = vpop.permute.xlu0 %3765
    %v3768 = vsel %vm566, %v3690, %v3694
    %v3769 = vsel %vm869, %v3768, %v3698
    %v3770 = vsel %vm3477, %v3769, %v3702
    %v3771 = vsel %vm3479, %v3770, %v3706
    %v3772 = vsel %vm3481, %v3771, %v3710
    %v3773 = vsel %vm3483, %v3772, %v3714
    %v3774 = vsel %vm3485, %v3714, %v3718
    %v3775 = vsel %vm867, %v3774, %v3722
    %v3776 = vsel %vm3488, %v3775, %v3726
    %v3777 = vsel %vm3490, %v3776, %v3730
    %v3778 = vsel %vm3492, %v3777, %v3734
    %v3779 = vsel %vm3494, %v3778, %v3738
    %v3780 = vsel %vm3496, %v3738, %v3742
    %v3781 = vsel %vm865, %v3780, %v3746
    %v3782 = vsel %vm3499, %v3781, %v3750
    %v3783 = vsel %vm566, %v3754, %v3758
    %v3784 = vsel %vm869, %v3783, %v3762
    %v3785 = vsel %vm3477, %v3784, %v3766
    %3787 = vrot.lane.b32.xlu0 %v3785, 64
    %v3788 = vpop.permute.xlu0 %3787
    %v3790 = vsel %vm916, %v3782, %v3788
    %v3791 = vmul.f32 %v3672, %v3773
    %v3792 = vmul.f32 %v3678, %v3779
    %v3793 = vmul.f32 %v3686, %v3790
    %v3794 = vmul.f32 %v3684, %v3788
    %v3795 = vsub.f32 %v3427, %v3428
    %v3796 = vmul.f32 %v3795, 1.442695
    %v3797 = vpow.pop %v3796
    %v3798 = vmul.f32 %v3791, %v3797
    %v3799 = vmul.f32 %v3792, %v3797
    %v3800 = vmul.f32 %v3793, %v3797
    %v3801 = vmul.f32 %v3794, %v3797
    %v3805 = vcombine.high %v3423, %v3423
    %v3806 = vcombine.high %v3424, %v3424
    %3807 = vrot.lane.b32.xlu0 %v3805, 112
    %v3808 = vpop.permute.xlu0 %3807
    %3809 = vrot.lane.b32.xlu0 %v3424, 112
    %v3810 = vpop.permute.xlu0 %3809
    %3811 = vrot.lane.b32.xlu0 %v3806, 112
    %v3812 = vpop.permute.xlu0 %3811
    %3813 = vrot.lane.b32.xlu0 %v3425, 112
    %v3814 = vpop.permute.xlu0 %3813
    %v3815 = vsel %vm3494, %v3808, %v3810
    %v3816 = vsel %vm3494, %v3810, %v3812
    %v3817 = vsel %vm3494, %v3812, %v3814
    %v3822 = vsel %vm863, %v3801, 0
    %v3824 = vsel %vm863, %v3814, 0
    %v3826 = vand.u32 %v3816, 4294901760
    %3827 = vmatprep.subr.mxu0 %v3826
    %v3828 = vand.u32 %v3815, 4294901760
    %3829 = vmatpush1.xpose.msra.mxu0 %v3828
    %3830 = vmatprep.subr.mxu0 0.0
    %3831 = vmatpush1.xpose.msra.mxu0 0.0
    %3832 = vmatprep.subr.mxu0 0.0
    %3833 = vmatpush1.xpose.msra.mxu0 0.0
    %3834 = vmatprep.subr.mxu0 0.0
    %3835 = vmatpush1.xpose.msra.mxu0 0.0
    %3836 = vmatprep.subr.mxu0 0.0
    %3837 = vmatpush1.xpose.msra.mxu0 0.0
    %3838 = vmatprep.subr.mxu0 0.0
    %3839 = vmatpush1.xpose.msra.mxu0 0.0
    %3840 = vmatprep.subr.mxu0 0.0
    %3841 = vmatpush1.xpose.msra.mxu0 0.0
    %3842 = vmatprep.subr.mxu0 0.0
    %3843 = vmatpush1.xpose.msra.mxu0 0.0
    %3844 = vmatprep.subr.mxu0 0.0
    %3845 = vmatpush1.xpose.msra.mxu0 0.0
    %3846 = vmatprep.subr.mxu0 0.0
    %3847 = vmatpush1.xpose.msra.mxu0 0.0
    %3848 = vmatprep.subr.mxu0 0.0
    %3849 = vmatpush1.xpose.msra.mxu0 0.0
    %3850 = vmatprep.subr.mxu0 0.0
    %3851 = vmatpush1.xpose.msra.mxu0 0.0
    %3852 = vmatprep.subr.mxu0 0.0
    %3853 = vmatpush1.xpose.msra.mxu0 0.0
    %3854 = vmatprep.subr.mxu0 0.0
    %3855 = vmatpush1.xpose.msra.mxu0 0.0
    %3856 = vmatprep.subr.mxu0 0.0
    %3857 = vmatpush1.xpose.msra.mxu0 0.0
    %3858 = vmatprep.subr.mxu0 0.0
    %3859 = vmatpush1.xpose.msra.mxu0 0.0
    %3860 = vmatprep.subr.mxu0 0.0
    %3861 = vmatpush1.xpose.msra.mxu0 0.0
    %3862 = vmatprep.subr.mxu0 0.0
    %3863 = vmatpush1.xpose.msra.mxu0 0.0
    %3864 = vmatprep.subr.mxu0 0.0
    %3865 = vmatpush1.xpose.msra.mxu0 0.0
    %3866 = vmatprep.subr.mxu0 0.0
    %3867 = vmatpush1.xpose.msra.mxu0 0.0
    %3868 = vmatprep.subr.mxu0 0.0
    %3869 = vmatpush1.xpose.msra.mxu0 0.0
    %3870 = vmatprep.subr.mxu0 0.0
    %3871 = vmatpush1.xpose.msra.mxu0 0.0
    %3872 = vmatprep.subr.mxu0 0.0
    %3873 = vmatpush1.xpose.msra.mxu0 0.0
    %3874 = vmatprep.subr.mxu0 0.0
    %3875 = vmatpush1.xpose.msra.mxu0 0.0
    %3876 = vmatprep.subr.mxu0 0.0
    %3877 = vmatpush1.xpose.msra.mxu0 0.0
    %3878 = vmatprep.subr.mxu0 0.0
    %3879 = vmatpush1.xpose.msra.mxu0 0.0
    %3880 = vmatprep.subr.mxu0 0.0
    %3881 = vmatpush1.xpose.msra.mxu0 0.0
    %3882 = vmatprep.subr.mxu0 0.0
    %3883 = vmatpush1.xpose.msra.mxu0 0.0
    %3884 = vmatprep.subr.mxu0 0.0
    %3885 = vmatpush1.xpose.msra.mxu0 0.0
    %3886 = vmatprep.subr.mxu0 0.0
    %3887 = vmatpush1.xpose.msra.mxu0 0.0
    %3888 = vmatprep.subr.mxu0 0.0
    %3889 = vmatpush1.xpose.msra.mxu0 0.0
    %3890 = vmatprep.subr.mxu0 0.0
    %3891 = vmatpush1.xpose.msra.mxu0 0.0
    %v3892 = vand.u32 %v3799, 4294901760
    %v3893 = vsub.f32 %v3799, %v3892
    %v3894 = vand.u32 %v3893, 4294901760
    %v3895 = vsub.f32 %v3893, %v3894
    %v3896 = vand.u32 %v3895, 4294901760
    %3897 = vmatprep.mubr.f32.mxu0 %v3896
    %v3898 = vand.u32 %v3798, 4294901760
    %v3899 = vsub.f32 %v3798, %v3898
    %v3900 = vand.u32 %v3899, 4294901760
    %v3901 = vsub.f32 %v3899, %v3900
    %v3902 = vand.u32 %v3901, 4294901760
    %3903 = vmatmul.mubr.f32.gmra.mrb[0].mxu0 %v3902
    %v3904 = vpop.f32.mrb[0].mxu0
    %v3905 = vadd.f32 0.0, %v3904
    %v3906 = vpop.f32.mrb[0].mxu0
    %3907 = vdwg.mxu0
    %v3908 = vand.u32 %v3816, 4294901760
    %v3909 = vsub.f32 %v3816, %v3908
    %v3910 = vand.u32 %v3909, 4294901760
    %v3911 = vsub.f32 %v3909, %v3910
    %v3912 = vand.u32 %v3911, 4294901760
    %3913 = vmatprep.subr.mxu0 %v3912
    %v3914 = vand.u32 %v3815, 4294901760
    %v3915 = vsub.f32 %v3815, %v3914
    %v3916 = vand.u32 %v3915, 4294901760
    %v3917 = vsub.f32 %v3915, %v3916
    %v3918 = vand.u32 %v3917, 4294901760
    %3919 = vmatpush1.xpose.msra.mxu0 %v3918
    %3920 = vmatprep.subr.mxu0 0.0
    %3921 = vmatpush1.xpose.msra.mxu0 0.0
    %3922 = vmatprep.subr.mxu0 0.0
    %3923 = vmatpush1.xpose.msra.mxu0 0.0
    %3924 = vmatprep.subr.mxu0 0.0
    %3925 = vmatpush1.xpose.msra.mxu0 0.0
    %3926 = vmatprep.subr.mxu0 0.0
    %3927 = vmatpush1.xpose.msra.mxu0 0.0
    %3928 = vmatprep.subr.mxu0 0.0
    %3929 = vmatpush1.xpose.msra.mxu0 0.0
    %3930 = vmatprep.subr.mxu0 0.0
    %3931 = vmatpush1.xpose.msra.mxu0 0.0
    %3932 = vmatprep.subr.mxu0 0.0
    %3933 = vmatpush1.xpose.msra.mxu0 0.0
    %3934 = vmatprep.subr.mxu0 0.0
    %3935 = vmatpush1.xpose.msra.mxu0 0.0
    %3936 = vmatprep.subr.mxu0 0.0
    %3937 = vmatpush1.xpose.msra.mxu0 0.0
    %3938 = vmatprep.subr.mxu0 0.0
    %3939 = vmatpush1.xpose.msra.mxu0 0.0
    %3940 = vmatprep.subr.mxu0 0.0
    %3941 = vmatpush1.xpose.msra.mxu0 0.0
    %3942 = vmatprep.subr.mxu0 0.0
    %3943 = vmatpush1.xpose.msra.mxu0 0.0
    %3944 = vmatprep.subr.mxu0 0.0
    %3945 = vmatpush1.xpose.msra.mxu0 0.0
    %3946 = vmatprep.subr.mxu0 0.0
    %3947 = vmatpush1.xpose.msra.mxu0 0.0
    %3948 = vmatprep.subr.mxu0 0.0
    %3949 = vmatpush1.xpose.msra.mxu0 0.0
    %3950 = vmatprep.subr.mxu0 0.0
    %3951 = vmatpush1.xpose.msra.mxu0 0.0
    %3952 = vmatprep.subr.mxu0 0.0
    %3953 = vmatpush1.xpose.msra.mxu0 0.0
    %3954 = vmatprep.subr.mxu0 0.0
    %3955 = vmatpush1.xpose.msra.mxu0 0.0
    %3956 = vmatprep.subr.mxu0 0.0
    %3957 = vmatpush1.xpose.msra.mxu0 0.0
    %3958 = vmatprep.subr.mxu0 0.0
    %3959 = vmatpush1.xpose.msra.mxu0 0.0
    %3960 = vmatprep.subr.mxu0 0.0
    %3961 = vmatpush1.xpose.msra.mxu0 0.0
    %3962 = vmatprep.subr.mxu0 0.0
    %3963 = vmatpush1.xpose.msra.mxu0 0.0
    %3964 = vmatprep.subr.mxu0 0.0
    %3965 = vmatpush1.xpose.msra.mxu0 0.0
    %3966 = vmatprep.subr.mxu0 0.0
    %3967 = vmatpush1.xpose.msra.mxu0 0.0
    %3968 = vmatprep.subr.mxu0 0.0
    %3969 = vmatpush1.xpose.msra.mxu0 0.0
    %3970 = vmatprep.subr.mxu0 0.0
    %3971 = vmatpush1.xpose.msra.mxu0 0.0
    %3972 = vmatprep.subr.mxu0 0.0
    %3973 = vmatpush1.xpose.msra.mxu0 0.0
    %3974 = vmatprep.subr.mxu0 0.0
    %3975 = vmatpush1.xpose.msra.mxu0 0.0
    %3976 = vmatprep.subr.mxu0 0.0
    %3977 = vmatpush1.xpose.msra.mxu0 0.0
    %3978 = vmatprep.subr.mxu0 0.0
    %3979 = vmatpush1.xpose.msra.mxu0 0.0
    %3980 = vmatprep.subr.mxu0 0.0
    %3981 = vmatpush1.xpose.msra.mxu0 0.0
    %v3982 = vand.u32 %v3799, 4294901760
    %3983 = vmatprep.mubr.f32.mxu0 %v3982
    %v3984 = vand.u32 %v3798, 4294901760
    %3985 = vmatmul.mubr.f32.gmra.mrb[0].mxu0 %v3984
    %v3986 = vpop.f32.mrb[0].mxu0
    %v3987 = vadd.f32 %v3905, %v3986
    %v3988 = vpop.f32.mrb[0].mxu0
    %3989 = vdwg.mxu0
    %v3990 = vand.u32 %v3816, 4294901760
    %v3991 = vsub.f32 %v3816, %v3990
    %3992 = vmatprep.subr.mxu0 %v3991
    %v3993 = vand.u32 %v3815, 4294901760
    %v3994 = vsub.f32 %v3815, %v3993
    %3995 = vmatpush1.xpose.msra.mxu0 %v3994
    %3996 = vmatprep.subr.mxu0 0.0
    %3997 = vmatpush1.xpose.msra.mxu0 0.0
    %3998 = vmatprep.subr.mxu0 0.0
    %3999 = vmatpush1.xpose.msra.mxu0 0.0
    %4000 = vmatprep.subr.mxu0 0.0
    %4001 = vmatpush1.xpose.msra.mxu0 0.0
    %4002 = vmatprep.subr.mxu0 0.0
    %4003 = vmatpush1.xpose.msra.mxu0 0.0
    %4004 = vmatprep.subr.mxu0 0.0
    %4005 = vmatpush1.xpose.msra.mxu0 0.0
    %4006 = vmatprep.subr.mxu0 0.0
    %4007 = vmatpush1.xpose.msra.mxu0 0.0
    %4008 = vmatprep.subr.mxu0 0.0
    %4009 = vmatpush1.xpose.msra.mxu0 0.0
    %4010 = vmatprep.subr.mxu0 0.0
    %4011 = vmatpush1.xpose.msra.mxu0 0.0
    %4012 = vmatprep.subr.mxu0 0.0
    %4013 = vmatpush1.xpose.msra.mxu0 0.0
    %4014 = vmatprep.subr.mxu0 0.0
    %4015 = vmatpush1.xpose.msra.mxu0 0.0
    %4016 = vmatprep.subr.mxu0 0.0
    %4017 = vmatpush1.xpose.msra.mxu0 0.0
    %4018 = vmatprep.subr.mxu0 0.0
    %4019 = vmatpush1.xpose.msra.mxu0 0.0
    %4020 = vmatprep.subr.mxu0 0.0
    %4021 = vmatpush1.xpose.msra.mxu0 0.0
    %4022 = vmatprep.subr.mxu0 0.0
    %4023 = vmatpush1.xpose.msra.mxu0 0.0
    %4024 = vmatprep.subr.mxu0 0.0
    %4025 = vmatpush1.xpose.msra.mxu0 0.0
    %4026 = vmatprep.subr.mxu0 0.0
    %4027 = vmatpush1.xpose.msra.mxu0 0.0
    %4028 = vmatprep.subr.mxu0 0.0
    %4029 = vmatpush1.xpose.msra.mxu0 0.0
    %4030 = vmatprep.subr.mxu0 0.0
    %4031 = vmatpush1.xpose.msra.mxu0 0.0
    %4032 = vmatprep.subr.mxu0 0.0
    %4033 = vmatpush1.xpose.msra.mxu0 0.0
    %4034 = vmatprep.subr.mxu0 0.0
    %4035 = vmatpush1.xpose.msra.mxu0 0.0
    %4036 = vmatprep.subr.mxu0 0.0
    %4037 = vmatpush1.xpose.msra.mxu0 0.0
    %4038 = vmatprep.subr.mxu0 0.0
    %4039 = vmatpush1.xpose.msra.mxu0 0.0
    %4040 = vmatprep.subr.mxu0 0.0
    %4041 = vmatpush1.xpose.msra.mxu0 0.0
    %4042 = vmatprep.subr.mxu0 0.0
    %4043 = vmatpush1.xpose.msra.mxu0 0.0
    %4044 = vmatprep.subr.mxu0 0.0
    %4045 = vmatpush1.xpose.msra.mxu0 0.0
    %4046 = vmatprep.subr.mxu0 0.0
    %4047 = vmatpush1.xpose.msra.mxu0 0.0
    %4048 = vmatprep.subr.mxu0 0.0
    %4049 = vmatpush1.xpose.msra.mxu0 0.0
    %4050 = vmatprep.subr.mxu0 0.0
    %4051 = vmatpush1.xpose.msra.mxu0 0.0
    %4052 = vmatprep.subr.mxu0 0.0
    %4053 = vmatpush1.xpose.msra.mxu0 0.0
    %4054 = vmatprep.subr.mxu0 0.0
    %4055 = vmatpush1.xpose.msra.mxu0 0.0
    %4056 = vmatprep.subr.mxu0 0.0
    %4057 = vmatpush1.xpose.msra.mxu0 0.0
    %v4058 = vand.u32 %v3799, 4294901760
    %v4059 = vsub.f32 %v3799, %v4058
    %4060 = vmatprep.mubr.f32.mxu0 %v4059
    %v4061 = vand.u32 %v3798, 4294901760
    %v4062 = vsub.f32 %v3798, %v4061
    %4063 = vmatmul.mubr.f32.gmra.mrb[0].mxu0 %v4062
    %v4064 = vpop.f32.mrb[0].mxu0
    %v4065 = vadd.f32 %v3987, %v4064
    %v4066 = vpop.f32.mrb[0].mxu0
    %4067 = vdwg.mxu0
    %v4068 = vand.u32 %v3816, 4294901760
    %4069 = vmatprep.subr.mxu0 %v4068
    %v4070 = vand.u32 %v3815, 4294901760
    %4071 = vmatpush1.xpose.msra.mxu0 %v4070
    %4072 = vmatprep.subr.mxu0 0.0
    %4073 = vmatpush1.xpose.msra.mxu0 0.0
    %4074 = vmatprep.subr.mxu0 0.0
    %4075 = vmatpush1.xpose.msra.mxu0 0.0
    %4076 = vmatprep.subr.mxu0 0.0
    %4077 = vmatpush1.xpose.msra.mxu0 0.0
    %4078 = vmatprep.subr.mxu0 0.0
    %4079 = vmatpush1.xpose.msra.mxu0 0.0
    %4080 = vmatprep.subr.mxu0 0.0
    %4081 = vmatpush1.xpose.msra.mxu0 0.0
    %4082 = vmatprep.subr.mxu0 0.0
    %4083 = vmatpush1.xpose.msra.mxu0 0.0
    %4084 = vmatprep.subr.mxu0 0.0
    %4085 = vmatpush1.xpose.msra.mxu0 0.0
    %4086 = vmatprep.subr.mxu0 0.0
    %4087 = vmatpush1.xpose.msra.mxu0 0.0
    %4088 = vmatprep.subr.mxu0 0.0
    %4089 = vmatpush1.xpose.msra.mxu0 0.0
    %4090 = vmatprep.subr.mxu0 0.0
    %4091 = vmatpush1.xpose.msra.mxu0 0.0
    %4092 = vmatprep.subr.mxu0 0.0
    %4093 = vmatpush1.xpose.msra.mxu0 0.0
    %4094 = vmatprep.subr.mxu0 0.0
    %4095 = vmatpush1.xpose.msra.mxu0 0.0
    %4096 = vmatprep.subr.mxu0 0.0
    %4097 = vmatpush1.xpose.msra.mxu0 0.0
    %4098 = vmatprep.subr.mxu0 0.0
    %4099 = vmatpush1.xpose.msra.mxu0 0.0
    %4100 = vmatprep.subr.mxu0 0.0
    %4101 = vmatpush1.xpose.msra.mxu0 0.0
    %4102 = vmatprep.subr.mxu0 0.0
    %4103 = vmatpush1.xpose.msra.mxu0 0.0
    %4104 = vmatprep.subr.mxu0 0.0
    %4105 = vmatpush1.xpose.msra.mxu0 0.0
    %4106 = vmatprep.subr.mxu0 0.0
    %4107 = vmatpush1.xpose.msra.mxu0 0.0
    %4108 = vmatprep.subr.mxu0 0.0
    %4109 = vmatpush1.xpose.msra.mxu0 0.0
    %4110 = vmatprep.subr.mxu0 0.0
    %4111 = vmatpush1.xpose.msra.mxu0 0.0
    %4112 = vmatprep.subr.mxu0 0.0
    %4113 = vmatpush1.xpose.msra.mxu0 0.0
    %4114 = vmatprep.subr.mxu0 0.0
    %4115 = vmatpush1.xpose.msra.mxu0 0.0
    %4116 = vmatprep.subr.mxu0 0.0
    %4117 = vmatpush1.xpose.msra.mxu0 0.0
    %4118 = vmatprep.subr.mxu0 0.0
    %4119 = vmatpush1.xpose.msra.mxu0 0.0
    %4120 = vmatprep.subr.mxu0 0.0
    %4121 = vmatpush1.xpose.msra.mxu0 0.0
    %4122 = vmatprep.subr.mxu0 0.0
    %4123 = vmatpush1.xpose.msra.mxu0 0.0
    %4124 = vmatprep.subr.mxu0 0.0
    %4125 = vmatpush1.xpose.msra.mxu0 0.0
    %4126 = vmatprep.subr.mxu0 0.0
    %4127 = vmatpush1.xpose.msra.mxu0 0.0
    %4128 = vmatprep.subr.mxu0 0.0
    %4129 = vmatpush1.xpose.msra.mxu0 0.0
    %4130 = vmatprep.subr.mxu0 0.0
    %4131 = vmatpush1.xpose.msra.mxu0 0.0
    %4132 = vmatprep.subr.mxu0 0.0
    %4133 = vmatpush1.xpose.msra.mxu0 0.0
    %v4134 = vand.u32 %v3799, 4294901760
    %v4135 = vsub.f32 %v3799, %v4134
    %v4136 = vand.u32 %v4135, 4294901760
    %4137 = vmatprep.mubr.f32.mxu0 %v4136
    %v4138 = vand.u32 %v3798, 4294901760
    %v4139 = vsub.f32 %v3798, %v4138
    %v4140 = vand.u32 %v4139, 4294901760
    %4141 = vmatmul.mubr.f32.gmra.mrb[0].mxu0 %v4140
    %v4142 = vpop.f32.mrb[0].mxu0
    %v4143 = vadd.f32 %v4065, %v4142
    %v4144 = vpop.f32.mrb[0].mxu0
    %4145 = vdwg.mxu0
    %v4146 = vand.u32 %v3816, 4294901760
    %v4147 = vsub.f32 %v3816, %v4146
    %v4148 = vand.u32 %v4147, 4294901760
    %4149 = vmatprep.subr.mxu0 %v4148
    %v4150 = vand.u32 %v3815, 4294901760
    %v4151 = vsub.f32 %v3815, %v4150
    %v4152 = vand.u32 %v4151, 4294901760
    %4153 = vmatpush1.xpose.msra.mxu0 %v4152
    %4154 = vmatprep.subr.mxu0 0.0
    %4155 = vmatpush1.xpose.msra.mxu0 0.0
    %4156 = vmatprep.subr.mxu0 0.0
    %4157 = vmatpush1.xpose.msra.mxu0 0.0
    %4158 = vmatprep.subr.mxu0 0.0
    %4159 = vmatpush1.xpose.msra.mxu0 0.0
    %4160 = vmatprep.subr.mxu0 0.0
    %4161 = vmatpush1.xpose.msra.mxu0 0.0
    %4162 = vmatprep.subr.mxu0 0.0
    %4163 = vmatpush1.xpose.msra.mxu0 0.0
    %4164 = vmatprep.subr.mxu0 0.0
    %4165 = vmatpush1.xpose.msra.mxu0 0.0
    %4166 = vmatprep.subr.mxu0 0.0
    %4167 = vmatpush1.xpose.msra.mxu0 0.0
    %4168 = vmatprep.subr.mxu0 0.0
    %4169 = vmatpush1.xpose.msra.mxu0 0.0
    %4170 = vmatprep.subr.mxu0 0.0
    %4171 = vmatpush1.xpose.msra.mxu0 0.0
    %4172 = vmatprep.subr.mxu0 0.0
    %4173 = vmatpush1.xpose.msra.mxu0 0.0
    %4174 = vmatprep.subr.mxu0 0.0
    %4175 = vmatpush1.xpose.msra.mxu0 0.0
    %4176 = vmatprep.subr.mxu0 0.0
    %4177 = vmatpush1.xpose.msra.mxu0 0.0
    %4178 = vmatprep.subr.mxu0 0.0
    %4179 = vmatpush1.xpose.msra.mxu0 0.0
    %4180 = vmatprep.subr.mxu0 0.0
    %4181 = vmatpush1.xpose.msra.mxu0 0.0
    %4182 = vmatprep.subr.mxu0 0.0
    %4183 = vmatpush1.xpose.msra.mxu0 0.0
    %4184 = vmatprep.subr.mxu0 0.0
    %4185 = vmatpush1.xpose.msra.mxu0 0.0
    %4186 = vmatprep.subr.mxu0 0.0
    %4187 = vmatpush1.xpose.msra.mxu0 0.0
    %4188 = vmatprep.subr.mxu0 0.0
    %4189 = vmatpush1.xpose.msra.mxu0 0.0
    %4190 = vmatprep.subr.mxu0 0.0
    %4191 = vmatpush1.xpose.msra.mxu0 0.0
    %4192 = vmatprep.subr.mxu0 0.0
    %4193 = vmatpush1.xpose.msra.mxu0 0.0
    %4194 = vmatprep.subr.mxu0 0.0
    %4195 = vmatpush1.xpose.msra.mxu0 0.0
    %4196 = vmatprep.subr.mxu0 0.0
    %4197 = vmatpush1.xpose.msra.mxu0 0.0
    %4198 = vmatprep.subr.mxu0 0.0
    %4199 = vmatpush1.xpose.msra.mxu0 0.0
    %4200 = vmatprep.subr.mxu0 0.0
    %4201 = vmatpush1.xpose.msra.mxu0 0.0
    %4202 = vmatprep.subr.mxu0 0.0
    %4203 = vmatpush1.xpose.msra.mxu0 0.0
    %4204 = vmatprep.subr.mxu0 0.0
    %4205 = vmatpush1.xpose.msra.mxu0 0.0
    %4206 = vmatprep.subr.mxu0 0.0
    %4207 = vmatpush1.xpose.msra.mxu0 0.0
    %4208 = vmatprep.subr.mxu0 0.0
    %4209 = vmatpush1.xpose.msra.mxu0 0.0
    %4210 = vmatprep.subr.mxu0 0.0
    %4211 = vmatpush1.xpose.msra.mxu0 0.0
    %4212 = vmatprep.subr.mxu0 0.0
    %4213 = vmatpush1.xpose.msra.mxu0 0.0
    %4214 = vmatprep.subr.mxu0 0.0
    %4215 = vmatpush1.xpose.msra.mxu0 0.0
    %v4216 = vand.u32 %v3799, 4294901760
    %4217 = vmatprep.mubr.f32.mxu0 %v4216
    %v4218 = vand.u32 %v3798, 4294901760
    %4219 = vmatmul.mubr.f32.gmra.mrb[0].mxu0 %v4218
    %v4220 = vpop.f32.mrb[0].mxu0
    %v4221 = vadd.f32 %v4143, %v4220
    %v4222 = vpop.f32.mrb[0].mxu0
    %4223 = vdwg.mxu0
    %v4224 = vand.u32 %v3816, 4294901760
    %4225 = vmatprep.subr.mxu0 %v4224
    %v4226 = vand.u32 %v3815, 4294901760
    %4227 = vmatpush1.xpose.msra.mxu0 %v4226
    %4228 = vmatprep.subr.mxu0 0.0
    %4229 = vmatpush1.xpose.msra.mxu0 0.0
    %4230 = vmatprep.subr.mxu0 0.0
    %4231 = vmatpush1.xpose.msra.mxu0 0.0
    %4232 = vmatprep.subr.mxu0 0.0
    %4233 = vmatpush1.xpose.msra.mxu0 0.0
    %4234 = vmatprep.subr.mxu0 0.0
    %4235 = vmatpush1.xpose.msra.mxu0 0.0
    %4236 = vmatprep.subr.mxu0 0.0
    %4237 = vmatpush1.xpose.msra.mxu0 0.0
    %4238 = vmatprep.subr.mxu0 0.0
    %4239 = vmatpush1.xpose.msra.mxu0 0.0
    %4240 = vmatprep.subr.mxu0 0.0
    %4241 = vmatpush1.xpose.msra.mxu0 0.0
    %4242 = vmatprep.subr.mxu0 0.0
    %4243 = vmatpush1.xpose.msra.mxu0 0.0
    %4244 = vmatprep.subr.mxu0 0.0
    %4245 = vmatpush1.xpose.msra.mxu0 0.0
    %4246 = vmatprep.subr.mxu0 0.0
    %4247 = vmatpush1.xpose.msra.mxu0 0.0
    %4248 = vmatprep.subr.mxu0 0.0
    %4249 = vmatpush1.xpose.msra.mxu0 0.0
    %4250 = vmatprep.subr.mxu0 0.0
    %4251 = vmatpush1.xpose.msra.mxu0 0.0
    %4252 = vmatprep.subr.mxu0 0.0
    %4253 = vmatpush1.xpose.msra.mxu0 0.0
    %4254 = vmatprep.subr.mxu0 0.0
    %4255 = vmatpush1.xpose.msra.mxu0 0.0
    %4256 = vmatprep.subr.mxu0 0.0
    %4257 = vmatpush1.xpose.msra.mxu0 0.0
    %4258 = vmatprep.subr.mxu0 0.0
    %4259 = vmatpush1.xpose.msra.mxu0 0.0
    %4260 = vmatprep.subr.mxu0 0.0
    %4261 = vmatpush1.xpose.msra.mxu0 0.0
    %4262 = vmatprep.subr.mxu0 0.0
    %4263 = vmatpush1.xpose.msra.mxu0 0.0
    %4264 = vmatprep.subr.mxu0 0.0
    %4265 = vmatpush1.xpose.msra.mxu0 0.0
    %4266 = vmatprep.subr.mxu0 0.0
    %4267 = vmatpush1.xpose.msra.mxu0 0.0
    %4268 = vmatprep.subr.mxu0 0.0
    %4269 = vmatpush1.xpose.msra.mxu0 0.0
    %4270 = vmatprep.subr.mxu0 0.0
    %4271 = vmatpush1.xpose.msra.mxu0 0.0
    %4272 = vmatprep.subr.mxu0 0.0
    %4273 = vmatpush1.xpose.msra.mxu0 0.0
    %4274 = vmatprep.subr.mxu0 0.0
    %4275 = vmatpush1.xpose.msra.mxu0 0.0
    %4276 = vmatprep.subr.mxu0 0.0
    %4277 = vmatpush1.xpose.msra.mxu0 0.0
    %4278 = vmatprep.subr.mxu0 0.0
    %4279 = vmatpush1.xpose.msra.mxu0 0.0
    %4280 = vmatprep.subr.mxu0 0.0
    %4281 = vmatpush1.xpose.msra.mxu0 0.0
    %4282 = vmatprep.subr.mxu0 0.0
    %4283 = vmatpush1.xpose.msra.mxu0 0.0
    %4284 = vmatprep.subr.mxu0 0.0
    %4285 = vmatpush1.xpose.msra.mxu0 0.0
    %4286 = vmatprep.subr.mxu0 0.0
    %4287 = vmatpush1.xpose.msra.mxu0 0.0
    %4288 = vmatprep.subr.mxu0 0.0
    %4289 = vmatpush1.xpose.msra.mxu0 0.0
    %v4290 = vand.u32 %v3799, 4294901760
    %4291 = vmatprep.mubr.f32.mxu0 %v4290
    %v4292 = vand.u32 %v3798, 4294901760
    %4293 = vmatmul.mubr.f32.gmra.mrb[0].mxu0 %v4292
    %v4294 = vpop.f32.mrb[0].mxu0
    %v4295 = vadd.f32 %v4221, %v4294
    %v4296 = vpop.f32.mrb[0].mxu0
    %4297 = vdwg.mxu0
    %v4298 = vand.u32 %v3824, 4294901760
    %4299 = vmatprep.subr.mxu0 %v4298
    %v4300 = vand.u32 %v3817, 4294901760
    %4301 = vmatpush1.xpose.msra.mxu0 %v4300
    %4302 = vmatprep.subr.mxu0 0.0
    %4303 = vmatpush1.xpose.msra.mxu0 0.0
    %4304 = vmatprep.subr.mxu0 0.0
    %4305 = vmatpush1.xpose.msra.mxu0 0.0
    %4306 = vmatprep.subr.mxu0 0.0
    %4307 = vmatpush1.xpose.msra.mxu0 0.0
    %4308 = vmatprep.subr.mxu0 0.0
    %4309 = vmatpush1.xpose.msra.mxu0 0.0
    %4310 = vmatprep.subr.mxu0 0.0
    %4311 = vmatpush1.xpose.msra.mxu0 0.0
    %4312 = vmatprep.subr.mxu0 0.0
    %4313 = vmatpush1.xpose.msra.mxu0 0.0
    %4314 = vmatprep.subr.mxu0 0.0
    %4315 = vmatpush1.xpose.msra.mxu0 0.0
    %4316 = vmatprep.subr.mxu0 0.0
    %4317 = vmatpush1.xpose.msra.mxu0 0.0
    %4318 = vmatprep.subr.mxu0 0.0
    %4319 = vmatpush1.xpose.msra.mxu0 0.0
    %4320 = vmatprep.subr.mxu0 0.0
    %4321 = vmatpush1.xpose.msra.mxu0 0.0
    %4322 = vmatprep.subr.mxu0 0.0
    %4323 = vmatpush1.xpose.msra.mxu0 0.0
    %4324 = vmatprep.subr.mxu0 0.0
    %4325 = vmatpush1.xpose.msra.mxu0 0.0
    %4326 = vmatprep.subr.mxu0 0.0
    %4327 = vmatpush1.xpose.msra.mxu0 0.0
    %4328 = vmatprep.subr.mxu0 0.0
    %4329 = vmatpush1.xpose.msra.mxu0 0.0
    %4330 = vmatprep.subr.mxu0 0.0
    %4331 = vmatpush1.xpose.msra.mxu0 0.0
    %4332 = vmatprep.subr.mxu0 0.0
    %4333 = vmatpush1.xpose.msra.mxu0 0.0
    %4334 = vmatprep.subr.mxu0 0.0
    %4335 = vmatpush1.xpose.msra.mxu0 0.0
    %4336 = vmatprep.subr.mxu0 0.0
    %4337 = vmatpush1.xpose.msra.mxu0 0.0
    %4338 = vmatprep.subr.mxu0 0.0
    %4339 = vmatpush1.xpose.msra.mxu0 0.0
    %4340 = vmatprep.subr.mxu0 0.0
    %4341 = vmatpush1.xpose.msra.mxu0 0.0
    %4342 = vmatprep.subr.mxu0 0.0
    %4343 = vmatpush1.xpose.msra.mxu0 0.0
    %4344 = vmatprep.subr.mxu0 0.0
    %4345 = vmatpush1.xpose.msra.mxu0 0.0
    %4346 = vmatprep.subr.mxu0 0.0
    %4347 = vmatpush1.xpose.msra.mxu0 0.0
    %4348 = vmatprep.subr.mxu0 0.0
    %4349 = vmatpush1.xpose.msra.mxu0 0.0
    %4350 = vmatprep.subr.mxu0 0.0
    %4351 = vmatpush1.xpose.msra.mxu0 0.0
    %4352 = vmatprep.subr.mxu0 0.0
    %4353 = vmatpush1.xpose.msra.mxu0 0.0
    %4354 = vmatprep.subr.mxu0 0.0
    %4355 = vmatpush1.xpose.msra.mxu0 0.0
    %4356 = vmatprep.subr.mxu0 0.0
    %4357 = vmatpush1.xpose.msra.mxu0 0.0
    %4358 = vmatprep.subr.mxu0 0.0
    %4359 = vmatpush1.xpose.msra.mxu0 0.0
    %4360 = vmatprep.subr.mxu0 0.0
    %4361 = vmatpush1.xpose.msra.mxu0 0.0
    %4362 = vmatprep.subr.mxu0 0.0
    %4363 = vmatpush1.xpose.msra.mxu0 0.0
    %v4364 = vand.u32 %v3822, 4294901760
    %v4365 = vsub.f32 %v3822, %v4364
    %v4366 = vand.u32 %v4365, 4294901760
    %v4367 = vsub.f32 %v4365, %v4366
    %v4368 = vand.u32 %v4367, 4294901760
    %4369 = vmatprep.mubr.f32.mxu0 %v4368
    %v4370 = vand.u32 %v3800, 4294901760
    %v4371 = vsub.f32 %v3800, %v4370
    %v4372 = vand.u32 %v4371, 4294901760
    %v4373 = vsub.f32 %v4371, %v4372
    %v4374 = vand.u32 %v4373, 4294901760
    %4375 = vmatmul.mubr.f32.gmra.mrb[0].mxu0 %v4374
    %v4376 = vpop.f32.mrb[0].mxu0
    %v4377 = vadd.f32 %v4295, %v4376
    %v4378 = vpop.f32.mrb[0].mxu0
    %4379 = vdwg.mxu0
    %v4380 = vand.u32 %v3824, 4294901760
    %v4381 = vsub.f32 %v3824, %v4380
    %v4382 = vand.u32 %v4381, 4294901760
    %v4383 = vsub.f32 %v4381, %v4382
    %v4384 = vand.u32 %v4383, 4294901760
    %4385 = vmatprep.subr.mxu0 %v4384
    %v4386 = vand.u32 %v3817, 4294901760
    %v4387 = vsub.f32 %v3817, %v4386
    %v4388 = vand.u32 %v4387, 4294901760
    %v4389 = vsub.f32 %v4387, %v4388
    %v4390 = vand.u32 %v4389, 4294901760
    %4391 = vmatpush1.xpose.msra.mxu0 %v4390
    %4392 = vmatprep.subr.mxu0 0.0
    %4393 = vmatpush1.xpose.msra.mxu0 0.0
    %4394 = vmatprep.subr.mxu0 0.0
    %4395 = vmatpush1.xpose.msra.mxu0 0.0
    %4396 = vmatprep.subr.mxu0 0.0
    %4397 = vmatpush1.xpose.msra.mxu0 0.0
    %4398 = vmatprep.subr.mxu0 0.0
    %4399 = vmatpush1.xpose.msra.mxu0 0.0
    %4400 = vmatprep.subr.mxu0 0.0
    %4401 = vmatpush1.xpose.msra.mxu0 0.0
    %4402 = vmatprep.subr.mxu0 0.0
    %4403 = vmatpush1.xpose.msra.mxu0 0.0
    %4404 = vmatprep.subr.mxu0 0.0
    %4405 = vmatpush1.xpose.msra.mxu0 0.0
    %4406 = vmatprep.subr.mxu0 0.0
    %4407 = vmatpush1.xpose.msra.mxu0 0.0
    %4408 = vmatprep.subr.mxu0 0.0
    %4409 = vmatpush1.xpose.msra.mxu0 0.0
    %4410 = vmatprep.subr.mxu0 0.0
    %4411 = vmatpush1.xpose.msra.mxu0 0.0
    %4412 = vmatprep.subr.mxu0 0.0
    %4413 = vmatpush1.xpose.msra.mxu0 0.0
    %4414 = vmatprep.subr.mxu0 0.0
    %4415 = vmatpush1.xpose.msra.mxu0 0.0
    %4416 = vmatprep.subr.mxu0 0.0
    %4417 = vmatpush1.xpose.msra.mxu0 0.0
    %4418 = vmatprep.subr.mxu0 0.0
    %4419 = vmatpush1.xpose.msra.mxu0 0.0
    %4420 = vmatprep.subr.mxu0 0.0
    %4421 = vmatpush1.xpose.msra.mxu0 0.0
    %4422 = vmatprep.subr.mxu0 0.0
    %4423 = vmatpush1.xpose.msra.mxu0 0.0
    %4424 = vmatprep.subr.mxu0 0.0
    %4425 = vmatpush1.xpose.msra.mxu0 0.0
    %4426 = vmatprep.subr.mxu0 0.0
    %4427 = vmatpush1.xpose.msra.mxu0 0.0
    %4428 = vmatprep.subr.mxu0 0.0
    %4429 = vmatpush1.xpose.msra.mxu0 0.0
    %4430 = vmatprep.subr.mxu0 0.0
    %4431 = vmatpush1.xpose.msra.mxu0 0.0
    %4432 = vmatprep.subr.mxu0 0.0
    %4433 = vmatpush1.xpose.msra.mxu0 0.0
    %4434 = vmatprep.subr.mxu0 0.0
    %4435 = vmatpush1.xpose.msra.mxu0 0.0
    %4436 = vmatprep.subr.mxu0 0.0
    %4437 = vmatpush1.xpose.msra.mxu0 0.0
    %4438 = vmatprep.subr.mxu0 0.0
    %4439 = vmatpush1.xpose.msra.mxu0 0.0
    %4440 = vmatprep.subr.mxu0 0.0
    %4441 = vmatpush1.xpose.msra.mxu0 0.0
    %4442 = vmatprep.subr.mxu0 0.0
    %4443 = vmatpush1.xpose.msra.mxu0 0.0
    %4444 = vmatprep.subr.mxu0 0.0
    %4445 = vmatpush1.xpose.msra.mxu0 0.0
    %4446 = vmatprep.subr.mxu0 0.0
    %4447 = vmatpush1.xpose.msra.mxu0 0.0
    %4448 = vmatprep.subr.mxu0 0.0
    %4449 = vmatpush1.xpose.msra.mxu0 0.0
    %4450 = vmatprep.subr.mxu0 0.0
    %4451 = vmatpush1.xpose.msra.mxu0 0.0
    %4452 = vmatprep.subr.mxu0 0.0
    %4453 = vmatpush1.xpose.msra.mxu0 0.0
    %v4454 = vand.u32 %v3822, 4294901760
    %4455 = vmatprep.mubr.f32.mxu0 %v4454
    %v4456 = vand.u32 %v3800, 4294901760
    %4457 = vmatmul.mubr.f32.gmra.mrb[0].mxu0 %v4456
    %v4458 = vpop.f32.mrb[0].mxu0
    %v4459 = vadd.f32 %v4377, %v4458
    %v4460 = vpop.f32.mrb[0].mxu0
    %4461 = vdwg.mxu0
    %v4462 = vand.u32 %v3824, 4294901760
    %v4463 = vsub.f32 %v3824, %v4462
    %4464 = vmatprep.subr.mxu0 %v4463
    %v4465 = vand.u32 %v3817, 4294901760
    %v4466 = vsub.f32 %v3817, %v4465
    %4467 = vmatpush1.xpose.msra.mxu0 %v4466
    %4468 = vmatprep.subr.mxu0 0.0
    %4469 = vmatpush1.xpose.msra.mxu0 0.0
    %4470 = vmatprep.subr.mxu0 0.0
    %4471 = vmatpush1.xpose.msra.mxu0 0.0
    %4472 = vmatprep.subr.mxu0 0.0
    %4473 = vmatpush1.xpose.msra.mxu0 0.0
    %4474 = vmatprep.subr.mxu0 0.0
    %4475 = vmatpush1.xpose.msra.mxu0 0.0
    %4476 = vmatprep.subr.mxu0 0.0
    %4477 = vmatpush1.xpose.msra.mxu0 0.0
    %4478 = vmatprep.subr.mxu0 0.0
    %4479 = vmatpush1.xpose.msra.mxu0 0.0
    %4480 = vmatprep.subr.mxu0 0.0
    %4481 = vmatpush1.xpose.msra.mxu0 0.0
    %4482 = vmatprep.subr.mxu0 0.0
    %4483 = vmatpush1.xpose.msra.mxu0 0.0
    %4484 = vmatprep.subr.mxu0 0.0
    %4485 = vmatpush1.xpose.msra.mxu0 0.0
    %4486 = vmatprep.subr.mxu0 0.0
    %4487 = vmatpush1.xpose.msra.mxu0 0.0
    %4488 = vmatprep.subr.mxu0 0.0
    %4489 = vmatpush1.xpose.msra.mxu0 0.0
    %4490 = vmatprep.subr.mxu0 0.0
    %4491 = vmatpush1.xpose.msra.mxu0 0.0
    %4492 = vmatprep.subr.mxu0 0.0
    %4493 = vmatpush1.xpose.msra.mxu0 0.0
    %4494 = vmatprep.subr.mxu0 0.0
    %4495 = vmatpush1.xpose.msra.mxu0 0.0
    %4496 = vmatprep.subr.mxu0 0.0
    %4497 = vmatpush1.xpose.msra.mxu0 0.0
    %4498 = vmatprep.subr.mxu0 0.0
    %4499 = vmatpush1.xpose.msra.mxu0 0.0
    %4500 = vmatprep.subr.mxu0 0.0
    %4501 = vmatpush1.xpose.msra.mxu0 0.0
    %4502 = vmatprep.subr.mxu0 0.0
    %4503 = vmatpush1.xpose.msra.mxu0 0.0
    %4504 = vmatprep.subr.mxu0 0.0
    %4505 = vmatpush1.xpose.msra.mxu0 0.0
    %4506 = vmatprep.subr.mxu0 0.0
    %4507 = vmatpush1.xpose.msra.mxu0 0.0
    %4508 = vmatprep.subr.mxu0 0.0
    %4509 = vmatpush1.xpose.msra.mxu0 0.0
    %4510 = vmatprep.subr.mxu0 0.0
    %4511 = vmatpush1.xpose.msra.mxu0 0.0
    %4512 = vmatprep.subr.mxu0 0.0
    %4513 = vmatpush1.xpose.msra.mxu0 0.0
    %4514 = vmatprep.subr.mxu0 0.0
    %4515 = vmatpush1.xpose.msra.mxu0 0.0
    %4516 = vmatprep.subr.mxu0 0.0
    %4517 = vmatpush1.xpose.msra.mxu0 0.0
    %4518 = vmatprep.subr.mxu0 0.0
    %4519 = vmatpush1.xpose.msra.mxu0 0.0
    %4520 = vmatprep.subr.mxu0 0.0
    %4521 = vmatpush1.xpose.msra.mxu0 0.0
    %4522 = vmatprep.subr.mxu0 0.0
    %4523 = vmatpush1.xpose.msra.mxu0 0.0
    %4524 = vmatprep.subr.mxu0 0.0
    %4525 = vmatpush1.xpose.msra.mxu0 0.0
    %4526 = vmatprep.subr.mxu0 0.0
    %4527 = vmatpush1.xpose.msra.mxu0 0.0
    %4528 = vmatprep.subr.mxu0 0.0
    %4529 = vmatpush1.xpose.msra.mxu0 0.0
    %v4530 = vand.u32 %v3822, 4294901760
    %v4531 = vsub.f32 %v3822, %v4530
    %4532 = vmatprep.mubr.f32.mxu0 %v4531
    %v4533 = vand.u32 %v3800, 4294901760
    %v4534 = vsub.f32 %v3800, %v4533
    %4535 = vmatmul.mubr.f32.gmra.mrb[0].mxu0 %v4534
    %v4536 = vpop.f32.mrb[0].mxu0
    %v4537 = vadd.f32 %v4459, %v4536
    %v4538 = vpop.f32.mrb[0].mxu0
    %4539 = vdwg.mxu0
    %v4540 = vand.u32 %v3824, 4294901760
    %4541 = vmatprep.subr.mxu0 %v4540
    %v4542 = vand.u32 %v3817, 4294901760
    %4543 = vmatpush1.xpose.msra.mxu0 %v4542
    %4544 = vmatprep.subr.mxu0 0.0
    %4545 = vmatpush1.xpose.msra.mxu0 0.0
    %4546 = vmatprep.subr.mxu0 0.0
    %4547 = vmatpush1.xpose.msra.mxu0 0.0
    %4548 = vmatprep.subr.mxu0 0.0
    %4549 = vmatpush1.xpose.msra.mxu0 0.0
    %4550 = vmatprep.subr.mxu0 0.0
    %4551 = vmatpush1.xpose.msra.mxu0 0.0
    %4552 = vmatprep.subr.mxu0 0.0
    %4553 = vmatpush1.xpose.msra.mxu0 0.0
    %4554 = vmatprep.subr.mxu0 0.0
    %4555 = vmatpush1.xpose.msra.mxu0 0.0
    %4556 = vmatprep.subr.mxu0 0.0
    %4557 = vmatpush1.xpose.msra.mxu0 0.0
    %4558 = vmatprep.subr.mxu0 0.0
    %4559 = vmatpush1.xpose.msra.mxu0 0.0
    %4560 = vmatprep.subr.mxu0 0.0
    %4561 = vmatpush1.xpose.msra.mxu0 0.0
    %4562 = vmatprep.subr.mxu0 0.0
    %4563 = vmatpush1.xpose.msra.mxu0 0.0
    %4564 = vmatprep.subr.mxu0 0.0
    %4565 = vmatpush1.xpose.msra.mxu0 0.0
    %4566 = vmatprep.subr.mxu0 0.0
    %4567 = vmatpush1.xpose.msra.mxu0 0.0
    %4568 = vmatprep.subr.mxu0 0.0
    %4569 = vmatpush1.xpose.msra.mxu0 0.0
    %4570 = vmatprep.subr.mxu0 0.0
    %4571 = vmatpush1.xpose.msra.mxu0 0.0
    %4572 = vmatprep.subr.mxu0 0.0
    %4573 = vmatpush1.xpose.msra.mxu0 0.0
    %4574 = vmatprep.subr.mxu0 0.0
    %4575 = vmatpush1.xpose.msra.mxu0 0.0
    %4576 = vmatprep.subr.mxu0 0.0
    %4577 = vmatpush1.xpose.msra.mxu0 0.0
    %4578 = vmatprep.subr.mxu0 0.0
    %4579 = vmatpush1.xpose.msra.mxu0 0.0
    %4580 = vmatprep.subr.mxu0 0.0
    %4581 = vmatpush1.xpose.msra.mxu0 0.0
    %4582 = vmatprep.subr.mxu0 0.0
    %4583 = vmatpush1.xpose.msra.mxu0 0.0
    %4584 = vmatprep.subr.mxu0 0.0
    %4585 = vmatpush1.xpose.msra.mxu0 0.0
    %4586 = vmatprep.subr.mxu0 0.0
    %4587 = vmatpush1.xpose.msra.mxu0 0.0
    %4588 = vmatprep.subr.mxu0 0.0
    %4589 = vmatpush1.xpose.msra.mxu0 0.0
    %4590 = vmatprep.subr.mxu0 0.0
    %4591 = vmatpush1.xpose.msra.mxu0 0.0
    %4592 = vmatprep.subr.mxu0 0.0
    %4593 = vmatpush1.xpose.msra.mxu0 0.0
    %4594 = vmatprep.subr.mxu0 0.0
    %4595 = vmatpush1.xpose.msra.mxu0 0.0
    %4596 = vmatprep.subr.mxu0 0.0
    %4597 = vmatpush1.xpose.msra.mxu0 0.0
    %4598 = vmatprep.subr.mxu0 0.0
    %4599 = vmatpush1.xpose.msra.mxu0 0.0
    %4600 = vmatprep.subr.mxu0 0.0
    %4601 = vmatpush1.xpose.msra.mxu0 0.0
    %4602 = vmatprep.subr.mxu0 0.0
    %4603 = vmatpush1.xpose.msra.mxu0 0.0
    %4604 = vmatprep.subr.mxu0 0.0
    %4605 = vmatpush1.xpose.msra.mxu0 0.0
    %v4606 = vand.u32 %v3822, 4294901760
    %v4607 = vsub.f32 %v3822, %v4606
    %v4608 = vand.u32 %v4607, 4294901760
    %4609 = vmatprep.mubr.f32.mxu0 %v4608
    %v4610 = vand.u32 %v3800, 4294901760
    %v4611 = vsub.f32 %v3800, %v4610
    %v4612 = vand.u32 %v4611, 4294901760
    %4613 = vmatmul.mubr.f32.gmra.mrb[0].mxu0 %v4612
    %v4614 = vpop.f32.mrb[0].mxu0
    %v4615 = vadd.f32 %v4537, %v4614
    %v4616 = vpop.f32.mrb[0].mxu0
    %4617 = vdwg.mxu0
    %v4618 = vand.u32 %v3824, 4294901760
    %v4619 = vsub.f32 %v3824, %v4618
    %v4620 = vand.u32 %v4619, 4294901760
    %4621 = vmatprep.subr.mxu0 %v4620
    %v4622 = vand.u32 %v3817, 4294901760
    %v4623 = vsub.f32 %v3817, %v4622
    %v4624 = vand.u32 %v4623, 4294901760
    %4625 = vmatpush1.xpose.msra.mxu0 %v4624
    %4626 = vmatprep.subr.mxu0 0.0
    %4627 = vmatpush1.xpose.msra.mxu0 0.0
    %4628 = vmatprep.subr.mxu0 0.0
    %4629 = vmatpush1.xpose.msra.mxu0 0.0
    %4630 = vmatprep.subr.mxu0 0.0
    %4631 = vmatpush1.xpose.msra.mxu0 0.0
    %4632 = vmatprep.subr.mxu0 0.0
    %4633 = vmatpush1.xpose.msra.mxu0 0.0
    %4634 = vmatprep.subr.mxu0 0.0
    %4635 = vmatpush1.xpose.msra.mxu0 0.0
    %4636 = vmatprep.subr.mxu0 0.0
    %4637 = vmatpush1.xpose.msra.mxu0 0.0
    %4638 = vmatprep.subr.mxu0 0.0
    %4639 = vmatpush1.xpose.msra.mxu0 0.0
    %4640 = vmatprep.subr.mxu0 0.0
    %4641 = vmatpush1.xpose.msra.mxu0 0.0
    %4642 = vmatprep.subr.mxu0 0.0
    %4643 = vmatpush1.xpose.msra.mxu0 0.0
    %4644 = vmatprep.subr.mxu0 0.0
    %4645 = vmatpush1.xpose.msra.mxu0 0.0
    %4646 = vmatprep.subr.mxu0 0.0
    %4647 = vmatpush1.xpose.msra.mxu0 0.0
    %4648 = vmatprep.subr.mxu0 0.0
    %4649 = vmatpush1.xpose.msra.mxu0 0.0
    %4650 = vmatprep.subr.mxu0 0.0
    %4651 = vmatpush1.xpose.msra.mxu0 0.0
    %4652 = vmatprep.subr.mxu0 0.0
    %4653 = vmatpush1.xpose.msra.mxu0 0.0
    %4654 = vmatprep.subr.mxu0 0.0
    %4655 = vmatpush1.xpose.msra.mxu0 0.0
    %4656 = vmatprep.subr.mxu0 0.0
    %4657 = vmatpush1.xpose.msra.mxu0 0.0
    %4658 = vmatprep.subr.mxu0 0.0
    %4659 = vmatpush1.xpose.msra.mxu0 0.0
    %4660 = vmatprep.subr.mxu0 0.0
    %4661 = vmatpush1.xpose.msra.mxu0 0.0
    %4662 = vmatprep.subr.mxu0 0.0
    %4663 = vmatpush1.xpose.msra.mxu0 0.0
    %4664 = vmatprep.subr.mxu0 0.0
    %4665 = vmatpush1.xpose.msra.mxu0 0.0
    %4666 = vmatprep.subr.mxu0 0.0
    %4667 = vmatpush1.xpose.msra.mxu0 0.0
    %4668 = vmatprep.subr.mxu0 0.0
    %4669 = vmatpush1.xpose.msra.mxu0 0.0
    %4670 = vmatprep.subr.mxu0 0.0
    %4671 = vmatpush1.xpose.msra.mxu0 0.0
    %4672 = vmatprep.subr.mxu0 0.0
    %4673 = vmatpush1.xpose.msra.mxu0 0.0
    %4674 = vmatprep.subr.mxu0 0.0
    %4675 = vmatpush1.xpose.msra.mxu0 0.0
    %4676 = vmatprep.subr.mxu0 0.0
    %4677 = vmatpush1.xpose.msra.mxu0 0.0
    %4678 = vmatprep.subr.mxu0 0.0
    %4679 = vmatpush1.xpose.msra.mxu0 0.0
    %4680 = vmatprep.subr.mxu0 0.0
    %4681 = vmatpush1.xpose.msra.mxu0 0.0
    %4682 = vmatprep.subr.mxu0 0.0
    %4683 = vmatpush1.xpose.msra.mxu0 0.0
    %4684 = vmatprep.subr.mxu0 0.0
    %4685 = vmatpush1.xpose.msra.mxu0 0.0
    %4686 = vmatprep.subr.mxu0 0.0
    %4687 = vmatpush1.xpose.msra.mxu0 0.0
    %v4688 = vand.u32 %v3822, 4294901760
    %4689 = vmatprep.mubr.f32.mxu0 %v4688
    %v4690 = vand.u32 %v3800, 4294901760
    %4691 = vmatmul.mubr.f32.gmra.mrb[0].mxu0 %v4690
    %v4692 = vpop.f32.mrb[0].mxu0
    %v4693 = vadd.f32 %v4615, %v4692
    %v4694 = vpop.f32.mrb[0].mxu0
    %4695 = vdwg.mxu0
    %v4696 = vand.u32 %v3824, 4294901760
    %4697 = vmatprep.subr.mxu0 %v4696
    %v4698 = vand.u32 %v3817, 4294901760
    %4699 = vmatpush1.xpose.msra.mxu0 %v4698
    %4700 = vmatprep.subr.mxu0 0.0
    %4701 = vmatpush1.xpose.msra.mxu0 0.0
    %4702 = vmatprep.subr.mxu0 0.0
    %4703 = vmatpush1.xpose.msra.mxu0 0.0
    %4704 = vmatprep.subr.mxu0 0.0
    %4705 = vmatpush1.xpose.msra.mxu0 0.0
    %4706 = vmatprep.subr.mxu0 0.0
    %4707 = vmatpush1.xpose.msra.mxu0 0.0
    %4708 = vmatprep.subr.mxu0 0.0
    %4709 = vmatpush1.xpose.msra.mxu0 0.0
    %4710 = vmatprep.subr.mxu0 0.0
    %4711 = vmatpush1.xpose.msra.mxu0 0.0
    %4712 = vmatprep.subr.mxu0 0.0
    %4713 = vmatpush1.xpose.msra.mxu0 0.0
    %4714 = vmatprep.subr.mxu0 0.0
    %4715 = vmatpush1.xpose.msra.mxu0 0.0
    %4716 = vmatprep.subr.mxu0 0.0
    %4717 = vmatpush1.xpose.msra.mxu0 0.0
    %4718 = vmatprep.subr.mxu0 0.0
    %4719 = vmatpush1.xpose.msra.mxu0 0.0
    %4720 = vmatprep.subr.mxu0 0.0
    %4721 = vmatpush1.xpose.msra.mxu0 0.0
    %4722 = vmatprep.subr.mxu0 0.0
    %4723 = vmatpush1.xpose.msra.mxu0 0.0
    %4724 = vmatprep.subr.mxu0 0.0
    %4725 = vmatpush1.xpose.msra.mxu0 0.0
    %4726 = vmatprep.subr.mxu0 0.0
    %4727 = vmatpush1.xpose.msra.mxu0 0.0
    %4728 = vmatprep.subr.mxu0 0.0
    %4729 = vmatpush1.xpose.msra.mxu0 0.0
    %4730 = vmatprep.subr.mxu0 0.0
    %4731 = vmatpush1.xpose.msra.mxu0 0.0
    %4732 = vmatprep.subr.mxu0 0.0
    %4733 = vmatpush1.xpose.msra.mxu0 0.0
    %4734 = vmatprep.subr.mxu0 0.0
    %4735 = vmatpush1.xpose.msra.mxu0 0.0
    %4736 = vmatprep.subr.mxu0 0.0
    %4737 = vmatpush1.xpose.msra.mxu0 0.0
    %4738 = vmatprep.subr.mxu0 0.0
    %4739 = vmatpush1.xpose.msra.mxu0 0.0
    %4740 = vmatprep.subr.mxu0 0.0
    %4741 = vmatpush1.xpose.msra.mxu0 0.0
    %4742 = vmatprep.subr.mxu0 0.0
    %4743 = vmatpush1.xpose.msra.mxu0 0.0
    %4744 = vmatprep.subr.mxu0 0.0
    %4745 = vmatpush1.xpose.msra.mxu0 0.0
    %4746 = vmatprep.subr.mxu0 0.0
    %4747 = vmatpush1.xpose.msra.mxu0 0.0
    %4748 = vmatprep.subr.mxu0 0.0
    %4749 = vmatpush1.xpose.msra.mxu0 0.0
    %4750 = vmatprep.subr.mxu0 0.0
    %4751 = vmatpush1.xpose.msra.mxu0 0.0
    %4752 = vmatprep.subr.mxu0 0.0
    %4753 = vmatpush1.xpose.msra.mxu0 0.0
    %4754 = vmatprep.subr.mxu0 0.0
    %4755 = vmatpush1.xpose.msra.mxu0 0.0
    %4756 = vmatprep.subr.mxu0 0.0
    %4757 = vmatpush1.xpose.msra.mxu0 0.0
    %4758 = vmatprep.subr.mxu0 0.0
    %4759 = vmatpush1.xpose.msra.mxu0 0.0
    %4760 = vmatprep.subr.mxu0 0.0
    %4761 = vmatpush1.xpose.msra.mxu0 0.0
    %v4762 = vand.u32 %v3822, 4294901760
    %4763 = vmatprep.mubr.f32.mxu0 %v4762
    %v4764 = vand.u32 %v3800, 4294901760
    %4765 = vmatmul.mubr.f32.gmra.mrb[0].mxu0 %v4764
    %v4766 = vpop.f32.mrb[0].mxu0
    %v4767 = vadd.f32 %v4693, %v4766
    %v4768 = vpop.f32.mrb[0].mxu0
    %4769 = vdwg.mxu0
    %v4771 = vcombine.high %v3422, %v3422
    %v4774 = vsel %vm863, %v3620, 0
    %v4776 = vsel %vm863, %v3805, 0
    %v4778 = vand.u32 %v4771, 4294901760
    %4779 = vmatprep.subr.mxu0 %v4778
    %v4780 = vand.u32 %v3422, 4294901760
    %4781 = vmatpush1.xpose.msra.mxu0 %v4780
    %4782 = vmatprep.subr.mxu0 0.0
    %4783 = vmatpush1.xpose.msra.mxu0 0.0
    %4784 = vmatprep.subr.mxu0 0.0
    %4785 = vmatpush1.xpose.msra.mxu0 0.0
    %4786 = vmatprep.subr.mxu0 0.0
    %4787 = vmatpush1.xpose.msra.mxu0 0.0
    %4788 = vmatprep.subr.mxu0 0.0
    %4789 = vmatpush1.xpose.msra.mxu0 0.0
    %4790 = vmatprep.subr.mxu0 0.0
    %4791 = vmatpush1.xpose.msra.mxu0 0.0
    %4792 = vmatprep.subr.mxu0 0.0
    %4793 = vmatpush1.xpose.msra.mxu0 0.0
    %4794 = vmatprep.subr.mxu0 0.0
    %4795 = vmatpush1.xpose.msra.mxu0 0.0
    %4796 = vmatprep.subr.mxu0 0.0
    %4797 = vmatpush1.xpose.msra.mxu0 0.0
    %4798 = vmatprep.subr.mxu0 0.0
    %4799 = vmatpush1.xpose.msra.mxu0 0.0
    %4800 = vmatprep.subr.mxu0 0.0
    %4801 = vmatpush1.xpose.msra.mxu0 0.0
    %4802 = vmatprep.subr.mxu0 0.0
    %4803 = vmatpush1.xpose.msra.mxu0 0.0
    %4804 = vmatprep.subr.mxu0 0.0
    %4805 = vmatpush1.xpose.msra.mxu0 0.0
    %4806 = vmatprep.subr.mxu0 0.0
    %4807 = vmatpush1.xpose.msra.mxu0 0.0
    %4808 = vmatprep.subr.mxu0 0.0
    %4809 = vmatpush1.xpose.msra.mxu0 0.0
    %4810 = vmatprep.subr.mxu0 0.0
    %4811 = vmatpush1.xpose.msra.mxu0 0.0
    %4812 = vmatprep.subr.mxu0 0.0
    %4813 = vmatpush1.xpose.msra.mxu0 0.0
    %4814 = vmatprep.subr.mxu0 0.0
    %4815 = vmatpush1.xpose.msra.mxu0 0.0
    %4816 = vmatprep.subr.mxu0 0.0
    %4817 = vmatpush1.xpose.msra.mxu0 0.0
    %4818 = vmatprep.subr.mxu0 0.0
    %4819 = vmatpush1.xpose.msra.mxu0 0.0
    %4820 = vmatprep.subr.mxu0 0.0
    %4821 = vmatpush1.xpose.msra.mxu0 0.0
    %4822 = vmatprep.subr.mxu0 0.0
    %4823 = vmatpush1.xpose.msra.mxu0 0.0
    %4824 = vmatprep.subr.mxu0 0.0
    %4825 = vmatpush1.xpose.msra.mxu0 0.0
    %4826 = vmatprep.subr.mxu0 0.0
    %4827 = vmatpush1.xpose.msra.mxu0 0.0
    %4828 = vmatprep.subr.mxu0 0.0
    %4829 = vmatpush1.xpose.msra.mxu0 0.0
    %4830 = vmatprep.subr.mxu0 0.0
    %4831 = vmatpush1.xpose.msra.mxu0 0.0
    %4832 = vmatprep.subr.mxu0 0.0
    %4833 = vmatpush1.xpose.msra.mxu0 0.0
    %4834 = vmatprep.subr.mxu0 0.0
    %4835 = vmatpush1.xpose.msra.mxu0 0.0
    %4836 = vmatprep.subr.mxu0 0.0
    %4837 = vmatpush1.xpose.msra.mxu0 0.0
    %4838 = vmatprep.subr.mxu0 0.0
    %4839 = vmatpush1.xpose.msra.mxu0 0.0
    %4840 = vmatprep.subr.mxu0 0.0
    %4841 = vmatpush1.xpose.msra.mxu0 0.0
    %4842 = vmatprep.subr.mxu0 0.0
    %4843 = vmatpush1.xpose.msra.mxu0 0.0
    %v4844 = vand.u32 %v3618, 4294901760
    %v4845 = vsub.f32 %v3618, %v4844
    %v4846 = vand.u32 %v4845, 4294901760
    %v4847 = vsub.f32 %v4845, %v4846
    %v4848 = vand.u32 %v4847, 4294901760
    %4849 = vmatprep.mubr.f32.mxu0 %v4848
    %v4850 = vand.u32 %v3617, 4294901760
    %v4851 = vsub.f32 %v3617, %v4850
    %v4852 = vand.u32 %v4851, 4294901760
    %v4853 = vsub.f32 %v4851, %v4852
    %v4854 = vand.u32 %v4853, 4294901760
    %4855 = vmatmul.mubr.f32.gmra.mrb[0].mxu0 %v4854
    %v4856 = vpop.f32.mrb[0].mxu0
    %v4857 = vadd.f32 %v4767, %v4856
    %v4858 = vpop.f32.mrb[0].mxu0
    %4859 = vdwg.mxu0
    %v4860 = vand.u32 %v4771, 4294901760
    %v4861 = vsub.f32 %v4771, %v4860
    %v4862 = vand.u32 %v4861, 4294901760
    %v4863 = vsub.f32 %v4861, %v4862
    %v4864 = vand.u32 %v4863, 4294901760
    %4865 = vmatprep.subr.mxu0 %v4864
    %v4866 = vand.u32 %v3422, 4294901760
    %v4867 = vsub.f32 %v3422, %v4866
    %v4868 = vand.u32 %v4867, 4294901760
    %v4869 = vsub.f32 %v4867, %v4868
    %v4870 = vand.u32 %v4869, 4294901760
    %4871 = vmatpush1.xpose.msra.mxu0 %v4870
    %4872 = vmatprep.subr.mxu0 0.0
    %4873 = vmatpush1.xpose.msra.mxu0 0.0
    %4874 = vmatprep.subr.mxu0 0.0
    %4875 = vmatpush1.xpose.msra.mxu0 0.0
    %4876 = vmatprep.subr.mxu0 0.0
    %4877 = vmatpush1.xpose.msra.mxu0 0.0
    %4878 = vmatprep.subr.mxu0 0.0
    %4879 = vmatpush1.xpose.msra.mxu0 0.0
    %4880 = vmatprep.subr.mxu0 0.0
    %4881 = vmatpush1.xpose.msra.mxu0 0.0
    %4882 = vmatprep.subr.mxu0 0.0
    %4883 = vmatpush1.xpose.msra.mxu0 0.0
    %4884 = vmatprep.subr.mxu0 0.0
    %4885 = vmatpush1.xpose.msra.mxu0 0.0
    %4886 = vmatprep.subr.mxu0 0.0
    %4887 = vmatpush1.xpose.msra.mxu0 0.0
    %4888 = vmatprep.subr.mxu0 0.0
    %4889 = vmatpush1.xpose.msra.mxu0 0.0
    %4890 = vmatprep.subr.mxu0 0.0
    %4891 = vmatpush1.xpose.msra.mxu0 0.0
    %4892 = vmatprep.subr.mxu0 0.0
    %4893 = vmatpush1.xpose.msra.mxu0 0.0
    %4894 = vmatprep.subr.mxu0 0.0
    %4895 = vmatpush1.xpose.msra.mxu0 0.0
    %4896 = vmatprep.subr.mxu0 0.0
    %4897 = vmatpush1.xpose.msra.mxu0 0.0
    %4898 = vmatprep.subr.mxu0 0.0
    %4899 = vmatpush1.xpose.msra.mxu0 0.0
    %4900 = vmatprep.subr.mxu0 0.0
    %4901 = vmatpush1.xpose.msra.mxu0 0.0
    %4902 = vmatprep.subr.mxu0 0.0
    %4903 = vmatpush1.xpose.msra.mxu0 0.0
    %4904 = vmatprep.subr.mxu0 0.0
    %4905 = vmatpush1.xpose.msra.mxu0 0.0
    %4906 = vmatprep.subr.mxu0 0.0
    %4907 = vmatpush1.xpose.msra.mxu0 0.0
    %4908 = vmatprep.subr.mxu0 0.0
    %4909 = vmatpush1.xpose.msra.mxu0 0.0
    %4910 = vmatprep.subr.mxu0 0.0
    %4911 = vmatpush1.xpose.msra.mxu0 0.0
    %4912 = vmatprep.subr.mxu0 0.0
    %4913 = vmatpush1.xpose.msra.mxu0 0.0
    %4914 = vmatprep.subr.mxu0 0.0
    %4915 = vmatpush1.xpose.msra.mxu0 0.0
    %4916 = vmatprep.subr.mxu0 0.0
    %4917 = vmatpush1.xpose.msra.mxu0 0.0
    %4918 = vmatprep.subr.mxu0 0.0
    %4919 = vmatpush1.xpose.msra.mxu0 0.0
    %4920 = vmatprep.subr.mxu0 0.0
    %4921 = vmatpush1.xpose.msra.mxu0 0.0
    %4922 = vmatprep.subr.mxu0 0.0
    %4923 = vmatpush1.xpose.msra.mxu0 0.0
    %4924 = vmatprep.subr.mxu0 0.0
    %4925 = vmatpush1.xpose.msra.mxu0 0.0
    %4926 = vmatprep.subr.mxu0 0.0
    %4927 = vmatpush1.xpose.msra.mxu0 0.0
    %4928 = vmatprep.subr.mxu0 0.0
    %4929 = vmatpush1.xpose.msra.mxu0 0.0
    %4930 = vmatprep.subr.mxu0 0.0
    %4931 = vmatpush1.xpose.msra.mxu0 0.0
    %4932 = vmatprep.subr.mxu0 0.0
    %4933 = vmatpush1.xpose.msra.mxu0 0.0
    %v4934 = vand.u32 %v3618, 4294901760
    %4935 = vmatprep.mubr.f32.mxu0 %v4934
    %v4936 = vand.u32 %v3617, 4294901760
    %4937 = vmatmul.mubr.f32.gmra.mrb[0].mxu0 %v4936
    %v4938 = vpop.f32.mrb[0].mxu0
    %v4939 = vadd.f32 %v4857, %v4938
    %v4940 = vpop.f32.mrb[0].mxu0
    %4941 = vdwg.mxu0
    %v4942 = vand.u32 %v4771, 4294901760
    %v4943 = vsub.f32 %v4771, %v4942
    %4944 = vmatprep.subr.mxu0 %v4943
    %v4945 = vand.u32 %v3422, 4294901760
    %v4946 = vsub.f32 %v3422, %v4945
    %4947 = vmatpush1.xpose.msra.mxu0 %v4946
    %4948 = vmatprep.subr.mxu0 0.0
    %4949 = vmatpush1.xpose.msra.mxu0 0.0
    %4950 = vmatprep.subr.mxu0 0.0
    %4951 = vmatpush1.xpose.msra.mxu0 0.0
    %4952 = vmatprep.subr.mxu0 0.0
    %4953 = vmatpush1.xpose.msra.mxu0 0.0
    %4954 = vmatprep.subr.mxu0 0.0
    %4955 = vmatpush1.xpose.msra.mxu0 0.0
    %4956 = vmatprep.subr.mxu0 0.0
    %4957 = vmatpush1.xpose.msra.mxu0 0.0
    %4958 = vmatprep.subr.mxu0 0.0
    %4959 = vmatpush1.xpose.msra.mxu0 0.0
    %4960 = vmatprep.subr.mxu0 0.0
    %4961 = vmatpush1.xpose.msra.mxu0 0.0
    %4962 = vmatprep.subr.mxu0 0.0
    %4963 = vmatpush1.xpose.msra.mxu0 0.0
    %4964 = vmatprep.subr.mxu0 0.0
    %4965 = vmatpush1.xpose.msra.mxu0 0.0
    %4966 = vmatprep.subr.mxu0 0.0
    %4967 = vmatpush1.xpose.msra.mxu0 0.0
    %4968 = vmatprep.subr.mxu0 0.0
    %4969 = vmatpush1.xpose.msra.mxu0 0.0
    %4970 = vmatprep.subr.mxu0 0.0
    %4971 = vmatpush1.xpose.msra.mxu0 0.0
    %4972 = vmatprep.subr.mxu0 0.0
    %4973 = vmatpush1.xpose.msra.mxu0 0.0
    %4974 = vmatprep.subr.mxu0 0.0
    %4975 = vmatpush1.xpose.msra.mxu0 0.0
    %4976 = vmatprep.subr.mxu0 0.0
    %4977 = vmatpush1.xpose.msra.mxu0 0.0
    %4978 = vmatprep.subr.mxu0 0.0
    %4979 = vmatpush1.xpose.msra.mxu0 0.0
    %4980 = vmatprep.subr.mxu0 0.0
    %4981 = vmatpush1.xpose.msra.mxu0 0.0
    %4982 = vmatprep.subr.mxu0 0.0
    %4983 = vmatpush1.xpose.msra.mxu0 0.0
    %4984 = vmatprep.subr.mxu0 0.0
    %4985 = vmatpush1.xpose.msra.mxu0 0.0
    %4986 = vmatprep.subr.mxu0 0.0
    %4987 = vmatpush1.xpose.msra.mxu0 0.0
    %4988 = vmatprep.subr.mxu0 0.0
    %4989 = vmatpush1.xpose.msra.mxu0 0.0
    %4990 = vmatprep.subr.mxu0 0.0
    %4991 = vmatpush1.xpose.msra.mxu0 0.0
    %4992 = vmatprep.subr.mxu0 0.0
    %4993 = vmatpush1.xpose.msra.mxu0 0.0
    %4994 = vmatprep.subr.mxu0 0.0
    %4995 = vmatpush1.xpose.msra.mxu0 0.0
    %4996 = vmatprep.subr.mxu0 0.0
    %4997 = vmatpush1.xpose.msra.mxu0 0.0
    %4998 = vmatprep.subr.mxu0 0.0
    %4999 = vmatpush1.xpose.msra.mxu0 0.0
    %5000 = vmatprep.subr.mxu0 0.0
    %5001 = vmatpush1.xpose.msra.mxu0 0.0
    %5002 = vmatprep.subr.mxu0 0.0
    %5003 = vmatpush1.xpose.msra.mxu0 0.0
    %5004 = vmatprep.subr.mxu0 0.0
    %5005 = vmatpush1.xpose.msra.mxu0 0.0
    %5006 = vmatprep.subr.mxu0 0.0
    %5007 = vmatpush1.xpose.msra.mxu0 0.0
    %5008 = vmatprep.subr.mxu0 0.0
    %5009 = vmatpush1.xpose.msra.mxu0 0.0
    %v5010 = vand.u32 %v3618, 4294901760
    %v5011 = vsub.f32 %v3618, %v5010
    %5012 = vmatprep.mubr.f32.mxu0 %v5011
    %v5013 = vand.u32 %v3617, 4294901760
    %v5014 = vsub.f32 %v3617, %v5013
    %5015 = vmatmul.mubr.f32.gmra.mrb[0].mxu0 %v5014
    %v5016 = vpop.f32.mrb[0].mxu0
    %v5017 = vadd.f32 %v4939, %v5016
    %v5018 = vpop.f32.mrb[0].mxu0
    %5019 = vdwg.mxu0
    %v5020 = vand.u32 %v4771, 4294901760
    %5021 = vmatprep.subr.mxu0 %v5020
    %v5022 = vand.u32 %v3422, 4294901760
    %5023 = vmatpush1.xpose.msra.mxu0 %v5022
    %5024 = vmatprep.subr.mxu0 0.0
    %5025 = vmatpush1.xpose.msra.mxu0 0.0
    %5026 = vmatprep.subr.mxu0 0.0
    %5027 = vmatpush1.xpose.msra.mxu0 0.0
    %5028 = vmatprep.subr.mxu0 0.0
    %5029 = vmatpush1.xpose.msra.mxu0 0.0
    %5030 = vmatprep.subr.mxu0 0.0
    %5031 = vmatpush1.xpose.msra.mxu0 0.0
    %5032 = vmatprep.subr.mxu0 0.0
    %5033 = vmatpush1.xpose.msra.mxu0 0.0
    %5034 = vmatprep.subr.mxu0 0.0
    %5035 = vmatpush1.xpose.msra.mxu0 0.0
    %5036 = vmatprep.subr.mxu0 0.0
    %5037 = vmatpush1.xpose.msra.mxu0 0.0
    %5038 = vmatprep.subr.mxu0 0.0
    %5039 = vmatpush1.xpose.msra.mxu0 0.0
    %5040 = vmatprep.subr.mxu0 0.0
    %5041 = vmatpush1.xpose.msra.mxu0 0.0
    %5042 = vmatprep.subr.mxu0 0.0
    %5043 = vmatpush1.xpose.msra.mxu0 0.0
    %5044 = vmatprep.subr.mxu0 0.0
    %5045 = vmatpush1.xpose.msra.mxu0 0.0
    %5046 = vmatprep.subr.mxu0 0.0
    %5047 = vmatpush1.xpose.msra.mxu0 0.0
    %5048 = vmatprep.subr.mxu0 0.0
    %5049 = vmatpush1.xpose.msra.mxu0 0.0
    %5050 = vmatprep.subr.mxu0 0.0
    %5051 = vmatpush1.xpose.msra.mxu0 0.0
    %5052 = vmatprep.subr.mxu0 0.0
    %5053 = vmatpush1.xpose.msra.mxu0 0.0
    %5054 = vmatprep.subr.mxu0 0.0
    %5055 = vmatpush1.xpose.msra.mxu0 0.0
    %5056 = vmatprep.subr.mxu0 0.0
    %5057 = vmatpush1.xpose.msra.mxu0 0.0
    %5058 = vmatprep.subr.mxu0 0.0
    %5059 = vmatpush1.xpose.msra.mxu0 0.0
    %5060 = vmatprep.subr.mxu0 0.0
    %5061 = vmatpush1.xpose.msra.mxu0 0.0
    %5062 = vmatprep.subr.mxu0 0.0
    %5063 = vmatpush1.xpose.msra.mxu0 0.0
    %5064 = vmatprep.subr.mxu0 0.0
    %5065 = vmatpush1.xpose.msra.mxu0 0.0
    %5066 = vmatprep.subr.mxu0 0.0
    %5067 = vmatpush1.xpose.msra.mxu0 0.0
    %5068 = vmatprep.subr.mxu0 0.0
    %5069 = vmatpush1.xpose.msra.mxu0 0.0
    %5070 = vmatprep.subr.mxu0 0.0
    %5071 = vmatpush1.xpose.msra.mxu0 0.0
    %5072 = vmatprep.subr.mxu0 0.0
    %5073 = vmatpush1.xpose.msra.mxu0 0.0
    %5074 = vmatprep.subr.mxu0 0.0
    %5075 = vmatpush1.xpose.msra.mxu0 0.0
    %5076 = vmatprep.subr.mxu0 0.0
    %5077 = vmatpush1.xpose.msra.mxu0 0.0
    %5078 = vmatprep.subr.mxu0 0.0
    %5079 = vmatpush1.xpose.msra.mxu0 0.0
    %5080 = vmatprep.subr.mxu0 0.0
    %5081 = vmatpush1.xpose.msra.mxu0 0.0
    %5082 = vmatprep.subr.mxu0 0.0
    %5083 = vmatpush1.xpose.msra.mxu0 0.0
    %5084 = vmatprep.subr.mxu0 0.0
    %5085 = vmatpush1.xpose.msra.mxu0 0.0
    %v5086 = vand.u32 %v3618, 4294901760
    %v5087 = vsub.f32 %v3618, %v5086
    %v5088 = vand.u32 %v5087, 4294901760
    %5089 = vmatprep.mubr.f32.mxu0 %v5088
    %v5090 = vand.u32 %v3617, 4294901760
    %v5091 = vsub.f32 %v3617, %v5090
    %v5092 = vand.u32 %v5091, 4294901760
    %5093 = vmatmul.mubr.f32.gmra.mrb[0].mxu0 %v5092
    %v5094 = vpop.f32.mrb[0].mxu0
    %v5095 = vadd.f32 %v5017, %v5094
    %v5096 = vpop.f32.mrb[0].mxu0
    %5097 = vdwg.mxu0
    %v5098 = vand.u32 %v4771, 4294901760
    %v5099 = vsub.f32 %v4771, %v5098
    %v5100 = vand.u32 %v5099, 4294901760
    %5101 = vmatprep.subr.mxu0 %v5100
    %v5102 = vand.u32 %v3422, 4294901760
    %v5103 = vsub.f32 %v3422, %v5102
    %v5104 = vand.u32 %v5103, 4294901760
    %5105 = vmatpush1.xpose.msra.mxu0 %v5104
    %5106 = vmatprep.subr.mxu0 0.0
    %5107 = vmatpush1.xpose.msra.mxu0 0.0
    %5108 = vmatprep.subr.mxu0 0.0
    %5109 = vmatpush1.xpose.msra.mxu0 0.0
    %5110 = vmatprep.subr.mxu0 0.0
    %5111 = vmatpush1.xpose.msra.mxu0 0.0
    %5112 = vmatprep.subr.mxu0 0.0
    %5113 = vmatpush1.xpose.msra.mxu0 0.0
    %5114 = vmatprep.subr.mxu0 0.0
    %5115 = vmatpush1.xpose.msra.mxu0 0.0
    %5116 = vmatprep.subr.mxu0 0.0
    %5117 = vmatpush1.xpose.msra.mxu0 0.0
    %5118 = vmatprep.subr.mxu0 0.0
    %5119 = vmatpush1.xpose.msra.mxu0 0.0
    %5120 = vmatprep.subr.mxu0 0.0
    %5121 = vmatpush1.xpose.msra.mxu0 0.0
    %5122 = vmatprep.subr.mxu0 0.0
    %5123 = vmatpush1.xpose.msra.mxu0 0.0
    %5124 = vmatprep.subr.mxu0 0.0
    %5125 = vmatpush1.xpose.msra.mxu0 0.0
    %5126 = vmatprep.subr.mxu0 0.0
    %5127 = vmatpush1.xpose.msra.mxu0 0.0
    %5128 = vmatprep.subr.mxu0 0.0
    %5129 = vmatpush1.xpose.msra.mxu0 0.0
    %5130 = vmatprep.subr.mxu0 0.0
    %5131 = vmatpush1.xpose.msra.mxu0 0.0
    %5132 = vmatprep.subr.mxu0 0.0
    %5133 = vmatpush1.xpose.msra.mxu0 0.0
    %5134 = vmatprep.subr.mxu0 0.0
    %5135 = vmatpush1.xpose.msra.mxu0 0.0
    %5136 = vmatprep.subr.mxu0 0.0
    %5137 = vmatpush1.xpose.msra.mxu0 0.0
    %5138 = vmatprep.subr.mxu0 0.0
    %5139 = vmatpush1.xpose.msra.mxu0 0.0
    %5140 = vmatprep.subr.mxu0 0.0
    %5141 = vmatpush1.xpose.msra.mxu0 0.0
    %5142 = vmatprep.subr.mxu0 0.0
    %5143 = vmatpush1.xpose.msra.mxu0 0.0
    %5144 = vmatprep.subr.mxu0 0.0
    %5145 = vmatpush1.xpose.msra.mxu0 0.0
    %5146 = vmatprep.subr.mxu0 0.0
    %5147 = vmatpush1.xpose.msra.mxu0 0.0
    %5148 = vmatprep.subr.mxu0 0.0
    %5149 = vmatpush1.xpose.msra.mxu0 0.0
    %5150 = vmatprep.subr.mxu0 0.0
    %5151 = vmatpush1.xpose.msra.mxu0 0.0
    %5152 = vmatprep.subr.mxu0 0.0
    %5153 = vmatpush1.xpose.msra.mxu0 0.0
    %5154 = vmatprep.subr.mxu0 0.0
    %5155 = vmatpush1.xpose.msra.mxu0 0.0
    %5156 = vmatprep.subr.mxu0 0.0
    %5157 = vmatpush1.xpose.msra.mxu0 0.0
    %5158 = vmatprep.subr.mxu0 0.0
    %5159 = vmatpush1.xpose.msra.mxu0 0.0
    %5160 = vmatprep.subr.mxu0 0.0
    %5161 = vmatpush1.xpose.msra.mxu0 0.0
    %5162 = vmatprep.subr.mxu0 0.0
    %5163 = vmatpush1.xpose.msra.mxu0 0.0
    %5164 = vmatprep.subr.mxu0 0.0
    %5165 = vmatpush1.xpose.msra.mxu0 0.0
    %5166 = vmatprep.subr.mxu0 0.0
    %5167 = vmatpush1.xpose.msra.mxu0 0.0
    %v5168 = vand.u32 %v3618, 4294901760
    %5169 = vmatprep.mubr.f32.mxu0 %v5168
    %v5170 = vand.u32 %v3617, 4294901760
    %5171 = vmatmul.mubr.f32.gmra.mrb[0].mxu0 %v5170
    %v5172 = vpop.f32.mrb[0].mxu0
    %v5173 = vadd.f32 %v5095, %v5172
    %v5174 = vpop.f32.mrb[0].mxu0
    %5175 = vdwg.mxu0
    %v5176 = vand.u32 %v4771, 4294901760
    %5177 = vmatprep.subr.mxu0 %v5176
    %v5178 = vand.u32 %v3422, 4294901760
    %5179 = vmatpush1.xpose.msra.mxu0 %v5178
    %5180 = vmatprep.subr.mxu0 0.0
    %5181 = vmatpush1.xpose.msra.mxu0 0.0
    %5182 = vmatprep.subr.mxu0 0.0
    %5183 = vmatpush1.xpose.msra.mxu0 0.0
    %5184 = vmatprep.subr.mxu0 0.0
    %5185 = vmatpush1.xpose.msra.mxu0 0.0
    %5186 = vmatprep.subr.mxu0 0.0
    %5187 = vmatpush1.xpose.msra.mxu0 0.0
    %5188 = vmatprep.subr.mxu0 0.0
    %5189 = vmatpush1.xpose.msra.mxu0 0.0
    %5190 = vmatprep.subr.mxu0 0.0
    %5191 = vmatpush1.xpose.msra.mxu0 0.0
    %5192 = vmatprep.subr.mxu0 0.0
    %5193 = vmatpush1.xpose.msra.mxu0 0.0
    %5194 = vmatprep.subr.mxu0 0.0
    %5195 = vmatpush1.xpose.msra.mxu0 0.0
    %5196 = vmatprep.subr.mxu0 0.0
    %5197 = vmatpush1.xpose.msra.mxu0 0.0
    %5198 = vmatprep.subr.mxu0 0.0
    %5199 = vmatpush1.xpose.msra.mxu0 0.0
    %5200 = vmatprep.subr.mxu0 0.0
    %5201 = vmatpush1.xpose.msra.mxu0 0.0
    %5202 = vmatprep.subr.mxu0 0.0
    %5203 = vmatpush1.xpose.msra.mxu0 0.0
    %5204 = vmatprep.subr.mxu0 0.0
    %5205 = vmatpush1.xpose.msra.mxu0 0.0
    %5206 = vmatprep.subr.mxu0 0.0
    %5207 = vmatpush1.xpose.msra.mxu0 0.0
    %5208 = vmatprep.subr.mxu0 0.0
    %5209 = vmatpush1.xpose.msra.mxu0 0.0
    %5210 = vmatprep.subr.mxu0 0.0
    %5211 = vmatpush1.xpose.msra.mxu0 0.0
    %5212 = vmatprep.subr.mxu0 0.0
    %5213 = vmatpush1.xpose.msra.mxu0 0.0
    %5214 = vmatprep.subr.mxu0 0.0
    %5215 = vmatpush1.xpose.msra.mxu0 0.0
    %5216 = vmatprep.subr.mxu0 0.0
    %5217 = vmatpush1.xpose.msra.mxu0 0.0
    %5218 = vmatprep.subr.mxu0 0.0
    %5219 = vmatpush1.xpose.msra.mxu0 0.0
    %5220 = vmatprep.subr.mxu0 0.0
    %5221 = vmatpush1.xpose.msra.mxu0 0.0
    %5222 = vmatprep.subr.mxu0 0.0
    %5223 = vmatpush1.xpose.msra.mxu0 0.0
    %5224 = vmatprep.subr.mxu0 0.0
    %5225 = vmatpush1.xpose.msra.mxu0 0.0
    %5226 = vmatprep.subr.mxu0 0.0
    %5227 = vmatpush1.xpose.msra.mxu0 0.0
    %5228 = vmatprep.subr.mxu0 0.0
    %5229 = vmatpush1.xpose.msra.mxu0 0.0
    %5230 = vmatprep.subr.mxu0 0.0
    %5231 = vmatpush1.xpose.msra.mxu0 0.0
    %5232 = vmatprep.subr.mxu0 0.0
    %5233 = vmatpush1.xpose.msra.mxu0 0.0
    %5234 = vmatprep.subr.mxu0 0.0
    %5235 = vmatpush1.xpose.msra.mxu0 0.0
    %5236 = vmatprep.subr.mxu0 0.0
    %5237 = vmatpush1.xpose.msra.mxu0 0.0
    %5238 = vmatprep.subr.mxu0 0.0
    %5239 = vmatpush1.xpose.msra.mxu0 0.0
    %5240 = vmatprep.subr.mxu0 0.0
    %5241 = vmatpush1.xpose.msra.mxu0 0.0
    %v5242 = vand.u32 %v3618, 4294901760
    %5243 = vmatprep.mubr.f32.mxu0 %v5242
    %v5244 = vand.u32 %v3617, 4294901760
    %5245 = vmatmul.mubr.f32.gmra.mrb[0].mxu0 %v5244
    %v5246 = vpop.f32.mrb[0].mxu0
    %v5247 = vadd.f32 %v5173, %v5246
    %v5248 = vpop.f32.mrb[0].mxu0
    %5249 = vdwg.mxu0
    %v5250 = vand.u32 %v4776, 4294901760
    %5251 = vmatprep.subr.mxu0 %v5250
    %v5252 = vand.u32 %v3423, 4294901760
    %5253 = vmatpush1.xpose.msra.mxu0 %v5252
    %5254 = vmatprep.subr.mxu0 0.0
    %5255 = vmatpush1.xpose.msra.mxu0 0.0
    %5256 = vmatprep.subr.mxu0 0.0
    %5257 = vmatpush1.xpose.msra.mxu0 0.0
    %5258 = vmatprep.subr.mxu0 0.0
    %5259 = vmatpush1.xpose.msra.mxu0 0.0
    %5260 = vmatprep.subr.mxu0 0.0
    %5261 = vmatpush1.xpose.msra.mxu0 0.0
    %5262 = vmatprep.subr.mxu0 0.0
    %5263 = vmatpush1.xpose.msra.mxu0 0.0
    %5264 = vmatprep.subr.mxu0 0.0
    %5265 = vmatpush1.xpose.msra.mxu0 0.0
    %5266 = vmatprep.subr.mxu0 0.0
    %5267 = vmatpush1.xpose.msra.mxu0 0.0
    %5268 = vmatprep.subr.mxu0 0.0
    %5269 = vmatpush1.xpose.msra.mxu0 0.0
    %5270 = vmatprep.subr.mxu0 0.0
    %5271 = vmatpush1.xpose.msra.mxu0 0.0
    %5272 = vmatprep.subr.mxu0 0.0
    %5273 = vmatpush1.xpose.msra.mxu0 0.0
    %5274 = vmatprep.subr.mxu0 0.0
    %5275 = vmatpush1.xpose.msra.mxu0 0.0
    %5276 = vmatprep.subr.mxu0 0.0
    %5277 = vmatpush1.xpose.msra.mxu0 0.0
    %5278 = vmatprep.subr.mxu0 0.0
    %5279 = vmatpush1.xpose.msra.mxu0 0.0
    %5280 = vmatprep.subr.mxu0 0.0
    %5281 = vmatpush1.xpose.msra.mxu0 0.0
    %5282 = vmatprep.subr.mxu0 0.0
    %5283 = vmatpush1.xpose.msra.mxu0 0.0
    %5284 = vmatprep.subr.mxu0 0.0
    %5285 = vmatpush1.xpose.msra.mxu0 0.0
    %5286 = vmatprep.subr.mxu0 0.0
    %5287 = vmatpush1.xpose.msra.mxu0 0.0
    %5288 = vmatprep.subr.mxu0 0.0
    %5289 = vmatpush1.xpose.msra.mxu0 0.0
    %5290 = vmatprep.subr.mxu0 0.0
    %5291 = vmatpush1.xpose.msra.mxu0 0.0
    %5292 = vmatprep.subr.mxu0 0.0
    %5293 = vmatpush1.xpose.msra.mxu0 0.0
    %5294 = vmatprep.subr.mxu0 0.0
    %5295 = vmatpush1.xpose.msra.mxu0 0.0
    %5296 = vmatprep.subr.mxu0 0.0
    %5297 = vmatpush1.xpose.msra.mxu0 0.0
    %5298 = vmatprep.subr.mxu0 0.0
    %5299 = vmatpush1.xpose.msra.mxu0 0.0
    %5300 = vmatprep.subr.mxu0 0.0
    %5301 = vmatpush1.xpose.msra.mxu0 0.0
    %5302 = vmatprep.subr.mxu0 0.0
    %5303 = vmatpush1.xpose.msra.mxu0 0.0
    %5304 = vmatprep.subr.mxu0 0.0
    %5305 = vmatpush1.xpose.msra.mxu0 0.0
    %5306 = vmatprep.subr.mxu0 0.0
    %5307 = vmatpush1.xpose.msra.mxu0 0.0
    %5308 = vmatprep.subr.mxu0 0.0
    %5309 = vmatpush1.xpose.msra.mxu0 0.0
    %5310 = vmatprep.subr.mxu0 0.0
    %5311 = vmatpush1.xpose.msra.mxu0 0.0
    %5312 = vmatprep.subr.mxu0 0.0
    %5313 = vmatpush1.xpose.msra.mxu0 0.0
    %5314 = vmatprep.subr.mxu0 0.0
    %5315 = vmatpush1.xpose.msra.mxu0 0.0
    %v5316 = vand.u32 %v4774, 4294901760
    %v5317 = vsub.f32 %v4774, %v5316
    %v5318 = vand.u32 %v5317, 4294901760
    %v5319 = vsub.f32 %v5317, %v5318
    %v5320 = vand.u32 %v5319, 4294901760
    %5321 = vmatprep.mubr.f32.mxu0 %v5320
    %v5322 = vand.u32 %v3619, 4294901760
    %v5323 = vsub.f32 %v3619, %v5322
    %v5324 = vand.u32 %v5323, 4294901760
    %v5325 = vsub.f32 %v5323, %v5324
    %v5326 = vand.u32 %v5325, 4294901760
    %5327 = vmatmul.mubr.f32.gmra.mrb[0].mxu0 %v5326
    %v5328 = vpop.f32.mrb[0].mxu0
    %v5329 = vadd.f32 %v5247, %v5328
    %v5330 = vpop.f32.mrb[0].mxu0
    %5331 = vdwg.mxu0
    %v5332 = vand.u32 %v4776, 4294901760
    %v5333 = vsub.f32 %v4776, %v5332
    %v5334 = vand.u32 %v5333, 4294901760
    %v5335 = vsub.f32 %v5333, %v5334
    %v5336 = vand.u32 %v5335, 4294901760
    %5337 = vmatprep.subr.mxu0 %v5336
    %v5338 = vand.u32 %v3423, 4294901760
    %v5339 = vsub.f32 %v3423, %v5338
    %v5340 = vand.u32 %v5339, 4294901760
    %v5341 = vsub.f32 %v5339, %v5340
    %v5342 = vand.u32 %v5341, 4294901760
    %5343 = vmatpush1.xpose.msra.mxu0 %v5342
    %5344 = vmatprep.subr.mxu0 0.0
    %5345 = vmatpush1.xpose.msra.mxu0 0.0
    %5346 = vmatprep.subr.mxu0 0.0
    %5347 = vmatpush1.xpose.msra.mxu0 0.0
    %5348 = vmatprep.subr.mxu0 0.0
    %5349 = vmatpush1.xpose.msra.mxu0 0.0
    %5350 = vmatprep.subr.mxu0 0.0
    %5351 = vmatpush1.xpose.msra.mxu0 0.0
    %5352 = vmatprep.subr.mxu0 0.0
    %5353 = vmatpush1.xpose.msra.mxu0 0.0
    %5354 = vmatprep.subr.mxu0 0.0
    %5355 = vmatpush1.xpose.msra.mxu0 0.0
    %5356 = vmatprep.subr.mxu0 0.0
    %5357 = vmatpush1.xpose.msra.mxu0 0.0
    %5358 = vmatprep.subr.mxu0 0.0
    %5359 = vmatpush1.xpose.msra.mxu0 0.0
    %5360 = vmatprep.subr.mxu0 0.0
    %5361 = vmatpush1.xpose.msra.mxu0 0.0
    %5362 = vmatprep.subr.mxu0 0.0
    %5363 = vmatpush1.xpose.msra.mxu0 0.0
    %5364 = vmatprep.subr.mxu0 0.0
    %5365 = vmatpush1.xpose.msra.mxu0 0.0
    %5366 = vmatprep.subr.mxu0 0.0
    %5367 = vmatpush1.xpose.msra.mxu0 0.0
    %5368 = vmatprep.subr.mxu0 0.0
    %5369 = vmatpush1.xpose.msra.mxu0 0.0
    %5370 = vmatprep.subr.mxu0 0.0
    %5371 = vmatpush1.xpose.msra.mxu0 0.0
    %5372 = vmatprep.subr.mxu0 0.0
    %5373 = vmatpush1.xpose.msra.mxu0 0.0
    %5374 = vmatprep.subr.mxu0 0.0
    %5375 = vmatpush1.xpose.msra.mxu0 0.0
    %5376 = vmatprep.subr.mxu0 0.0
    %5377 = vmatpush1.xpose.msra.mxu0 0.0
    %5378 = vmatprep.subr.mxu0 0.0
    %5379 = vmatpush1.xpose.msra.mxu0 0.0
    %5380 = vmatprep.subr.mxu0 0.0
    %5381 = vmatpush1.xpose.msra.mxu0 0.0
    %5382 = vmatprep.subr.mxu0 0.0
    %5383 = vmatpush1.xpose.msra.mxu0 0.0
    %5384 = vmatprep.subr.mxu0 0.0
    %5385 = vmatpush1.xpose.msra.mxu0 0.0
    %5386 = vmatprep.subr.mxu0 0.0
    %5387 = vmatpush1.xpose.msra.mxu0 0.0
    %5388 = vmatprep.subr.mxu0 0.0
    %5389 = vmatpush1.xpose.msra.mxu0 0.0
    %5390 = vmatprep.subr.mxu0 0.0
    %5391 = vmatpush1.xpose.msra.mxu0 0.0
    %5392 = vmatprep.subr.mxu0 0.0
    %5393 = vmatpush1.xpose.msra.mxu0 0.0
    %5394 = vmatprep.subr.mxu0 0.0
    %5395 = vmatpush1.xpose.msra.mxu0 0.0
    %5396 = vmatprep.subr.mxu0 0.0
    %5397 = vmatpush1.xpose.msra.mxu0 0.0
    %5398 = vmatprep.subr.mxu0 0.0
    %5399 = vmatpush1.xpose.msra.mxu0 0.0
    %5400 = vmatprep.subr.mxu0 0.0
    %5401 = vmatpush1.xpose.msra.mxu0 0.0
    %5402 = vmatprep.subr.mxu0 0.0
    %5403 = vmatpush1.xpose.msra.mxu0 0.0
    %5404 = vmatprep.subr.mxu0 0.0
    %5405 = vmatpush1.xpose.msra.mxu0 0.0
    %v5406 = vand.u32 %v4774, 4294901760
    %5407 = vmatprep.mubr.f32.mxu0 %v5406
    %v5408 = vand.u32 %v3619, 4294901760
    %5409 = vmatmul.mubr.f32.gmra.mrb[0].mxu0 %v5408
    %v5410 = vpop.f32.mrb[0].mxu0
    %v5411 = vadd.f32 %v5329, %v5410
    %v5412 = vpop.f32.mrb[0].mxu0
    %5413 = vdwg.mxu0
    %v5414 = vand.u32 %v4776, 4294901760
    %v5415 = vsub.f32 %v4776, %v5414
    %5416 = vmatprep.subr.mxu0 %v5415
    %v5417 = vand.u32 %v3423, 4294901760
    %v5418 = vsub.f32 %v3423, %v5417
    %5419 = vmatpush1.xpose.msra.mxu0 %v5418
    %5420 = vmatprep.subr.mxu0 0.0
    %5421 = vmatpush1.xpose.msra.mxu0 0.0
    %5422 = vmatprep.subr.mxu0 0.0
    %5423 = vmatpush1.xpose.msra.mxu0 0.0
    %5424 = vmatprep.subr.mxu0 0.0
    %5425 = vmatpush1.xpose.msra.mxu0 0.0
    %5426 = vmatprep.subr.mxu0 0.0
    %5427 = vmatpush1.xpose.msra.mxu0 0.0
    %5428 = vmatprep.subr.mxu0 0.0
    %5429 = vmatpush1.xpose.msra.mxu0 0.0
    %5430 = vmatprep.subr.mxu0 0.0
    %5431 = vmatpush1.xpose.msra.mxu0 0.0
    %5432 = vmatprep.subr.mxu0 0.0
    %5433 = vmatpush1.xpose.msra.mxu0 0.0
    %5434 = vmatprep.subr.mxu0 0.0
    %5435 = vmatpush1.xpose.msra.mxu0 0.0
    %5436 = vmatprep.subr.mxu0 0.0
    %5437 = vmatpush1.xpose.msra.mxu0 0.0
    %5438 = vmatprep.subr.mxu0 0.0
    %5439 = vmatpush1.xpose.msra.mxu0 0.0
    %5440 = vmatprep.subr.mxu0 0.0
    %5441 = vmatpush1.xpose.msra.mxu0 0.0
    %5442 = vmatprep.subr.mxu0 0.0
    %5443 = vmatpush1.xpose.msra.mxu0 0.0
    %5444 = vmatprep.subr.mxu0 0.0
    %5445 = vmatpush1.xpose.msra.mxu0 0.0
    %5446 = vmatprep.subr.mxu0 0.0
    %5447 = vmatpush1.xpose.msra.mxu0 0.0
    %5448 = vmatprep.subr.mxu0 0.0
    %5449 = vmatpush1.xpose.msra.mxu0 0.0
    %5450 = vmatprep.subr.mxu0 0.0
    %5451 = vmatpush1.xpose.msra.mxu0 0.0
    %5452 = vmatprep.subr.mxu0 0.0
    %5453 = vmatpush1.xpose.msra.mxu0 0.0
    %5454 = vmatprep.subr.mxu0 0.0
    %5455 = vmatpush1.xpose.msra.mxu0 0.0
    %5456 = vmatprep.subr.mxu0 0.0
    %5457 = vmatpush1.xpose.msra.mxu0 0.0
    %5458 = vmatprep.subr.mxu0 0.0
    %5459 = vmatpush1.xpose.msra.mxu0 0.0
    %5460 = vmatprep.subr.mxu0 0.0
    %5461 = vmatpush1.xpose.msra.mxu0 0.0
    %5462 = vmatprep.subr.mxu0 0.0
    %5463 = vmatpush1.xpose.msra.mxu0 0.0
    %5464 = vmatprep.subr.mxu0 0.0
    %5465 = vmatpush1.xpose.msra.mxu0 0.0
    %5466 = vmatprep.subr.mxu0 0.0
    %5467 = vmatpush1.xpose.msra.mxu0 0.0
    %5468 = vmatprep.subr.mxu0 0.0
    %5469 = vmatpush1.xpose.msra.mxu0 0.0
    %5470 = vmatprep.subr.mxu0 0.0
    %5471 = vmatpush1.xpose.msra.mxu0 0.0
    %5472 = vmatprep.subr.mxu0 0.0
    %5473 = vmatpush1.xpose.msra.mxu0 0.0
    %5474 = vmatprep.subr.mxu0 0.0
    %5475 = vmatpush1.xpose.msra.mxu0 0.0
    %5476 = vmatprep.subr.mxu0 0.0
    %5477 = vmatpush1.xpose.msra.mxu0 0.0
    %5478 = vmatprep.subr.mxu0 0.0
    %5479 = vmatpush1.xpose.msra.mxu0 0.0
    %5480 = vmatprep.subr.mxu0 0.0
    %5481 = vmatpush1.xpose.msra.mxu0 0.0
    %v5482 = vand.u32 %v4774, 4294901760
    %v5483 = vsub.f32 %v4774, %v5482
    %5484 = vmatprep.mubr.f32.mxu0 %v5483
    %v5485 = vand.u32 %v3619, 4294901760
    %v5486 = vsub.f32 %v3619, %v5485
    %5487 = vmatmul.mubr.f32.gmra.mrb[0].mxu0 %v5486
    %v5488 = vpop.f32.mrb[0].mxu0
    %v5489 = vadd.f32 %v5411, %v5488
    %v5490 = vpop.f32.mrb[0].mxu0
    %5491 = vdwg.mxu0
    %v5492 = vand.u32 %v4776, 4294901760
    %5493 = vmatprep.subr.mxu0 %v5492
    %v5494 = vand.u32 %v3423, 4294901760
    %5495 = vmatpush1.xpose.msra.mxu0 %v5494
    %5496 = vmatprep.subr.mxu0 0.0
    %5497 = vmatpush1.xpose.msra.mxu0 0.0
    %5498 = vmatprep.subr.mxu0 0.0
    %5499 = vmatpush1.xpose.msra.mxu0 0.0
    %5500 = vmatprep.subr.mxu0 0.0
    %5501 = vmatpush1.xpose.msra.mxu0 0.0
    %5502 = vmatprep.subr.mxu0 0.0
    %5503 = vmatpush1.xpose.msra.mxu0 0.0
    %5504 = vmatprep.subr.mxu0 0.0
    %5505 = vmatpush1.xpose.msra.mxu0 0.0
    %5506 = vmatprep.subr.mxu0 0.0
    %5507 = vmatpush1.xpose.msra.mxu0 0.0
    %5508 = vmatprep.subr.mxu0 0.0
    %5509 = vmatpush1.xpose.msra.mxu0 0.0
    %5510 = vmatprep.subr.mxu0 0.0
    %5511 = vmatpush1.xpose.msra.mxu0 0.0
    %5512 = vmatprep.subr.mxu0 0.0
    %5513 = vmatpush1.xpose.msra.mxu0 0.0
    %5514 = vmatprep.subr.mxu0 0.0
    %5515 = vmatpush1.xpose.msra.mxu0 0.0
    %5516 = vmatprep.subr.mxu0 0.0
    %5517 = vmatpush1.xpose.msra.mxu0 0.0
    %5518 = vmatprep.subr.mxu0 0.0
    %5519 = vmatpush1.xpose.msra.mxu0 0.0
    %5520 = vmatprep.subr.mxu0 0.0
    %5521 = vmatpush1.xpose.msra.mxu0 0.0
    %5522 = vmatprep.subr.mxu0 0.0
    %5523 = vmatpush1.xpose.msra.mxu0 0.0
    %5524 = vmatprep.subr.mxu0 0.0
    %5525 = vmatpush1.xpose.msra.mxu0 0.0
    %5526 = vmatprep.subr.mxu0 0.0
    %5527 = vmatpush1.xpose.msra.mxu0 0.0
    %5528 = vmatprep.subr.mxu0 0.0
    %5529 = vmatpush1.xpose.msra.mxu0 0.0
    %5530 = vmatprep.subr.mxu0 0.0
    %5531 = vmatpush1.xpose.msra.mxu0 0.0
    %5532 = vmatprep.subr.mxu0 0.0
    %5533 = vmatpush1.xpose.msra.mxu0 0.0
    %5534 = vmatprep.subr.mxu0 0.0
    %5535 = vmatpush1.xpose.msra.mxu0 0.0
    %5536 = vmatprep.subr.mxu0 0.0
    %5537 = vmatpush1.xpose.msra.mxu0 0.0
    %5538 = vmatprep.subr.mxu0 0.0
    %5539 = vmatpush1.xpose.msra.mxu0 0.0
    %5540 = vmatprep.subr.mxu0 0.0
    %5541 = vmatpush1.xpose.msra.mxu0 0.0
    %5542 = vmatprep.subr.mxu0 0.0
    %5543 = vmatpush1.xpose.msra.mxu0 0.0
    %5544 = vmatprep.subr.mxu0 0.0
    %5545 = vmatpush1.xpose.msra.mxu0 0.0
    %5546 = vmatprep.subr.mxu0 0.0
    %5547 = vmatpush1.xpose.msra.mxu0 0.0
    %5548 = vmatprep.subr.mxu0 0.0
    %5549 = vmatpush1.xpose.msra.mxu0 0.0
    %5550 = vmatprep.subr.mxu0 0.0
    %5551 = vmatpush1.xpose.msra.mxu0 0.0
    %5552 = vmatprep.subr.mxu0 0.0
    %5553 = vmatpush1.xpose.msra.mxu0 0.0
    %5554 = vmatprep.subr.mxu0 0.0
    %5555 = vmatpush1.xpose.msra.mxu0 0.0
    %5556 = vmatprep.subr.mxu0 0.0
    %5557 = vmatpush1.xpose.msra.mxu0 0.0
    %v5558 = vand.u32 %v4774, 4294901760
    %v5559 = vsub.f32 %v4774, %v5558
    %v5560 = vand.u32 %v5559, 4294901760
    %5561 = vmatprep.mubr.f32.mxu0 %v5560
    %v5562 = vand.u32 %v3619, 4294901760
    %v5563 = vsub.f32 %v3619, %v5562
    %v5564 = vand.u32 %v5563, 4294901760
    %5565 = vmatmul.mubr.f32.gmra.mrb[0].mxu0 %v5564
    %v5566 = vpop.f32.mrb[0].mxu0
    %v5567 = vadd.f32 %v5489, %v5566
    %v5568 = vpop.f32.mrb[0].mxu0
    %5569 = vdwg.mxu0
    %v5570 = vand.u32 %v4776, 4294901760
    %v5571 = vsub.f32 %v4776, %v5570
    %v5572 = vand.u32 %v5571, 4294901760
    %5573 = vmatprep.subr.mxu0 %v5572
    %v5574 = vand.u32 %v3423, 4294901760
    %v5575 = vsub.f32 %v3423, %v5574
    %v5576 = vand.u32 %v5575, 4294901760
    %5577 = vmatpush1.xpose.msra.mxu0 %v5576
    %5578 = vmatprep.subr.mxu0 0.0
    %5579 = vmatpush1.xpose.msra.mxu0 0.0
    %5580 = vmatprep.subr.mxu0 0.0
    %5581 = vmatpush1.xpose.msra.mxu0 0.0
    %5582 = vmatprep.subr.mxu0 0.0
    %5583 = vmatpush1.xpose.msra.mxu0 0.0
    %5584 = vmatprep.subr.mxu0 0.0
    %5585 = vmatpush1.xpose.msra.mxu0 0.0
    %5586 = vmatprep.subr.mxu0 0.0
    %5587 = vmatpush1.xpose.msra.mxu0 0.0
    %5588 = vmatprep.subr.mxu0 0.0
    %5589 = vmatpush1.xpose.msra.mxu0 0.0
    %5590 = vmatprep.subr.mxu0 0.0
    %5591 = vmatpush1.xpose.msra.mxu0 0.0
    %5592 = vmatprep.subr.mxu0 0.0
    %5593 = vmatpush1.xpose.msra.mxu0 0.0
    %5594 = vmatprep.subr.mxu0 0.0
    %5595 = vmatpush1.xpose.msra.mxu0 0.0
    %5596 = vmatprep.subr.mxu0 0.0
    %5597 = vmatpush1.xpose.msra.mxu0 0.0
    %5598 = vmatprep.subr.mxu0 0.0
    %5599 = vmatpush1.xpose.msra.mxu0 0.0
    %5600 = vmatprep.subr.mxu0 0.0
    %5601 = vmatpush1.xpose.msra.mxu0 0.0
    %5602 = vmatprep.subr.mxu0 0.0
    %5603 = vmatpush1.xpose.msra.mxu0 0.0
    %5604 = vmatprep.subr.mxu0 0.0
    %5605 = vmatpush1.xpose.msra.mxu0 0.0
    %5606 = vmatprep.subr.mxu0 0.0
    %5607 = vmatpush1.xpose.msra.mxu0 0.0
    %5608 = vmatprep.subr.mxu0 0.0
    %5609 = vmatpush1.xpose.msra.mxu0 0.0
    %5610 = vmatprep.subr.mxu0 0.0
    %5611 = vmatpush1.xpose.msra.mxu0 0.0
    %5612 = vmatprep.subr.mxu0 0.0
    %5613 = vmatpush1.xpose.msra.mxu0 0.0
    %5614 = vmatprep.subr.mxu0 0.0
    %5615 = vmatpush1.xpose.msra.mxu0 0.0
    %5616 = vmatprep.subr.mxu0 0.0
    %5617 = vmatpush1.xpose.msra.mxu0 0.0
    %5618 = vmatprep.subr.mxu0 0.0
    %5619 = vmatpush1.xpose.msra.mxu0 0.0
    %5620 = vmatprep.subr.mxu0 0.0
    %5621 = vmatpush1.xpose.msra.mxu0 0.0
    %5622 = vmatprep.subr.mxu0 0.0
    %5623 = vmatpush1.xpose.msra.mxu0 0.0
    %5624 = vmatprep.subr.mxu0 0.0
    %5625 = vmatpush1.xpose.msra.mxu0 0.0
    %5626 = vmatprep.subr.mxu0 0.0
    %5627 = vmatpush1.xpose.msra.mxu0 0.0
    %5628 = vmatprep.subr.mxu0 0.0
    %5629 = vmatpush1.xpose.msra.mxu0 0.0
    %5630 = vmatprep.subr.mxu0 0.0
    %5631 = vmatpush1.xpose.msra.mxu0 0.0
    %5632 = vmatprep.subr.mxu0 0.0
    %5633 = vmatpush1.xpose.msra.mxu0 0.0
    %5634 = vmatprep.subr.mxu0 0.0
    %5635 = vmatpush1.xpose.msra.mxu0 0.0
    %5636 = vmatprep.subr.mxu0 0.0
    %5637 = vmatpush1.xpose.msra.mxu0 0.0
    %5638 = vmatprep.subr.mxu0 0.0
    %5639 = vmatpush1.xpose.msra.mxu0 0.0
    %v5640 = vand.u32 %v4774, 4294901760
    %5641 = vmatprep.mubr.f32.mxu0 %v5640
    %v5642 = vand.u32 %v3619, 4294901760
    %5643 = vmatmul.mubr.f32.gmra.mrb[0].mxu0 %v5642
    %v5644 = vpop.f32.mrb[0].mxu0
    %v5645 = vadd.f32 %v5567, %v5644
    %v5646 = vpop.f32.mrb[0].mxu0
    %5647 = vdwg.mxu0
    %v5648 = vand.u32 %v4776, 4294901760
    %5649 = vmatprep.subr.mxu0 %v5648
    %v5650 = vand.u32 %v3423, 4294901760
    %5651 = vmatpush1.xpose.msra.mxu0 %v5650
    %5652 = vmatprep.subr.mxu0 0.0
    %5653 = vmatpush1.xpose.msra.mxu0 0.0
    %5654 = vmatprep.subr.mxu0 0.0
    %5655 = vmatpush1.xpose.msra.mxu0 0.0
    %5656 = vmatprep.subr.mxu0 0.0
    %5657 = vmatpush1.xpose.msra.mxu0 0.0
    %5658 = vmatprep.subr.mxu0 0.0
    %5659 = vmatpush1.xpose.msra.mxu0 0.0
    %5660 = vmatprep.subr.mxu0 0.0
    %5661 = vmatpush1.xpose.msra.mxu0 0.0
    %5662 = vmatprep.subr.mxu0 0.0
    %5663 = vmatpush1.xpose.msra.mxu0 0.0
    %5664 = vmatprep.subr.mxu0 0.0
    %5665 = vmatpush1.xpose.msra.mxu0 0.0
    %5666 = vmatprep.subr.mxu0 0.0
    %5667 = vmatpush1.xpose.msra.mxu0 0.0
    %5668 = vmatprep.subr.mxu0 0.0
    %5669 = vmatpush1.xpose.msra.mxu0 0.0
    %5670 = vmatprep.subr.mxu0 0.0
    %5671 = vmatpush1.xpose.msra.mxu0 0.0
    %5672 = vmatprep.subr.mxu0 0.0
    %5673 = vmatpush1.xpose.msra.mxu0 0.0
    %5674 = vmatprep.subr.mxu0 0.0
    %5675 = vmatpush1.xpose.msra.mxu0 0.0
    %5676 = vmatprep.subr.mxu0 0.0
    %5677 = vmatpush1.xpose.msra.mxu0 0.0
    %5678 = vmatprep.subr.mxu0 0.0
    %5679 = vmatpush1.xpose.msra.mxu0 0.0
    %5680 = vmatprep.subr.mxu0 0.0
    %5681 = vmatpush1.xpose.msra.mxu0 0.0
    %5682 = vmatprep.subr.mxu0 0.0
    %5683 = vmatpush1.xpose.msra.mxu0 0.0
    %5684 = vmatprep.subr.mxu0 0.0
    %5685 = vmatpush1.xpose.msra.mxu0 0.0
    %5686 = vmatprep.subr.mxu0 0.0
    %5687 = vmatpush1.xpose.msra.mxu0 0.0
    %5688 = vmatprep.subr.mxu0 0.0
    %5689 = vmatpush1.xpose.msra.mxu0 0.0
    %5690 = vmatprep.subr.mxu0 0.0
    %5691 = vmatpush1.xpose.msra.mxu0 0.0
    %5692 = vmatprep.subr.mxu0 0.0
    %5693 = vmatpush1.xpose.msra.mxu0 0.0
    %5694 = vmatprep.subr.mxu0 0.0
    %5695 = vmatpush1.xpose.msra.mxu0 0.0
    %5696 = vmatprep.subr.mxu0 0.0
    %5697 = vmatpush1.xpose.msra.mxu0 0.0
    %5698 = vmatprep.subr.mxu0 0.0
    %5699 = vmatpush1.xpose.msra.mxu0 0.0
    %5700 = vmatprep.subr.mxu0 0.0
    %5701 = vmatpush1.xpose.msra.mxu0 0.0
    %5702 = vmatprep.subr.mxu0 0.0
    %5703 = vmatpush1.xpose.msra.mxu0 0.0
    %5704 = vmatprep.subr.mxu0 0.0
    %5705 = vmatpush1.xpose.msra.mxu0 0.0
    %5706 = vmatprep.subr.mxu0 0.0
    %5707 = vmatpush1.xpose.msra.mxu0 0.0
    %5708 = vmatprep.subr.mxu0 0.0
    %5709 = vmatpush1.xpose.msra.mxu0 0.0
    %5710 = vmatprep.subr.mxu0 0.0
    %5711 = vmatpush1.xpose.msra.mxu0 0.0
    %5712 = vmatprep.subr.mxu0 0.0
    %5713 = vmatpush1.xpose.msra.mxu0 0.0
    %v5714 = vand.u32 %v4774, 4294901760
    %5715 = vmatprep.mubr.f32.mxu0 %v5714
    %v5716 = vand.u32 %v3619, 4294901760
    %5717 = vmatmul.mubr.f32.gmra.mrb[0].mxu0 %v5716
    %v5718 = vpop.f32.mrb[0].mxu0
    %v5719 = vadd.f32 %v5645, %v5718
    %v5720 = vpop.f32.mrb[0].mxu0
    %5721 = vdwg.mxu0
    %v5722 = vmax.f32 %v5719, 1e-30
    %v5723 = vlog2.pop %v5722
    %v5724 = vmul.f32 %v5723, 0.6931472
    %v5725 = vadd.f32 %v3428, %v5724
    %vm5726 = vcmask 25600
    %5727 = vst.msk [vmem:[#allocation2] sm:$0x3] %vm5726, %v5725
    // Predicated region
    $region22: #{ratspn_forward.1} parent=1 // pred_check
      _
    $region23: #{ratspn_forward.1} parent=1 // pred_check_branch
      %5729 = sbr.rel (0) target = $region25
    $region24: #{ratspn_forward.1} parent=1 // pred_region
      %s5731 = ssub.s32 32, 32
      %5732 = vsyncadd [#allocation3], %s5731
      %s5734 = sshll.u32 [#allocation2], 4
      %s5735 = int_to_ptr.vmem [resolvable:$true] %s5734
      %5737 = dma.vmem_to_hbm [thread:$0]  %s5735, 32, %s5, [#allocation3]
    $region25: #{ratspn_forward.1} parent=1 // pred_fallthru
      _
    // Predicated region
    $region26: #{ratspn_forward.1} parent=1 // pred_check
      _
    $region27: #{ratspn_forward.1} parent=1 // pred_check_branch
      %5739 = sbr.rel (0) target = $region29
    $region28: #{ratspn_forward.1} parent=1 // pred_region
      %5740 = dma.done [#allocation3], 32
    $region29: #{ratspn_forward.1} parent=1 // pred_fallthru
      _
    %5741 = vsyncpa [#allocation3], 1

</llo_original>
